<compile_context>
chip_gen: v6e
topology: v6e:2x2x1
jax: 0.10.0
libtpu: 0.0.40
codegen_flags: <defaults>
</compile_context>

<pallas_src>
import jax
import jax.numpy as jnp
from jax import lax
from jax.experimental import pallas as pl
from jax.experimental.pallas import tpu as pltpu


# ----------------------------------------------------------------------------
# Fused kernel: RPENet + head-wise contraction; one grid step per (b, t-tile).
# ----------------------------------------------------------------------------
def _make_fused_kernel(mode, num_heads, t_blk, seq_s, head_dim):
    H, Fd, S, T = num_heads, head_dim, seq_s, t_blk
    TS = T * S

    def kernel(temb_ref, rd_ref, w_time_ref, b_time_ref, w_dist_ref,
               b_dist_ref, w_out_ref, b_out_ref, x_ref, o_ref, r_scratch):
        C = w_out_ref.shape[0]
        D = x_ref.shape[0]

        temb = temb_ref[...]                                  # (T, E)
        rd = rd_ref[...]                                      # (T, S)

        # ---- RPENet: diffusion-time embedding (per t row) ----------------
        time_emb = (jnp.dot(temb, w_time_ref[...],
                            preferred_element_type=jnp.float32)
                    + b_time_ref[...])                        # (T, C)

        # ---- RPENet: distance features as ONE K=3 MXU matmul -------------
        f0 = jnp.log(1.0 + jnp.maximum(rd, 0.0))              # (T, S)
        f1 = jnp.log(1.0 + jnp.maximum(-rd, 0.0))             # (T, S)
        # Exact-zero test matches the PyTorch reference; distances are built
        # from integer frame indices so this is exact.  Use |rd| < eps if
        # distances ever carry float error.
        f2 = (rd == 0.0).astype(jnp.float32)                  # (T, S)
        feats = jnp.stack([f0, f1, f2], axis=-1).reshape(TS, 3)
        dist_emb = jnp.dot(feats, w_dist_ref[...],
                           preferred_element_type=jnp.float32)  # (TS, C)

        emb = (jnp.broadcast_to(time_emb[:, None, :], (T, S, C)).reshape(TS, C)
               + dist_emb + b_dist_ref[...])                  # (TS, C)
        h_act = emb * jax.nn.sigmoid(emb)                     # SiLU (EUP)

        # ---- single fused out-projection for ALL heads --------------------
        # Staged through VMEM scratch; per-head views below are free static
        # lane slices of this buffer.
        r_scratch[...] = (jnp.dot(h_act, w_out_ref[...],
                                  preferred_element_type=jnp.float32)
                          + b_out_ref[...])                   # (TS, C)

        # ---- per-head contraction (H small & static -> unrolled) ----------
        for h in range(H):
            R_h = r_scratch[:, h * Fd:(h + 1) * Fd].reshape(T, S, Fd)
            x_h = x_ref[:, h, :]                              # (D, T*inner_in)

            if mode == 'qk':
                x_h3 = x_h.reshape(D, T, Fd)
                # y[t,d,s] = sum_f x[d,t,f] * R[t,s,f]   (batch t, contract f)
                y = lax.dot_general(
                    x_h3, R_h,
                    dimension_numbers=(((2,), (2,)), ((1,), (0,))),
                    preferred_element_type=jnp.float32)       # (T, D, S)
                inner_out = S
            else:  # mode == 'v'
                x_h3 = x_h.reshape(D, T, S)
                # y[t,d,f] = sum_s x[d,t,s] * R[t,s,f]   (batch t, contract s)
                y = lax.dot_general(
                    x_h3, R_h,
                    dimension_numbers=(((2,), (1,)), ((1,), (0,))),
                    preferred_element_type=jnp.float32)       # (T, D, Fd)
                inner_out = Fd

            # dot_general puts the batch dim (t) first; permute back to the
            # PyTorch 'bdht.' order and store one dense (D, T*inner) slab per
            # head (unmasked lanes once T*inner >= 128).
            y = jnp.transpose(y, (1, 0, 2)).reshape(D, T * inner_out)
            o_ref[:, h, :] = y.astype(o_ref.dtype)

    return kernel


def _choose_t_blk(T, x_last, out_last, D, H, itemsize=4):
    """Pick a T tile.  Sub-tiles must keep the (8,128) BlockSpec rule on every
    affected block dim (full-T blocks are always legal) and keep the
    double-buffered x/out blocks well under v7x's 64 MiB VMEM."""
    budget = 24 * 1024 * 1024

    def block_bytes(tb):
        return 2 * D * H * tb * (x_last + out_last) * itemsize  # 2x = dbl buf

    for cand in (128, 64, 32, 16, 8):
        if (cand < T and T % cand == 0
                and (cand * x_last) % 128 == 0
                and (cand * out_last) % 128 == 0
                and block_bytes(cand) <= budget):
            return cand
    return T


def rpe_forward(x, pairwise_distances, temb, mode, params, num_heads):
    """Pallas implementation of RPE.forward (use_rpe_net=True)."""
    if mode not in ('qk', 'v'):
        raise ValueError(f'Unexpected RPE attention mode: {mode}')

    B, T, S = pairwise_distances.shape
    E = temb.shape[-1]
    C = params["w_out"].shape[0]
    H = num_heads
    Fd = C // H
    D = x.shape[1]

    x_last = Fd if mode == 'qk' else S
    out_last = S if mode == 'qk' else Fd

    t_blk = _choose_t_blk(T, x_last, out_last, D, H)
    nt = T // t_blk

    # Lane-dense presentation: fold (T, inner) -> T*inner on both x and the
    # output.  These reshapes are contiguous (free at the HBM level).
    x_flat = x.reshape(B, D, H, T * x_last)

    def full_spec(a):
        return pl.BlockSpec(a.shape, lambda b, ti, _n=a.ndim: (0,) * _n)

    kernel = _make_fused_kernel(mode, H, t_blk, S, Fd)

    out_flat = pl.pallas_call(
        kernel,
        out_shape=jax.ShapeDtypeStruct((B, D, H, T * out_last), x.dtype),
        grid=(B, nt),
        in_specs=[
            pl.BlockSpec((None, t_blk, E), lambda b, ti: (b, ti, 0)),   # temb
            pl.BlockSpec((None, t_blk, S), lambda b, ti: (b, ti, 0)),   # dists
            full_spec(params["w_time"]),
            full_spec(params["b_time"]),
            full_spec(params["w_dist"]),
            full_spec(params["b_dist"]),
            full_spec(params["w_out"]),
            full_spec(params["b_out"]),
            pl.BlockSpec((None, D, H, t_blk * x_last),
                         lambda b, ti: (b, 0, 0, ti)),                  # qk/attn
        ],
        out_specs=pl.BlockSpec((None, D, H, t_blk * out_last),
                               lambda b, ti: (b, 0, 0, ti)),
        scratch_shapes=[pltpu.VMEM((t_blk * S, C), jnp.float32)],
        compiler_params=pltpu.CompilerParams(
            dimension_semantics=("parallel", "parallel")),
    )(temb, pairwise_distances, params["w_time"], params["b_time"],
      params["w_dist"], params["b_dist"], params["w_out"], params["b_out"],
      x_flat)

    return out_flat.reshape(B, D, H, T, out_last)


# ----------------------------------------------------------------------------
# Pure-JAX reference (for correctness check only)
# ----------------------------------------------------------------------------
def rpe_ref(x, rd, temb, mode, p, H):
    B, T, S = rd.shape
    C = p["w_out"].shape[0]
    feats = jnp.stack([jnp.log(1.0 + jnp.maximum(rd, 0.0)),
                       jnp.log(1.0 + jnp.maximum(-rd, 0.0)),
                       (rd == 0.0).astype(jnp.float32)], axis=-1)
    emb = ((temb @ p["w_time"] + p["b_time"][0])[:, :, None, :]
           + (feats @ p["w_dist"] + p["b_dist"][0]))
    h = emb * jax.nn.sigmoid(emb)
    R = (h @ p["w_out"] + p["b_out"][0]).reshape(B, T, S, H, C // H)
    if mode == 'qk':
        return jnp.einsum('bdhtf,btshf->bdhts', x, R)
    return jnp.einsum('bdhts,btshf->bdhtf', x, R)


# ----------------------------------------------------------------------------
if __name__ == "__main__":
    B, T, C, H, E, D = 2, 8, 32, 4, 32, 4
    Fd = C // H

    key = jax.random.PRNGKey(0)
    k = jax.random.split(key, 10)
    params = {
        "w_dist": jax.random.normal(k[0], (3, C), jnp.float32) * 0.3,
        "b_dist": jax.random.normal(k[1], (1, C), jnp.float32) * 0.1,
        "w_time": jax.random.normal(k[2], (E, C), jnp.float32) * 0.1,
        "b_time": jax.random.normal(k[3], (1, C), jnp.float32) * 0.1,
        "w_out":  jax.random.normal(k[4], (C, C), jnp.float32) * 0.1,
        "b_out":  jax.random.normal(k[5], (1, C), jnp.float32) * 0.1,
    }

    temb = jax.random.normal(k[6], (B, T, E), jnp.float32)
    idx = jnp.arange(T)
    rd = jnp.broadcast_to(
        (idx[None, :, None] - idx[None, None, :]).astype(jnp.float32), (B, T, T))
    qk = jax.random.normal(k[7], (B, D, H, T, Fd), jnp.float32)
    attn = jax.random.normal(k[8], (B, D, H, T, T), jnp.float32)

    out_qk = rpe_forward(qk, rd, temb, 'qk', params, H)
    out_v = rpe_forward(attn, rd, temb, 'v', params, H)
    jax.block_until_ready((out_qk, out_v))

    ref_qk = rpe_ref(qk, rd, temb, 'qk', params, H)
    ref_v = rpe_ref(attn, rd, temb, 'v', params, H)
    assert out_qk.shape == (B, D, H, T, T)
    assert out_v.shape == (B, D, H, T, Fd)
    assert jnp.allclose(out_qk, ref_qk, atol=1e-4, rtol=1e-4)
    assert jnp.allclose(out_v, ref_v, atol=1e-4, rtol=1e-4)
    print("KERNEL_OK")
</pallas_src>

<mosaic_0001>
module attributes {stable_mosaic.version = 11 : i64} {
  func.func @kernel(%arg0: i32, %arg1: i32, %arg2: memref<1x8x32xf32, #tpu.memory_space<vmem>>, %arg3: memref<1x8x8xf32, #tpu.memory_space<vmem>>, %arg4: memref<32x32xf32, #tpu.memory_space<vmem>>, %arg5: memref<1x32xf32, #tpu.memory_space<vmem>>, %arg6: memref<3x32xf32, #tpu.memory_space<vmem>>, %arg7: memref<1x32xf32, #tpu.memory_space<vmem>>, %arg8: memref<32x32xf32, #tpu.memory_space<vmem>>, %arg9: memref<1x32xf32, #tpu.memory_space<vmem>>, %arg10: memref<1x4x4x64xf32, #tpu.memory_space<vmem>>, %arg11: memref<1x4x4x64xf32, #tpu.memory_space<vmem>>, %arg12: memref<64x32xf32, #tpu.memory_space<vmem>>) attributes {dimension_semantics = [#tpu.dimension_semantics<parallel>, #tpu.dimension_semantics<parallel>], iteration_bounds = array<i64: 2, 1>, scalar_prefetch = 0 : i64, scratch_operands = 1 : i64, tpu.core_type = #tpu.core_type<tc>, window_params = [{transform_indices = @transform_0, window_bounds = array<i64: 1, 8, 32>}, {transform_indices = @transform_1, window_bounds = array<i64: 1, 8, 8>}, {pipeline_mode = #tpu.pipeline_mode<synchronous>, transform_indices = @transform_2, window_bounds = array<i64: 32, 32>}, {pipeline_mode = #tpu.pipeline_mode<synchronous>, transform_indices = @transform_3, window_bounds = array<i64: 1, 32>}, {pipeline_mode = #tpu.pipeline_mode<synchronous>, transform_indices = @transform_4, window_bounds = array<i64: 3, 32>}, {pipeline_mode = #tpu.pipeline_mode<synchronous>, transform_indices = @transform_5, window_bounds = array<i64: 1, 32>}, {pipeline_mode = #tpu.pipeline_mode<synchronous>, transform_indices = @transform_6, window_bounds = array<i64: 32, 32>}, {pipeline_mode = #tpu.pipeline_mode<synchronous>, transform_indices = @transform_7, window_bounds = array<i64: 1, 32>}, {transform_indices = @transform_8, window_bounds = array<i64: 1, 4, 4, 64>}, {transform_indices = @transform_9, window_bounds = array<i64: 1, 4, 4, 64>}]} {
    %c0 = arith.constant 0 : index
    %c0_0 = arith.constant 0 : index
    %c0_1 = arith.constant 0 : index
    %0 = vector.load %arg2[%c0, %c0_0, %c0_1] : memref<1x8x32xf32, #tpu.memory_space<vmem>>, vector<1x8x32xf32>
    %1 = vector.shape_cast %0 : vector<1x8x32xf32> to vector<8x32xf32>
    %c0_2 = arith.constant 0 : index
    %c0_3 = arith.constant 0 : index
    %c0_4 = arith.constant 0 : index
    %2 = vector.load %arg3[%c0_2, %c0_3, %c0_4] : memref<1x8x8xf32, #tpu.memory_space<vmem>>, vector<1x8x8xf32>
    %3 = vector.shape_cast %2 : vector<1x8x8xf32> to vector<8x8xf32>
    %c0_5 = arith.constant 0 : index
    %c0_6 = arith.constant 0 : index
    %4 = vector.load %arg4[%c0_5, %c0_6] : memref<32x32xf32, #tpu.memory_space<vmem>>, vector<32x32xf32>
    %cst = arith.constant dense<0.000000e+00> : vector<8x32xf32>
    %5 = tpu.matmul %1, %4, %cst {dimension_numbers = #tpu.dot_dimension_numbers<[1], [0], [0], [1], [0, 0, 1, 1], [], []>} : vector<8x32xf32>, vector<32x32xf32>, vector<8x32xf32> -> vector<8x32xf32>
    %c0_7 = arith.constant 0 : index
    %c0_8 = arith.constant 0 : index
    %6 = vector.load %arg5[%c0_7, %c0_8] : memref<1x32xf32, #tpu.memory_space<vmem>>, vector<1x32xf32>
    %7 = vector.broadcast %6 : vector<1x32xf32> to vector<8x32xf32>
    %8 = arith.addf %5, %7 : vector<8x32xf32>
    %cst_9 = arith.constant 0.000000e+00 : f32
    %9 = vector.broadcast %cst_9 : f32 to vector<8x8xf32>
    %10 = arith.maximumf %3, %9 : vector<8x8xf32>
    %cst_10 = arith.constant 1.000000e+00 : f32
    %11 = vector.broadcast %cst_10 : f32 to vector<8x8xf32>
    %12 = arith.addf %11, %10 : vector<8x8xf32>
    %13 = math.log %12 : vector<8x8xf32>
    %cst_11 = arith.constant 0.000000e+00 : f32
    %14 = vector.broadcast %cst_11 : f32 to vector<8x8xf32>
    %15 = arith.subf %14, %3 : vector<8x8xf32>
    %cst_12 = arith.constant 0.000000e+00 : f32
    %16 = vector.broadcast %cst_12 : f32 to vector<8x8xf32>
    %17 = arith.maximumf %15, %16 : vector<8x8xf32>
    %cst_13 = arith.constant 1.000000e+00 : f32
    %18 = vector.broadcast %cst_13 : f32 to vector<8x8xf32>
    %19 = arith.addf %18, %17 : vector<8x8xf32>
    %20 = math.log %19 : vector<8x8xf32>
    %cst_14 = arith.constant 0.000000e+00 : f32
    %21 = vector.broadcast %cst_14 : f32 to vector<8x8xf32>
    %22 = arith.cmpf oeq, %3, %21 : vector<8x8xf32>
    %23 = arith.extui %22 : vector<8x8xi1> to vector<8x8xi32>
    %24 = arith.sitofp %23 : vector<8x8xi32> to vector<8x8xf32>
    %25 = vector.shape_cast %13 : vector<8x8xf32> to vector<8x8x1xf32>
    %26 = vector.shape_cast %20 : vector<8x8xf32> to vector<8x8x1xf32>
    %27 = vector.shape_cast %24 : vector<8x8xf32> to vector<8x8x1xf32>
    %28 = tpu.concatenate %25, %26, %27 in 2 : vector<8x8x1xf32>, vector<8x8x1xf32>, vector<8x8x1xf32> -> vector<8x8x3xf32>
    %29 = vector.shape_cast %28 : vector<8x8x3xf32> to vector<64x3xf32>
    %c0_15 = arith.constant 0 : index
    %c0_16 = arith.constant 0 : index
    %30 = vector.load %arg6[%c0_15, %c0_16] : memref<3x32xf32, #tpu.memory_space<vmem>>, vector<3x32xf32>
    %cst_17 = arith.constant dense<0.000000e+00> : vector<64x32xf32>
    %31 = tpu.matmul %29, %30, %cst_17 {dimension_numbers = #tpu.dot_dimension_numbers<[1], [0], [0], [1], [0, 0, 1, 1], [], []>} : vector<64x3xf32>, vector<3x32xf32>, vector<64x32xf32> -> vector<64x32xf32>
    %32 = vector.shape_cast %8 : vector<8x32xf32> to vector<8x1x32xf32>
    %33 = vector.shape_cast %32 : vector<8x1x32xf32> to vector<8x1x32xf32>
    %34 = vector.broadcast %33 : vector<8x1x32xf32> to vector<8x8x32xf32>
    %35 = vector.shape_cast %34 : vector<8x8x32xf32> to vector<64x32xf32>
    %36 = arith.addf %35, %31 : vector<64x32xf32>
    %c0_18 = arith.constant 0 : index
    %c0_19 = arith.constant 0 : index
    %37 = vector.load %arg7[%c0_18, %c0_19] : memref<1x32xf32, #tpu.memory_space<vmem>>, vector<1x32xf32>
    %38 = vector.broadcast %37 : vector<1x32xf32> to vector<64x32xf32>
    %39 = arith.addf %36, %38 : vector<64x32xf32>
    %40 = arith.negf %39 : vector<64x32xf32>
    %41 = math.exp %40 : vector<64x32xf32>
    %cst_20 = arith.constant 1.000000e+00 : f32
    %42 = vector.broadcast %cst_20 : f32 to vector<64x32xf32>
    %43 = arith.addf %42, %41 : vector<64x32xf32>
    %44 = arith.divf %42, %43 : vector<64x32xf32>
    %45 = arith.mulf %39, %44 : vector<64x32xf32>
    %c0_21 = arith.constant 0 : index
    %c0_22 = arith.constant 0 : index
    %46 = vector.load %arg8[%c0_21, %c0_22] : memref<32x32xf32, #tpu.memory_space<vmem>>, vector<32x32xf32>
    %cst_23 = arith.constant dense<0.000000e+00> : vector<64x32xf32>
    %47 = tpu.matmul %45, %46, %cst_23 {dimension_numbers = #tpu.dot_dimension_numbers<[1], [0], [0], [1], [0, 0, 1, 1], [], []>} : vector<64x32xf32>, vector<32x32xf32>, vector<64x32xf32> -> vector<64x32xf32>
    %c0_24 = arith.constant 0 : index
    %c0_25 = arith.constant 0 : index
    %48 = vector.load %arg9[%c0_24, %c0_25] : memref<1x32xf32, #tpu.memory_space<vmem>>, vector<1x32xf32>
    %49 = vector.broadcast %48 : vector<1x32xf32> to vector<64x32xf32>
    %50 = arith.addf %47, %49 : vector<64x32xf32>
    %c0_26 = arith.constant 0 : index
    %c0_27 = arith.constant 0 : index
    %51 = vector.load %arg12[%c0_26, %c0_27] : memref<64x32xf32, #tpu.memory_space<vmem>>, vector<64x32xf32>
    tpu.vector_store %arg12[%c0_26, %c0_27], %50 {strides = array<i32>} : memref<64x32xf32, #tpu.memory_space<vmem>>, vector<64x32xf32>,
    %c0_28 = arith.constant 0 : index
    %c0_29 = arith.constant 0 : index
    %52 = vector.load %arg12[%c0_28, %c0_29] : memref<64x32xf32, #tpu.memory_space<vmem>>, vector<64x8xf32>
    %53 = vector.shape_cast %52 : vector<64x8xf32> to vector<8x8x8xf32>
    %c0_30 = arith.constant 0 : index
    %c0_31 = arith.constant 0 : index
    %c0_32 = arith.constant 0 : index
    %c0_33 = arith.constant 0 : index
    %54 = vector.load %arg10[%c0_30, %c0_31, %c0_32, %c0_33] : memref<1x4x4x64xf32, #tpu.memory_space<vmem>>, vector<1x4x1x64xf32>
    %55 = vector.shape_cast %54 : vector<1x4x1x64xf32> to vector<4x64xf32>
    %56 = vector.shape_cast %55 : vector<4x64xf32> to vector<4x8x8xf32>
    %cst_34 = arith.constant dense<0.000000e+00> : vector<8x4x8xf32>
    %57 = tpu.matmul %56, %53, %cst_34 {dimension_numbers = #tpu.dot_dimension_numbers<[2], [2], [0], [1], [0, 1, 0, 0, 1, 1], [1], [0]>} : vector<4x8x8xf32>, vector<8x8x8xf32>, vector<8x4x8xf32> -> vector<8x4x8xf32>
    %58 = tpu.transpose %57, [1, 0, 2] : vector<8x4x8xf32> -> vector<4x8x8xf32>
    %59 = vector.shape_cast %58 : vector<4x8x8xf32> to vector<4x64xf32>
    %c0_35 = arith.constant 0 : index
    %c0_36 = arith.constant 0 : index
    %c0_37 = arith.constant 0 : index
    %c0_38 = arith.constant 0 : index
    %60 = vector.load %arg11[%c0_35, %c0_36, %c0_37, %c0_38] : memref<1x4x4x64xf32, #tpu.memory_space<vmem>>, vector<1x4x1x64xf32>
    %61 = vector.shape_cast %60 : vector<1x4x1x64xf32> to vector<4x64xf32>
    %62 = vector.shape_cast %59 : vector<4x64xf32> to vector<1x4x1x64xf32>
    tpu.vector_store %arg11[%c0_35, %c0_36, %c0_37, %c0_38], %62 {strides = array<i32>} : memref<1x4x4x64xf32, #tpu.memory_space<vmem>>, vector<1x4x1x64xf32>,
    %c0_39 = arith.constant 0 : index
    %c8 = arith.constant 8 : index
    %63 = vector.load %arg12[%c0_39, %c8] : memref<64x32xf32, #tpu.memory_space<vmem>>, vector<64x8xf32>
    %64 = vector.shape_cast %63 : vector<64x8xf32> to vector<8x8x8xf32>
    %c0_40 = arith.constant 0 : index
    %c0_41 = arith.constant 0 : index
    %c1 = arith.constant 1 : index
    %c0_42 = arith.constant 0 : index
    %65 = vector.load %arg10[%c0_40, %c0_41, %c1, %c0_42] : memref<1x4x4x64xf32, #tpu.memory_space<vmem>>, vector<1x4x1x64xf32>
    %66 = vector.shape_cast %65 : vector<1x4x1x64xf32> to vector<4x64xf32>
    %67 = vector.shape_cast %66 : vector<4x64xf32> to vector<4x8x8xf32>
    %cst_43 = arith.constant dense<0.000000e+00> : vector<8x4x8xf32>
    %68 = tpu.matmul %67, %64, %cst_43 {dimension_numbers = #tpu.dot_dimension_numbers<[2], [2], [0], [1], [0, 1, 0, 0, 1, 1], [1], [0]>} : vector<4x8x8xf32>, vector<8x8x8xf32>, vector<8x4x8xf32> -> vector<8x4x8xf32>
    %69 = tpu.transpose %68, [1, 0, 2] : vector<8x4x8xf32> -> vector<4x8x8xf32>
    %70 = vector.shape_cast %69 : vector<4x8x8xf32> to vector<4x64xf32>
    %c0_44 = arith.constant 0 : index
    %c0_45 = arith.constant 0 : index
    %c1_46 = arith.constant 1 : index
    %c0_47 = arith.constant 0 : index
    %71 = vector.load %arg11[%c0_44, %c0_45, %c1_46, %c0_47] : memref<1x4x4x64xf32, #tpu.memory_space<vmem>>, vector<1x4x1x64xf32>
    %72 = vector.shape_cast %71 : vector<1x4x1x64xf32> to vector<4x64xf32>
    %73 = vector.shape_cast %70 : vector<4x64xf32> to vector<1x4x1x64xf32>
    tpu.vector_store %arg11[%c0_44, %c0_45, %c1_46, %c0_47], %73 {strides = array<i32>} : memref<1x4x4x64xf32, #tpu.memory_space<vmem>>, vector<1x4x1x64xf32>,
    %c0_48 = arith.constant 0 : index
    %c16 = arith.constant 16 : index
    %74 = vector.load %arg12[%c0_48, %c16] : memref<64x32xf32, #tpu.memory_space<vmem>>, vector<64x8xf32>
    %75 = vector.shape_cast %74 : vector<64x8xf32> to vector<8x8x8xf32>
    %c0_49 = arith.constant 0 : index
    %c0_50 = arith.constant 0 : index
    %c2 = arith.constant 2 : index
    %c0_51 = arith.constant 0 : index
    %76 = vector.load %arg10[%c0_49, %c0_50, %c2, %c0_51] : memref<1x4x4x64xf32, #tpu.memory_space<vmem>>, vector<1x4x1x64xf32>
    %77 = vector.shape_cast %76 : vector<1x4x1x64xf32> to vector<4x64xf32>
    %78 = vector.shape_cast %77 : vector<4x64xf32> to vector<4x8x8xf32>
    %cst_52 = arith.constant dense<0.000000e+00> : vector<8x4x8xf32>
    %79 = tpu.matmul %78, %75, %cst_52 {dimension_numbers = #tpu.dot_dimension_numbers<[2], [2], [0], [1], [0, 1, 0, 0, 1, 1], [1], [0]>} : vector<4x8x8xf32>, vector<8x8x8xf32>, vector<8x4x8xf32> -> vector<8x4x8xf32>
    %80 = tpu.transpose %79, [1, 0, 2] : vector<8x4x8xf32> -> vector<4x8x8xf32>
    %81 = vector.shape_cast %80 : vector<4x8x8xf32> to vector<4x64xf32>
    %c0_53 = arith.constant 0 : index
    %c0_54 = arith.constant 0 : index
    %c2_55 = arith.constant 2 : index
    %c0_56 = arith.constant 0 : index
    %82 = vector.load %arg11[%c0_53, %c0_54, %c2_55, %c0_56] : memref<1x4x4x64xf32, #tpu.memory_space<vmem>>, vector<1x4x1x64xf32>
    %83 = vector.shape_cast %82 : vector<1x4x1x64xf32> to vector<4x64xf32>
    %84 = vector.shape_cast %81 : vector<4x64xf32> to vector<1x4x1x64xf32>
    tpu.vector_store %arg11[%c0_53, %c0_54, %c2_55, %c0_56], %84 {strides = array<i32>} : memref<1x4x4x64xf32, #tpu.memory_space<vmem>>, vector<1x4x1x64xf32>,
    %c0_57 = arith.constant 0 : index
    %c24 = arith.constant 24 : index
    %85 = vector.load %arg12[%c0_57, %c24] : memref<64x32xf32, #tpu.memory_space<vmem>>, vector<64x8xf32>
    %86 = vector.shape_cast %85 : vector<64x8xf32> to vector<8x8x8xf32>
    %c0_58 = arith.constant 0 : index
    %c0_59 = arith.constant 0 : index
    %c3 = arith.constant 3 : index
    %c0_60 = arith.constant 0 : index
    %87 = vector.load %arg10[%c0_58, %c0_59, %c3, %c0_60] : memref<1x4x4x64xf32, #tpu.memory_space<vmem>>, vector<1x4x1x64xf32>
    %88 = vector.shape_cast %87 : vector<1x4x1x64xf32> to vector<4x64xf32>
    %89 = vector.shape_cast %88 : vector<4x64xf32> to vector<4x8x8xf32>
    %cst_61 = arith.constant dense<0.000000e+00> : vector<8x4x8xf32>
    %90 = tpu.matmul %89, %86, %cst_61 {dimension_numbers = #tpu.dot_dimension_numbers<[2], [2], [0], [1], [0, 1, 0, 0, 1, 1], [1], [0]>} : vector<4x8x8xf32>, vector<8x8x8xf32>, vector<8x4x8xf32> -> vector<8x4x8xf32>
    %91 = tpu.transpose %90, [1, 0, 2] : vector<8x4x8xf32> -> vector<4x8x8xf32>
    %92 = vector.shape_cast %91 : vector<4x8x8xf32> to vector<4x64xf32>
    %c0_62 = arith.constant 0 : index
    %c0_63 = arith.constant 0 : index
    %c3_64 = arith.constant 3 : index
    %c0_65 = arith.constant 0 : index
    %93 = vector.load %arg11[%c0_62, %c0_63, %c3_64, %c0_65] : memref<1x4x4x64xf32, #tpu.memory_space<vmem>>, vector<1x4x1x64xf32>
    %94 = vector.shape_cast %93 : vector<1x4x1x64xf32> to vector<4x64xf32>
    %95 = vector.shape_cast %92 : vector<4x64xf32> to vector<1x4x1x64xf32>
    tpu.vector_store %arg11[%c0_62, %c0_63, %c3_64, %c0_65], %95 {strides = array<i32>} : memref<1x4x4x64xf32, #tpu.memory_space<vmem>>, vector<1x4x1x64xf32>,
    return
  }
  func.func @transform_0(%arg0: i32, %arg1: i32) -> (i32, i32, i32) {
    %c0_i32 = arith.constant 0 : i32
    %c0_i32_0 = arith.constant 0 : i32
    return %arg0, %arg1, %c0_i32 : i32, i32, i32
  }
  func.func @transform_1(%arg0: i32, %arg1: i32) -> (i32, i32, i32) {
    %c0_i32 = arith.constant 0 : i32
    %c0_i32_0 = arith.constant 0 : i32
    return %arg0, %arg1, %c0_i32 : i32, i32, i32
  }
  func.func @transform_2(%arg0: i32, %arg1: i32) -> (i32, i32) {
    %c0_i32 = arith.constant 0 : i32
    %c0_i32_0 = arith.constant 0 : i32
    %c0_i32_1 = arith.constant 0 : i32
    return %c0_i32, %c0_i32_0 : i32, i32
  }
  func.func @transform_3(%arg0: i32, %arg1: i32) -> (i32, i32) {
    %c0_i32 = arith.constant 0 : i32
    %c0_i32_0 = arith.constant 0 : i32
    %c0_i32_1 = arith.constant 0 : i32
    return %c0_i32, %c0_i32_0 : i32, i32
  }
  func.func @transform_4(%arg0: i32, %arg1: i32) -> (i32, i32) {
    %c0_i32 = arith.constant 0 : i32
    %c0_i32_0 = arith.constant 0 : i32
    %c0_i32_1 = arith.constant 0 : i32
    return %c0_i32, %c0_i32_0 : i32, i32
  }
  func.func @transform_5(%arg0: i32, %arg1: i32) -> (i32, i32) {
    %c0_i32 = arith.constant 0 : i32
    %c0_i32_0 = arith.constant 0 : i32
    %c0_i32_1 = arith.constant 0 : i32
    return %c0_i32, %c0_i32_0 : i32, i32
  }
  func.func @transform_6(%arg0: i32, %arg1: i32) -> (i32, i32) {
    %c0_i32 = arith.constant 0 : i32
    %c0_i32_0 = arith.constant 0 : i32
    %c0_i32_1 = arith.constant 0 : i32
    return %c0_i32, %c0_i32_0 : i32, i32
  }
  func.func @transform_7(%arg0: i32, %arg1: i32) -> (i32, i32) {
    %c0_i32 = arith.constant 0 : i32
    %c0_i32_0 = arith.constant 0 : i32
    %c0_i32_1 = arith.constant 0 : i32
    return %c0_i32, %c0_i32_0 : i32, i32
  }
  func.func @transform_8(%arg0: i32, %arg1: i32) -> (i32, i32, i32, i32) {
    %c0_i32 = arith.constant 0 : i32
    %c0_i32_0 = arith.constant 0 : i32
    %c0_i32_1 = arith.constant 0 : i32
    return %arg0, %c0_i32, %c0_i32_0, %arg1 : i32, i32, i32, i32
  }
  func.func @transform_9(%arg0: i32, %arg1: i32) -> (i32, i32, i32, i32) {
    %c0_i32 = arith.constant 0 : i32
    %c0_i32_0 = arith.constant 0 : i32
    %c0_i32_1 = arith.constant 0 : i32
    return %arg0, %c0_i32, %c0_i32_0, %arg1 : i32, i32, i32, i32
  }
}

</mosaic_0001>

<llo_original>
// kernel: tpu_custom_call.1
$region0: #{tpu_custom_call.1}
  #allocation0 [shape = 'u32[]', space=smem, size = 0x4, offset = 0x4, fixed_abs, tag = 'smem constant byte address 0x4 - core index']
  #allocation1 [shape = 'u32[144,128]{1,0:T(1,128)}', space=vmem, size = 0x12000, scoped, tag = 'internal scratch']
  #allocation2 [shape = 'f32[64,32]{1,0:T(8,128)}', space=vmem, size = 0x8000, scoped, tag = 'scratch operand']
  %s0 = inlined_call_operand.hbm [shape: f32[2,8,32], index: 0, kind: input, shape index: {}]
  %s1 = inlined_call_operand.hbm [shape: f32[2,8,8], index: 1, kind: input, shape index: {}]
  %s2 = inlined_call_operand.hbm [shape: f32[32,32], index: 2, kind: input, shape index: {}]
  %s3 = inlined_call_operand.vmem [shape: f32[1,32], index: 3, kind: input, shape index: {}]
  %s4 = inlined_call_operand.vmem [shape: f32[3,32], index: 4, kind: input, shape index: {}]
  %s5 = inlined_call_operand.vmem [shape: f32[1,32], index: 5, kind: input, shape index: {}]
  %s6 = inlined_call_operand.hbm [shape: f32[32,32], index: 6, kind: input, shape index: {}]
  %s7 = inlined_call_operand.vmem [shape: f32[1,32], index: 7, kind: input, shape index: {}]
  %s8 = inlined_call_operand.hbm [shape: f32[2,4,4,64], index: 8, kind: input, shape index: {}]
  %s9 = inlined_call_operand.hbm [shape: f32[2,4,4,64], index: 9, kind: output, shape index: {}]
  %s10 = sld [smem:[#allocation0]]
  $region89: #{tpu_custom_call.1} parent=0
    _
  %s12 = ssub.s32 1, %s10
  %s13 = scalar_select 0, %s12, %s10
  $region1: #{tpu_custom_call.1} parent=0
    #allocation3 [shape = 'u8[8192]{0}', space=vmem, size = 0x2000, scoped, tag = 'input window, operand 0']
    #allocation4 [shape = 's32[2]{0}', space=sflag, size = 0x8, scoped, tag = 'scoped memory for tpu_custom_call.1']
    #allocation5 [shape = 's32[2]{0}', space=sflag, size = 0x8, scoped, tag = 'scoped memory for tpu_custom_call.1']
    #allocation6 [shape = 'u8[8192]{0}', space=vmem, size = 0x2000, scoped, tag = 'input window, operand 1']
    #allocation7 [shape = 's32[2]{0}', space=sflag, size = 0x8, scoped, tag = 'scoped memory for tpu_custom_call.1']
    #allocation8 [shape = 'u8[16384]{0}', space=vmem, size = 0x4000, scoped, tag = 'input window, operand 2, single buffered']
    #allocation9 [shape = 'u8[16384]{0}', space=vmem, size = 0x4000, scoped, tag = 'input window, operand 6, single buffered']
    #allocation10 [shape = 's32[1]{0}', space=sflag, size = 0x4, scoped, tag = 'scoped memory for tpu_custom_call.1']
    #allocation11 [shape = 'u8[16384]{0}', space=vmem, size = 0x4000, scoped, tag = 'input window, operand 8']
    #allocation12 [shape = 'u8[16384]{0}', space=vmem, size = 0x4000, scoped, tag = 'output window, operand 0']
    %14 = vsyncpa [#allocation4], 0
    %s15 = scalar_lea.sflag [#allocation4], 1
    %16 = vsyncpa %s15, 0
    %17 = vsyncpa [#allocation7], 0
    %s18 = scalar_lea.sflag [#allocation7], 1
    %19 = vsyncpa %s18, 0
    %20 = vsyncpa [#allocation10], 0
    %21 = vsyncpa [#allocation5], 0
    %s22 = scalar_lea.sflag [#allocation5], 1
    %23 = vsyncpa %s22, 0
    loop: start=0, step=1, limit=4
    $region2: #{tpu_custom_call.1} parent=1 // loop_pre_header
      _
    $region3: #{tpu_custom_call.1} parent=1 // loop_header
      %s25 = sphi 0, %s29
      %p26 = scmp.ge.s32.totalorder %s25, 4
      %s32 = sphi 0, %s44
      %s33 = sphi 0, %s40
      %s34 = sphi 0, %s32
      %s35 = sphi 0, %s33
      %s36 = sphi 0, %s34
      %s37 = sphi 0, %s35
      %s49 = sphi 0, %s51
      %s52 = sphi 0, %s49
      %s53 = sphi 0, %s52
      %s69 = sphi 0, %s53
      %s77 = sphi 0, %s79
      %s80 = sphi 0, %s77
      %s81 = sphi 0, %s80
      %s97 = sphi 0, %s81
      %s101 = sphi 0, %s101
      %s103 = sphi 0, %s101
      %s104 = sphi 0, %s103
      %s118 = sphi 0, %s104
      %s122 = sphi 0, %s122
      %s124 = sphi 0, %s122
      %s125 = sphi 0, %s124
      %s139 = sphi 0, %s125
      %s143 = sphi 0, %s143
      %s145 = sphi 0, %s143
      %s146 = sphi 0, %s145
      %s160 = sphi 0, %s146
      %s164 = sphi 0, %s164
      %s166 = sphi 0, %s164
      %s167 = sphi 0, %s166
      %s181 = sphi 0, %s167
      %s185 = sphi 0, %s185
      %s187 = sphi 0, %s185
      %s188 = sphi 0, %s187
      %s202 = sphi 0, %s188
      %s206 = sphi 0, %s206
      %s208 = sphi 0, %s206
      %s209 = sphi 0, %s208
      %s223 = sphi 0, %s209
      %s231 = sphi 0, %s233
      %s234 = sphi 0, %s231
      %s235 = sphi 0, %s234
      %s251 = sphi 0, %s235
      %s259 = sphi 0, %s261
      %s262 = sphi 0, %s259
      %s263 = sphi 0, %s262
      %s279 = sphi 0, %s263
    $region4: #{tpu_custom_call.1} parent=1 // loop_header_branch
      %28 = sbr.rel (%p26) target = $region8
    $region5: #{tpu_custom_call.1} parent=1 // loop_body
      %s30 = ssub.s32 %s25, 1
      %s31 = ssub.s32 %s25, 2
      %s38 = sadd.s32 1, %s33
      %p39 = scmp.ge.s32.totalorder %s38, 1
      %s40 = scalar_select %p39, 0, %s38
      %s41 = sadd.s32 1, %s32
      %s42 = scalar_select %p39, %s41, %s32
      %p43 = scmp.ge.s32.totalorder %s42, 2
      %s44 = scalar_select %p43, 0, %s42
      %s45 = ssub.s32 %s32, %s44
      %s46 = ssub.s32 %s33, %s40
      %s47 = sor.u32 %s45, %s46
      %p48 = scmp.eq.s32.totalorder %s47, 0
      %s50 = sadd.s32 %s49, 1
      %s51 = scalar_select %p48, %s49, %s50
      %p54 = pneg %p48
      %p55 = scmp.eq.s32.totalorder %s25, 1
      %p56 = por %p54, %p55
      %p57 = scmp.ne.s32.totalorder %s49, %s52
      %p58 = scmp.eq.s32.totalorder %s25, 0
      %p59 = por %p57, %p58
      %p60 = scmp.ne.s32.totalorder %s49, %s52
      %p61 = scmp.eq.s32.totalorder %s30, 1
      %p62 = por %p60, %p61
      %p63 = scmp.ne.s32.totalorder %s52, %s53
      %p64 = scmp.eq.s32.totalorder %s30, 0
      %p65 = por %p63, %p64
      %p66 = scmp.ne.s32.totalorder %s52, %s53
      %p67 = scmp.eq.s32.totalorder %s31, 1
      %p68 = por %p66, %p67
      %p70 = scmp.ne.s32.totalorder %s53, %s69
      %p71 = scmp.eq.s32.totalorder %s31, 0
      %p72 = por %p70, %p71
      %s73 = ssub.s32 %s32, %s44
      %s74 = ssub.s32 %s33, %s40
      %s75 = sor.u32 %s73, %s74
      %p76 = scmp.eq.s32.totalorder %s75, 0
      %s78 = sadd.s32 %s77, 1
      %s79 = scalar_select %p76, %s77, %s78
      %p82 = pneg %p76
      %p83 = scmp.eq.s32.totalorder %s25, 1
      %p84 = por %p82, %p83
      %p85 = scmp.ne.s32.totalorder %s77, %s80
      %p86 = scmp.eq.s32.totalorder %s25, 0
      %p87 = por %p85, %p86
      %p88 = scmp.ne.s32.totalorder %s77, %s80
      %p89 = scmp.eq.s32.totalorder %s30, 1
      %p90 = por %p88, %p89
      %p91 = scmp.ne.s32.totalorder %s80, %s81
      %p92 = scmp.eq.s32.totalorder %s30, 0
      %p93 = por %p91, %p92
      %p94 = scmp.ne.s32.totalorder %s80, %s81
      %p95 = scmp.eq.s32.totalorder %s31, 1
      %p96 = por %p94, %p95
      %p98 = scmp.ne.s32.totalorder %s81, %s97
      %p99 = scmp.eq.s32.totalorder %s31, 0
      %p100 = por %p98, %p99
      %s102 = sadd.s32 %s101, 1
      %p105 = scmp.eq.s32.totalorder %s25, 1
      %p106 = scmp.ne.s32.totalorder %s101, %s103
      %p107 = scmp.eq.s32.totalorder %s25, 0
      %p108 = por %p106, %p107
      %p109 = scmp.ne.s32.totalorder %s101, %s103
      %p110 = scmp.eq.s32.totalorder %s30, 1
      %p111 = por %p109, %p110
      %p112 = scmp.ne.s32.totalorder %s103, %s104
      %p113 = scmp.eq.s32.totalorder %s30, 0
      %p114 = por %p112, %p113
      %p115 = scmp.ne.s32.totalorder %s103, %s104
      %p116 = scmp.eq.s32.totalorder %s31, 1
      %p117 = por %p115, %p116
      %p119 = scmp.ne.s32.totalorder %s104, %s118
      %p120 = scmp.eq.s32.totalorder %s31, 0
      %p121 = por %p119, %p120
      %s123 = sadd.s32 %s122, 1
      %p126 = scmp.eq.s32.totalorder %s25, 1
      %p127 = scmp.ne.s32.totalorder %s122, %s124
      %p128 = scmp.eq.s32.totalorder %s25, 0
      %p129 = por %p127, %p128
      %p130 = scmp.ne.s32.totalorder %s122, %s124
      %p131 = scmp.eq.s32.totalorder %s30, 1
      %p132 = por %p130, %p131
      %p133 = scmp.ne.s32.totalorder %s124, %s125
      %p134 = scmp.eq.s32.totalorder %s30, 0
      %p135 = por %p133, %p134
      %p136 = scmp.ne.s32.totalorder %s124, %s125
      %p137 = scmp.eq.s32.totalorder %s31, 1
      %p138 = por %p136, %p137
      %p140 = scmp.ne.s32.totalorder %s125, %s139
      %p141 = scmp.eq.s32.totalorder %s31, 0
      %p142 = por %p140, %p141
      %s144 = sadd.s32 %s143, 1
      %p147 = scmp.eq.s32.totalorder %s25, 1
      %p148 = scmp.ne.s32.totalorder %s143, %s145
      %p149 = scmp.eq.s32.totalorder %s25, 0
      %p150 = por %p148, %p149
      %p151 = scmp.ne.s32.totalorder %s143, %s145
      %p152 = scmp.eq.s32.totalorder %s30, 1
      %p153 = por %p151, %p152
      %p154 = scmp.ne.s32.totalorder %s145, %s146
      %p155 = scmp.eq.s32.totalorder %s30, 0
      %p156 = por %p154, %p155
      %p157 = scmp.ne.s32.totalorder %s145, %s146
      %p158 = scmp.eq.s32.totalorder %s31, 1
      %p159 = por %p157, %p158
      %p161 = scmp.ne.s32.totalorder %s146, %s160
      %p162 = scmp.eq.s32.totalorder %s31, 0
      %p163 = por %p161, %p162
      %s165 = sadd.s32 %s164, 1
      %p168 = scmp.eq.s32.totalorder %s25, 1
      %p169 = scmp.ne.s32.totalorder %s164, %s166
      %p170 = scmp.eq.s32.totalorder %s25, 0
      %p171 = por %p169, %p170
      %p172 = scmp.ne.s32.totalorder %s164, %s166
      %p173 = scmp.eq.s32.totalorder %s30, 1
      %p174 = por %p172, %p173
      %p175 = scmp.ne.s32.totalorder %s166, %s167
      %p176 = scmp.eq.s32.totalorder %s30, 0
      %p177 = por %p175, %p176
      %p178 = scmp.ne.s32.totalorder %s166, %s167
      %p179 = scmp.eq.s32.totalorder %s31, 1
      %p180 = por %p178, %p179
      %p182 = scmp.ne.s32.totalorder %s167, %s181
      %p183 = scmp.eq.s32.totalorder %s31, 0
      %p184 = por %p182, %p183
      %s186 = sadd.s32 %s185, 1
      %p189 = scmp.eq.s32.totalorder %s25, 1
      %p190 = scmp.ne.s32.totalorder %s185, %s187
      %p191 = scmp.eq.s32.totalorder %s25, 0
      %p192 = por %p190, %p191
      %p193 = scmp.ne.s32.totalorder %s185, %s187
      %p194 = scmp.eq.s32.totalorder %s30, 1
      %p195 = por %p193, %p194
      %p196 = scmp.ne.s32.totalorder %s187, %s188
      %p197 = scmp.eq.s32.totalorder %s30, 0
      %p198 = por %p196, %p197
      %p199 = scmp.ne.s32.totalorder %s187, %s188
      %p200 = scmp.eq.s32.totalorder %s31, 1
      %p201 = por %p199, %p200
      %p203 = scmp.ne.s32.totalorder %s188, %s202
      %p204 = scmp.eq.s32.totalorder %s31, 0
      %p205 = por %p203, %p204
      %s207 = sadd.s32 %s206, 1
      %p210 = scmp.eq.s32.totalorder %s25, 1
      %p211 = scmp.ne.s32.totalorder %s206, %s208
      %p212 = scmp.eq.s32.totalorder %s25, 0
      %p213 = por %p211, %p212
      %p214 = scmp.ne.s32.totalorder %s206, %s208
      %p215 = scmp.eq.s32.totalorder %s30, 1
      %p216 = por %p214, %p215
      %p217 = scmp.ne.s32.totalorder %s208, %s209
      %p218 = scmp.eq.s32.totalorder %s30, 0
      %p219 = por %p217, %p218
      %p220 = scmp.ne.s32.totalorder %s208, %s209
      %p221 = scmp.eq.s32.totalorder %s31, 1
      %p222 = por %p220, %p221
      %p224 = scmp.ne.s32.totalorder %s209, %s223
      %p225 = scmp.eq.s32.totalorder %s31, 0
      %p226 = por %p224, %p225
      %s227 = ssub.s32 %s32, %s44
      %s228 = ssub.s32 %s33, %s40
      %s229 = sor.u32 %s227, %s228
      %p230 = scmp.eq.s32.totalorder %s229, 0
      %s232 = sadd.s32 %s231, 1
      %s233 = scalar_select %p230, %s231, %s232
      %p236 = pneg %p230
      %p237 = scmp.eq.s32.totalorder %s25, 1
      %p238 = por %p236, %p237
      %p239 = scmp.ne.s32.totalorder %s231, %s234
      %p240 = scmp.eq.s32.totalorder %s25, 0
      %p241 = por %p239, %p240
      %p242 = scmp.ne.s32.totalorder %s231, %s234
      %p243 = scmp.eq.s32.totalorder %s30, 1
      %p244 = por %p242, %p243
      %p245 = scmp.ne.s32.totalorder %s234, %s235
      %p246 = scmp.eq.s32.totalorder %s30, 0
      %p247 = por %p245, %p246
      %p248 = scmp.ne.s32.totalorder %s234, %s235
      %p249 = scmp.eq.s32.totalorder %s31, 1
      %p250 = por %p248, %p249
      %p252 = scmp.ne.s32.totalorder %s235, %s251
      %p253 = scmp.eq.s32.totalorder %s31, 0
      %p254 = por %p252, %p253
      %s255 = ssub.s32 %s32, %s44
      %s256 = ssub.s32 %s33, %s40
      %s257 = sor.u32 %s255, %s256
      %p258 = scmp.eq.s32.totalorder %s257, 0
      %s260 = sadd.s32 %s259, 1
      %s261 = scalar_select %p258, %s259, %s260
      %p264 = pneg %p258
      %p265 = scmp.eq.s32.totalorder %s25, 1
      %p266 = por %p264, %p265
      %p267 = scmp.ne.s32.totalorder %s259, %s262
      %p268 = scmp.eq.s32.totalorder %s25, 0
      %p269 = por %p267, %p268
      %p270 = scmp.ne.s32.totalorder %s259, %s262
      %p271 = scmp.eq.s32.totalorder %s30, 1
      %p272 = por %p270, %p271
      %p273 = scmp.ne.s32.totalorder %s262, %s263
      %p274 = scmp.eq.s32.totalorder %s30, 0
      %p275 = por %p273, %p274
      %p276 = scmp.ne.s32.totalorder %s262, %s263
      %p277 = scmp.eq.s32.totalorder %s31, 1
      %p278 = por %p276, %p277
      %p280 = scmp.ne.s32.totalorder %s263, %s279
      %p281 = scmp.eq.s32.totalorder %s31, 0
      %p282 = por %p280, %p281
      %p283 = scmp.le.s32.totalorder 1, %s25
      %p284 = scmp.lt.s32.totalorder %s25, 3
      %p285 = pnand %p283, %p284
      %p286 = pneg %p285
      // Predicated region
      $region9: #{tpu_custom_call.1} parent=5 // pred_check
        _
      $region10: #{tpu_custom_call.1} parent=5 // pred_check_branch
        %288 = sbr.rel (%p285) target = $region12
      $region11: #{tpu_custom_call.1} parent=5 // pred_region
        %s289 = ssub.s32 %s25, 1
        // Predicated region
        $region13: #{tpu_custom_call.1} parent=11 // pred_check
          %p290 = pneg %p114
        $region14: #{tpu_custom_call.1} parent=11 // pred_check_branch
          %292 = sbr.rel (%p290) target = $region16
        $region15: #{tpu_custom_call.1} parent=11 // pred_region
          %s294 = ssub.s32 512, 512
          %295 = vsyncadd [#allocation7], %s294
          %s296 = sshll.u32 [#allocation8], 4
          %s297 = int_to_ptr.vmem [resolvable:$true] %s296
          %302 = dma.hbm_to_vmem [thread:$0]  %s2, 512, %s297, [#allocation7], 128, 128, 8
        $region16: #{tpu_custom_call.1} parent=11 // pred_fallthru
          _
        // Predicated region
        $region17: #{tpu_custom_call.1} parent=11 // pred_check
          %p303 = pneg %p135
        $region18: #{tpu_custom_call.1} parent=11 // pred_check_branch
          %305 = sbr.rel (%p303) target = $region20
        $region19: #{tpu_custom_call.1} parent=11 // pred_region
          _
        $region20: #{tpu_custom_call.1} parent=11 // pred_fallthru
          _
        // Predicated region
        $region21: #{tpu_custom_call.1} parent=11 // pred_check
          %p306 = pneg %p156
        $region22: #{tpu_custom_call.1} parent=11 // pred_check_branch
          %308 = sbr.rel (%p306) target = $region24
        $region23: #{tpu_custom_call.1} parent=11 // pred_region
          _
        $region24: #{tpu_custom_call.1} parent=11 // pred_fallthru
          _
        // Predicated region
        $region25: #{tpu_custom_call.1} parent=11 // pred_check
          %p309 = pneg %p177
        $region26: #{tpu_custom_call.1} parent=11 // pred_check_branch
          %311 = sbr.rel (%p309) target = $region28
        $region27: #{tpu_custom_call.1} parent=11 // pred_region
          _
        $region28: #{tpu_custom_call.1} parent=11 // pred_fallthru
          _
        // Predicated region
        $region29: #{tpu_custom_call.1} parent=11 // pred_check
          %p312 = pneg %p198
        $region30: #{tpu_custom_call.1} parent=11 // pred_check_branch
          %314 = sbr.rel (%p312) target = $region32
        $region31: #{tpu_custom_call.1} parent=11 // pred_region
          %s316 = ssub.s32 512, 512
          %317 = vsyncadd [#allocation10], %s316
          %s318 = sshll.u32 [#allocation9], 4
          %s319 = int_to_ptr.vmem [resolvable:$true] %s318
          %324 = dma.hbm_to_vmem [thread:$0]  %s6, 512, %s319, [#allocation10], 128, 128, 8
        $region32: #{tpu_custom_call.1} parent=11 // pred_fallthru
          _
        // Predicated region
        $region33: #{tpu_custom_call.1} parent=11 // pred_check
          %p325 = pneg %p219
        $region34: #{tpu_custom_call.1} parent=11 // pred_check_branch
          %327 = sbr.rel (%p325) target = $region36
        $region35: #{tpu_custom_call.1} parent=11 // pred_region
          _
        $region36: #{tpu_custom_call.1} parent=11 // pred_fallthru
          _
      $region12: #{tpu_custom_call.1} parent=5 // pred_fallthru
        _
      %p328 = scmp.lt.s32.totalorder %s25, 2
      // Predicated region
      $region37: #{tpu_custom_call.1} parent=5 // pred_check
        %p329 = pneg %p328
      $region38: #{tpu_custom_call.1} parent=5 // pred_check_branch
        %331 = sbr.rel (%p329) target = $region40
      $region39: #{tpu_custom_call.1} parent=5 // pred_region
        // Predicated region
        $region41: #{tpu_custom_call.1} parent=39 // pred_check
          %p332 = pneg %p59
        $region42: #{tpu_custom_call.1} parent=39 // pred_check_branch
          %334 = sbr.rel (%p332) target = $region44
        $region43: #{tpu_custom_call.1} parent=39 // pred_region
          %s335 = sand.u32 %s25, 1
          %s336 = scalar_lea.sflag [#allocation4], %s335
          %s337 = sand.u32 %s49, 1
          %s338 = smul.addr %s337, 8
          %s339 = scalar_lea.vmem [#allocation3], %s338
          %s341 = ssub.s32 128, 128
          %342 = vsyncadd %s336, %s341
          %s343 = sadd.s32 %s33, %s32
          %s344 = smul.addr %s343, 128
          %s345 = scalar_lea.hbm %s0, %s344
          %s347 = sshll.u32 %s339, 4
          %s348 = int_to_ptr.vmem [resolvable:$true] %s347
          %350 = dma.hbm_to_vmem [thread:$0]  %s345, 128, %s348, %s336
        $region44: #{tpu_custom_call.1} parent=39 // pred_fallthru
          _
        // Predicated region
        $region45: #{tpu_custom_call.1} parent=39 // pred_check
          %p351 = pneg %p87
        $region46: #{tpu_custom_call.1} parent=39 // pred_check_branch
          %353 = sbr.rel (%p351) target = $region48
        $region47: #{tpu_custom_call.1} parent=39 // pred_region
          %s354 = sand.u32 %s25, 1
          %s355 = scalar_lea.sflag [#allocation7], %s354
          %s356 = sand.u32 %s77, 1
          %s357 = smul.addr %s356, 8
          %s358 = scalar_lea.vmem [#allocation6], %s357
          %s360 = ssub.s32 128, 128
          %361 = vsyncadd %s355, %s360
          %s362 = sadd.s32 %s33, %s32
          %s363 = smul.addr %s362, 128
          %s364 = scalar_lea.hbm %s1, %s363
          %s366 = sshll.u32 %s358, 4
          %s367 = int_to_ptr.vmem [resolvable:$true] %s366
          %369 = dma.hbm_to_vmem [thread:$0]  %s364, 128, %s367, %s355
        $region48: #{tpu_custom_call.1} parent=39 // pred_fallthru
          _
        // Predicated region
        $region49: #{tpu_custom_call.1} parent=39 // pred_check
          %p370 = pneg %p241
        $region50: #{tpu_custom_call.1} parent=39 // pred_check_branch
          %372 = sbr.rel (%p370) target = $region52
        $region51: #{tpu_custom_call.1} parent=39 // pred_region
          %s373 = sand.u32 %s25, 1
          %s374 = scalar_lea.sflag [#allocation4], %s373
          %s375 = sand.u32 %s231, 1
          %s376 = smul.addr %s375, 16
          %s377 = scalar_lea.vmem [#allocation11], %s376
          %s379 = ssub.s32 256, 256
          %380 = vsyncadd %s374, %s379
          %s381 = smul.addr %s32, 4
          %s382 = sadd.s32 %s33, %s381
          %s383 = smul.addr %s382, 64
          %s384 = scalar_lea.hbm %s8, %s383
          %s385 = sshll.u32 %s377, 4
          %s386 = int_to_ptr.vmem [resolvable:$true] %s385
          %391 = dma.hbm_to_vmem [thread:$0]  %s384, 256, %s386, %s374, 64, 64, 4
        $region52: #{tpu_custom_call.1} parent=39 // pred_fallthru
          _
      $region40: #{tpu_custom_call.1} parent=5 // pred_fallthru
        _
      %p392 = scmp.le.s32.totalorder 1, %s25
      %p393 = scmp.lt.s32.totalorder %s25, 3
      %p394 = pnand %p392, %p393
      %p395 = pneg %p394
      // Predicated region
      $region53: #{tpu_custom_call.1} parent=5 // pred_check
        _
      $region54: #{tpu_custom_call.1} parent=5 // pred_check_branch
        %397 = sbr.rel (%p394) target = $region56
      $region55: #{tpu_custom_call.1} parent=5 // pred_region
        %s398 = ssub.s32 %s25, 1
        %s399 = sand.u32 %s30, 1
        %s400 = scalar_lea.sflag [#allocation4], %s399
        %s401 = sand.u32 %s52, 1
        %s402 = smul.addr %s401, 8
        %s403 = scalar_lea.vmem [#allocation3], %s402
        // Predicated region
        $region57: #{tpu_custom_call.1} parent=55 // pred_check
          %p404 = pneg %p65
        $region58: #{tpu_custom_call.1} parent=55 // pred_check_branch
          %406 = sbr.rel (%p404) target = $region60
        $region59: #{tpu_custom_call.1} parent=55 // pred_region
          %407 = dma.done %s400, 128
        $region60: #{tpu_custom_call.1} parent=55 // pred_fallthru
          _
        %s408 = sand.u32 %s30, 1
        %s409 = scalar_lea.sflag [#allocation7], %s408
        %s410 = sand.u32 %s80, 1
        %s411 = smul.addr %s410, 8
        %s412 = scalar_lea.vmem [#allocation6], %s411
        // Predicated region
        $region61: #{tpu_custom_call.1} parent=55 // pred_check
          %p413 = pneg %p93
        $region62: #{tpu_custom_call.1} parent=55 // pred_check_branch
          %415 = sbr.rel (%p413) target = $region64
        $region63: #{tpu_custom_call.1} parent=55 // pred_region
          %416 = dma.done %s409, 128
        $region64: #{tpu_custom_call.1} parent=55 // pred_fallthru
          _
        // Predicated region
        $region65: #{tpu_custom_call.1} parent=55 // pred_check
          %p417 = pneg %p114
        $region66: #{tpu_custom_call.1} parent=55 // pred_check_branch
          %419 = sbr.rel (%p417) target = $region68
        $region67: #{tpu_custom_call.1} parent=55 // pred_region
          %420 = dma.done [#allocation7], 512
        $region68: #{tpu_custom_call.1} parent=55 // pred_fallthru
          _
        // Predicated region
        $region69: #{tpu_custom_call.1} parent=55 // pred_check
          %p421 = pneg %p198
        $region70: #{tpu_custom_call.1} parent=55 // pred_check_branch
          %423 = sbr.rel (%p421) target = $region72
        $region71: #{tpu_custom_call.1} parent=55 // pred_region
          %424 = dma.done [#allocation10], 512
        $region72: #{tpu_custom_call.1} parent=55 // pred_fallthru
          _
        %s425 = sand.u32 %s30, 1
        %s426 = scalar_lea.sflag [#allocation4], %s425
        %s427 = sand.u32 %s234, 1
        %s428 = smul.addr %s427, 16
        %s429 = scalar_lea.vmem [#allocation11], %s428
        // Predicated region
        $region73: #{tpu_custom_call.1} parent=55 // pred_check
          %p430 = pneg %p247
        $region74: #{tpu_custom_call.1} parent=55 // pred_check_branch
          %432 = sbr.rel (%p430) target = $region76
        $region75: #{tpu_custom_call.1} parent=55 // pred_region
          %433 = dma.done %s426, 256
        $region76: #{tpu_custom_call.1} parent=55 // pred_fallthru
          _
        %s434 = sand.u32 %s30, 1
        %s435 = scalar_lea.sflag [#allocation4], %s434
        %s436 = sand.u32 %s52, 1
        %s437 = smul.addr %s436, 8
        %s438 = scalar_lea.vmem [#allocation3], %s437
        %p439 = pneg %p65
        %p440 = pneg %p62
        %s441 = sand.u32 %s30, 1
        %s442 = scalar_lea.sflag [#allocation7], %s441
        %s443 = sand.u32 %s80, 1
        %s444 = smul.addr %s443, 8
        %s445 = scalar_lea.vmem [#allocation6], %s444
        %p446 = pneg %p93
        %p447 = pneg %p90
        %p448 = pneg %p114
        %p449 = pneg %p111
        %p450 = pneg %p135
        %p451 = pneg %p132
        %p452 = pneg %p156
        %p453 = pneg %p153
        %p454 = pneg %p177
        %p455 = pneg %p174
        %p456 = pneg %p198
        %p457 = pneg %p195
        %p458 = pneg %p219
        %p459 = pneg %p216
        %s460 = sand.u32 %s30, 1
        %s461 = scalar_lea.sflag [#allocation4], %s460
        %s462 = sand.u32 %s234, 1
        %s463 = smul.addr %s462, 16
        %s464 = scalar_lea.vmem [#allocation11], %s463
        %p465 = pneg %p247
        %p466 = pneg %p244
        %p467 = pneg %p275
        %p468 = pneg %p272
        %s469 = sand.u32 %s262, 1
        %s470 = scalar_lea.sflag [#allocation5], %s469
        %s471 = sand.u32 %s262, 1
        %s472 = smul.addr %s471, 16
        %s473 = scalar_lea.vmem [#allocation12], %s472
        %v474 = vld [vmem:[%s403] sm:$0xff]
        %v475 = vld [vmem:[%s412] sm:$0xff]
        %v476 = vld [vmem:[#allocation8] sm:$0xff]
        %v477 = vld [vmem:[#allocation8 + $0x8] sm:$0xff]
        %v478 = vld [vmem:[#allocation8 + $0x10] sm:$0xff]
        %v479 = vld [vmem:[#allocation8 + $0x18] sm:$0xff]
        %v480 = vld [vmem:[%s3] sm:$0x1]
        %v482 = vlaneseq
        %v483 = vshrl.u32 %v482, 7
        %v484 = vsub.s32 0, %v483
        %v485 = vrot.slane %v480, %v484
        %vm487 = vcmask 261120
        %v489 = vsel %vm487, %v474, 0
        %491 = vmatprep.subr.mxu0 0.0
        %492 = vmatpush1.msra.mxu0 0.0
        %493 = vmatprep.subr.mxu0 0.0
        %494 = vmatpush1.msra.mxu0 0.0
        %495 = vmatprep.subr.mxu0 0.0
        %496 = vmatpush1.msra.mxu0 0.0
        %497 = vmatprep.subr.mxu0 0.0
        %498 = vmatpush1.msra.mxu0 0.0
        %499 = vmatprep.subr.mxu0 0.0
        %500 = vmatpush1.msra.mxu0 0.0
        %501 = vmatprep.subr.mxu0 0.0
        %502 = vmatpush1.msra.mxu0 0.0
        %503 = vmatprep.subr.mxu0 0.0
        %504 = vmatpush1.msra.mxu0 0.0
        %505 = vmatprep.subr.mxu0 0.0
        %506 = vmatpush1.msra.mxu0 0.0
        %507 = vmatprep.subr.mxu0 0.0
        %508 = vmatpush1.msra.mxu0 0.0
        %509 = vmatprep.subr.mxu0 0.0
        %510 = vmatpush1.msra.mxu0 0.0
        %511 = vmatprep.subr.mxu0 0.0
        %512 = vmatpush1.msra.mxu0 0.0
        %513 = vmatprep.subr.mxu0 0.0
        %514 = vmatpush1.msra.mxu0 0.0
        %515 = vmatprep.subr.mxu0 0.0
        %516 = vmatpush1.msra.mxu0 %v479
        %517 = vmatprep.subr.mxu0 0.0
        %518 = vmatpush1.msra.mxu0 %v478
        %519 = vmatprep.subr.mxu0 0.0
        %520 = vmatpush1.msra.mxu0 %v477
        %521 = vmatprep.subr.mxu0 0.0
        %522 = vmatpush1.msra.mxu0 %v476
        %523 = vmatprep.subr.mxu0 0.0
        %524 = vmatpush2.msra.mxu0 0.0
        %525 = vmatprep.subr.mxu0 0.0
        %526 = vmatpush2.msra.mxu0 0.0
        %527 = vmatprep.subr.mxu0 0.0
        %528 = vmatpush2.msra.mxu0 0.0
        %529 = vmatprep.subr.mxu0 0.0
        %530 = vmatpush2.msra.mxu0 0.0
        %531 = vmatprep.subr.mxu0 0.0
        %532 = vmatpush2.msra.mxu0 0.0
        %533 = vmatprep.subr.mxu0 0.0
        %534 = vmatpush2.msra.mxu0 0.0
        %535 = vmatprep.subr.mxu0 0.0
        %536 = vmatpush2.msra.mxu0 0.0
        %537 = vmatprep.subr.mxu0 0.0
        %538 = vmatpush2.msra.mxu0 0.0
        %539 = vmatprep.subr.mxu0 0.0
        %540 = vmatpush2.msra.mxu0 0.0
        %541 = vmatprep.subr.mxu0 0.0
        %542 = vmatpush2.msra.mxu0 0.0
        %543 = vmatprep.subr.mxu0 0.0
        %544 = vmatpush2.msra.mxu0 0.0
        %545 = vmatprep.subr.mxu0 0.0
        %546 = vmatpush2.msra.mxu0 0.0
        %547 = vmatprep.subr.mxu0 0.0
        %548 = vmatpush2.msra.mxu0 0.0
        %549 = vmatprep.subr.mxu0 0.0
        %550 = vmatpush2.msra.mxu0 0.0
        %551 = vmatprep.subr.mxu0 0.0
        %552 = vmatpush2.msra.mxu0 0.0
        %553 = vmatprep.subr.mxu0 0.0
        %554 = vmatpush2.msra.mxu0 0.0
        %555 = vmatprep.mubr.f32.mxu0 0.0
        %556 = vmatmul.mubr.f32.gmra.mxu0 %v489
        %v557 = vpop.f32.mrf.mxu0
        %v558 = vadd.f32 %v485, %v557
        %v559 = vpop.f32.mrf.mxu0
        %560 = vdwg.mxu0
        %v561 = vmax.f32 %v475, 0.0
        %v562 = vadd.f32 %v561, 1.0
        %v563 = vlog2.pop %v562
        %v564 = vmul.f32 %v563, 0.6931472
        %v565 = vsub.f32 0.0, %v475
        %v566 = vmax.f32 %v565, 0.0
        %v567 = vadd.f32 %v566, 1.0
        %v568 = vlog2.pop %v567
        %v569 = vmul.f32 %v568, 0.6931472
        %vm570 = vcmp.eq.f32.partialorder %v475, 0.0
        %v571 = vsel %vm570, 1, 0
        %v572 = vcvt.s32.f32 %v571
        %v573 = vlaneseq
        %v574 = vshrl.u32 %v573, 7
        %v575 = vsub.s32 0, %v574
        %v576 = vrot.slane %v564, %v575
        %578 = vbcast.lane.b32.xlu0 %v576, 256
        %v579 = vpop.permute.xlu0 %578
        %v580 = vlaneseq
        %v581 = vshrl.u32 %v580, 7
        %v582 = vsub.s32 1, %v581
        %v583 = vrot.slane %v564, %v582
        %585 = vbcast.lane.b32.xlu0 %v583, 256
        %v586 = vpop.permute.xlu0 %585
        %v587 = vlaneseq
        %v588 = vshrl.u32 %v587, 7
        %v589 = vsub.s32 2, %v588
        %v590 = vrot.slane %v564, %v589
        %592 = vbcast.lane.b32.xlu0 %v590, 256
        %v593 = vpop.permute.xlu0 %592
        %v594 = vlaneseq
        %v595 = vshrl.u32 %v594, 7
        %v596 = vsub.s32 3, %v595
        %v597 = vrot.slane %v564, %v596
        %599 = vbcast.lane.b32.xlu0 %v597, 256
        %v600 = vpop.permute.xlu0 %599
        %v601 = vlaneseq
        %v602 = vshrl.u32 %v601, 7
        %v603 = vsub.s32 4, %v602
        %v604 = vrot.slane %v564, %v603
        %606 = vbcast.lane.b32.xlu0 %v604, 256
        %v607 = vpop.permute.xlu0 %606
        %v608 = vlaneseq
        %v609 = vshrl.u32 %v608, 7
        %v610 = vsub.s32 5, %v609
        %v611 = vrot.slane %v564, %v610
        %613 = vbcast.lane.b32.xlu0 %v611, 256
        %v614 = vpop.permute.xlu0 %613
        %v615 = vlaneseq
        %v616 = vshrl.u32 %v615, 7
        %v617 = vsub.s32 6, %v616
        %v618 = vrot.slane %v564, %v617
        %620 = vbcast.lane.b32.xlu0 %v618, 256
        %v621 = vpop.permute.xlu0 %620
        %v622 = vlaneseq
        %v623 = vshrl.u32 %v622, 7
        %v624 = vsub.s32 7, %v623
        %v625 = vrot.slane %v564, %v624
        %627 = vbcast.lane.b32.xlu0 %v625, 256
        %v628 = vpop.permute.xlu0 %627
        %v629 = vlaneseq
        %v630 = vshrl.u32 %v629, 7
        %v631 = vsub.s32 0, %v630
        %v632 = vrot.slane %v569, %v631
        %634 = vbcast.lane.b32.xlu0 %v632, 256
        %v635 = vpop.permute.xlu0 %634
        %v636 = vlaneseq
        %v637 = vshrl.u32 %v636, 7
        %v638 = vsub.s32 1, %v637
        %v639 = vrot.slane %v569, %v638
        %641 = vbcast.lane.b32.xlu0 %v639, 256
        %v642 = vpop.permute.xlu0 %641
        %v643 = vlaneseq
        %v644 = vshrl.u32 %v643, 7
        %v645 = vsub.s32 2, %v644
        %v646 = vrot.slane %v569, %v645
        %648 = vbcast.lane.b32.xlu0 %v646, 256
        %v649 = vpop.permute.xlu0 %648
        %v650 = vlaneseq
        %v651 = vshrl.u32 %v650, 7
        %v652 = vsub.s32 3, %v651
        %v653 = vrot.slane %v569, %v652
        %655 = vbcast.lane.b32.xlu0 %v653, 256
        %v656 = vpop.permute.xlu0 %655
        %v657 = vlaneseq
        %v658 = vshrl.u32 %v657, 7
        %v659 = vsub.s32 4, %v658
        %v660 = vrot.slane %v569, %v659
        %662 = vbcast.lane.b32.xlu0 %v660, 256
        %v663 = vpop.permute.xlu0 %662
        %v664 = vlaneseq
        %v665 = vshrl.u32 %v664, 7
        %v666 = vsub.s32 5, %v665
        %v667 = vrot.slane %v569, %v666
        %669 = vbcast.lane.b32.xlu0 %v667, 256
        %v670 = vpop.permute.xlu0 %669
        %v671 = vlaneseq
        %v672 = vshrl.u32 %v671, 7
        %v673 = vsub.s32 6, %v672
        %v674 = vrot.slane %v569, %v673
        %676 = vbcast.lane.b32.xlu0 %v674, 256
        %v677 = vpop.permute.xlu0 %676
        %v678 = vlaneseq
        %v679 = vshrl.u32 %v678, 7
        %v680 = vsub.s32 7, %v679
        %v681 = vrot.slane %v569, %v680
        %683 = vbcast.lane.b32.xlu0 %v681, 256
        %v684 = vpop.permute.xlu0 %683
        %v685 = vlaneseq
        %v686 = vshrl.u32 %v685, 7
        %v687 = vsub.s32 0, %v686
        %v688 = vrot.slane %v572, %v687
        %690 = vbcast.lane.b32.xlu0 %v688, 256
        %v691 = vpop.permute.xlu0 %690
        %v692 = vlaneseq
        %v693 = vshrl.u32 %v692, 7
        %v694 = vsub.s32 1, %v693
        %v695 = vrot.slane %v572, %v694
        %697 = vbcast.lane.b32.xlu0 %v695, 256
        %v698 = vpop.permute.xlu0 %697
        %v699 = vlaneseq
        %v700 = vshrl.u32 %v699, 7
        %v701 = vsub.s32 2, %v700
        %v702 = vrot.slane %v572, %v701
        %704 = vbcast.lane.b32.xlu0 %v702, 256
        %v705 = vpop.permute.xlu0 %704
        %v706 = vlaneseq
        %v707 = vshrl.u32 %v706, 7
        %v708 = vsub.s32 3, %v707
        %v709 = vrot.slane %v572, %v708
        %711 = vbcast.lane.b32.xlu0 %v709, 256
        %v712 = vpop.permute.xlu0 %711
        %v713 = vlaneseq
        %v714 = vshrl.u32 %v713, 7
        %v715 = vsub.s32 4, %v714
        %v716 = vrot.slane %v572, %v715
        %718 = vbcast.lane.b32.xlu0 %v716, 256
        %v719 = vpop.permute.xlu0 %718
        %v720 = vlaneseq
        %v721 = vshrl.u32 %v720, 7
        %v722 = vsub.s32 5, %v721
        %v723 = vrot.slane %v572, %v722
        %725 = vbcast.lane.b32.xlu0 %v723, 256
        %v726 = vpop.permute.xlu0 %725
        %v727 = vlaneseq
        %v728 = vshrl.u32 %v727, 7
        %v729 = vsub.s32 6, %v728
        %v730 = vrot.slane %v572, %v729
        %732 = vbcast.lane.b32.xlu0 %v730, 256
        %v733 = vpop.permute.xlu0 %732
        %v734 = vlaneseq
        %v735 = vshrl.u32 %v734, 7
        %v736 = vsub.s32 7, %v735
        %v737 = vrot.slane %v572, %v736
        %739 = vbcast.lane.b32.xlu0 %v737, 256
        %v740 = vpop.permute.xlu0 %739
        %vm741 = vcmask 7168
        %v742 = vsel %vm741, %v579, %v635
        %v743 = vsel %vm741, %v586, %v642
        %v744 = vsel %vm741, %v593, %v649
        %v745 = vsel %vm741, %v600, %v656
        %v746 = vsel %vm741, %v607, %v663
        %v747 = vsel %vm741, %v614, %v670
        %v748 = vsel %vm741, %v621, %v677
        %v749 = vsel %vm741, %v628, %v684
        %vm750 = vcmask 15360
        %v751 = vsel %vm750, %v742, %v691
        %v752 = vsel %vm750, %v743, %v698
        %v753 = vsel %vm750, %v744, %v705
        %v754 = vsel %vm750, %v745, %v712
        %v755 = vsel %vm750, %v746, %v719
        %v756 = vsel %vm750, %v747, %v726
        %v757 = vsel %vm750, %v748, %v733
        %v758 = vsel %vm750, %v749, %v740
        %v759 = vld [vmem:[%s4] sm:$0x7]
        %vm760 = vcmask 23552
        %v762 = vsel %vm760, %v751, 0
        %v765 = vsel %vm760, %v752, 0
        %v768 = vsel %vm760, %v753, 0
        %v771 = vsel %vm760, %v754, 0
        %v774 = vsel %vm760, %v755, 0
        %v777 = vsel %vm760, %v756, 0
        %v780 = vsel %vm760, %v757, 0
        %v783 = vsel %vm760, %v758, 0
        %vm785 = vcmask 1042432
        %v787 = vsel %vm785, %v759, 0
        %789 = vmatprep.subr.mxu0 0.0
        %790 = vmatpush1.msra.mxu0 0.0
        %791 = vmatprep.subr.mxu0 0.0
        %792 = vmatpush1.msra.mxu0 0.0
        %793 = vmatprep.subr.mxu0 0.0
        %794 = vmatpush1.msra.mxu0 0.0
        %795 = vmatprep.subr.mxu0 0.0
        %796 = vmatpush1.msra.mxu0 0.0
        %797 = vmatprep.subr.mxu0 0.0
        %798 = vmatpush1.msra.mxu0 0.0
        %799 = vmatprep.subr.mxu0 0.0
        %800 = vmatpush1.msra.mxu0 0.0
        %801 = vmatprep.subr.mxu0 0.0
        %802 = vmatpush1.msra.mxu0 0.0
        %803 = vmatprep.subr.mxu0 0.0
        %804 = vmatpush1.msra.mxu0 0.0
        %805 = vmatprep.subr.mxu0 0.0
        %806 = vmatpush1.msra.mxu0 0.0
        %807 = vmatprep.subr.mxu0 0.0
        %808 = vmatpush1.msra.mxu0 0.0
        %809 = vmatprep.subr.mxu0 0.0
        %810 = vmatpush1.msra.mxu0 0.0
        %811 = vmatprep.subr.mxu0 0.0
        %812 = vmatpush1.msra.mxu0 0.0
        %813 = vmatprep.subr.mxu0 0.0
        %814 = vmatpush1.msra.mxu0 0.0
        %815 = vmatprep.subr.mxu0 0.0
        %816 = vmatpush1.msra.mxu0 0.0
        %817 = vmatprep.subr.mxu0 0.0
        %818 = vmatpush1.msra.mxu0 0.0
        %819 = vmatprep.subr.mxu0 0.0
        %820 = vmatpush1.msra.mxu0 %v787
        %821 = vmatprep.subr.mxu0 0.0
        %822 = vmatpush2.msra.mxu0 0.0
        %823 = vmatprep.subr.mxu0 0.0
        %824 = vmatpush2.msra.mxu0 0.0
        %825 = vmatprep.subr.mxu0 0.0
        %826 = vmatpush2.msra.mxu0 0.0
        %827 = vmatprep.subr.mxu0 0.0
        %828 = vmatpush2.msra.mxu0 0.0
        %829 = vmatprep.subr.mxu0 0.0
        %830 = vmatpush2.msra.mxu0 0.0
        %831 = vmatprep.subr.mxu0 0.0
        %832 = vmatpush2.msra.mxu0 0.0
        %833 = vmatprep.subr.mxu0 0.0
        %834 = vmatpush2.msra.mxu0 0.0
        %835 = vmatprep.subr.mxu0 0.0
        %836 = vmatpush2.msra.mxu0 0.0
        %837 = vmatprep.subr.mxu0 0.0
        %838 = vmatpush2.msra.mxu0 0.0
        %839 = vmatprep.subr.mxu0 0.0
        %840 = vmatpush2.msra.mxu0 0.0
        %841 = vmatprep.subr.mxu0 0.0
        %842 = vmatpush2.msra.mxu0 0.0
        %843 = vmatprep.subr.mxu0 0.0
        %844 = vmatpush2.msra.mxu0 0.0
        %845 = vmatprep.subr.mxu0 0.0
        %846 = vmatpush2.msra.mxu0 0.0
        %847 = vmatprep.subr.mxu0 0.0
        %848 = vmatpush2.msra.mxu0 0.0
        %849 = vmatprep.subr.mxu0 0.0
        %850 = vmatpush2.msra.mxu0 0.0
        %851 = vmatprep.subr.mxu0 0.0
        %852 = vmatpush2.msra.mxu0 0.0
        %853 = vmatprep.mubr.f32.mxu0 0.0
        %854 = vmatmul.mubr.f32.gmra.mxu0 %v762
        %v855 = vpop.f32.mrf.mxu0
        %v856 = vadd.f32 0.0, %v855
        %v857 = vpop.f32.mrf.mxu0
        %858 = vmatprep.mubr.f32.mxu0 0.0
        %859 = vmatmul.mubr.f32.gmra.mxu0 %v765
        %v860 = vpop.f32.mrf.mxu0
        %v861 = vadd.f32 0.0, %v860
        %v862 = vpop.f32.mrf.mxu0
        %863 = vmatprep.mubr.f32.mxu0 0.0
        %864 = vmatmul.mubr.f32.gmra.mxu0 %v768
        %v865 = vpop.f32.mrf.mxu0
        %v866 = vadd.f32 0.0, %v865
        %v867 = vpop.f32.mrf.mxu0
        %868 = vmatprep.mubr.f32.mxu0 0.0
        %869 = vmatmul.mubr.f32.gmra.mxu0 %v771
        %v870 = vpop.f32.mrf.mxu0
        %v871 = vadd.f32 0.0, %v870
        %v872 = vpop.f32.mrf.mxu0
        %873 = vmatprep.mubr.f32.mxu0 0.0
        %874 = vmatmul.mubr.f32.gmra.mxu0 %v774
        %v875 = vpop.f32.mrf.mxu0
        %v876 = vadd.f32 0.0, %v875
        %v877 = vpop.f32.mrf.mxu0
        %878 = vmatprep.mubr.f32.mxu0 0.0
        %879 = vmatmul.mubr.f32.gmra.mxu0 %v777
        %v880 = vpop.f32.mrf.mxu0
        %v881 = vadd.f32 0.0, %v880
        %v882 = vpop.f32.mrf.mxu0
        %883 = vmatprep.mubr.f32.mxu0 0.0
        %884 = vmatmul.mubr.f32.gmra.mxu0 %v780
        %v885 = vpop.f32.mrf.mxu0
        %v886 = vadd.f32 0.0, %v885
        %v887 = vpop.f32.mrf.mxu0
        %888 = vmatprep.mubr.f32.mxu0 0.0
        %889 = vmatmul.mubr.f32.gmra.mxu0 %v783
        %v890 = vpop.f32.mrf.mxu0
        %v891 = vadd.f32 0.0, %v890
        %v892 = vpop.f32.mrf.mxu0
        %893 = vdwg.mxu0
        %v895 = vcombine.high %v558, %v558
        %v897 = vunpack.c.l.s4 1966171168
        %v898 = vunpack.c.0.s8 %v897
        %v899 = vlaneseq
        %v900 = vshrl.u32 %v899, 7
        %v901 = vsub.s32 %v898, %v900
        %v902 = vrot.slane %v558, %v901
        %v904 = vunpack.c.l.s4 1966171168
        %v905 = vunpack.c.0.s8 %v904
        %v906 = vlaneseq
        %v907 = vshrl.u32 %v906, 7
        %v908 = vsub.s32 %v905, %v907
        %v909 = vrot.slane %v895, %v908
        %v910 = vcombine.high %v902, %v902
        %v911 = vcombine.high %v909, %v909
        %v913 = vunpack.c.l.s4 1966171168
        %v914 = vunpack.c.0.s8 %v913
        %v915 = vlaneseq
        %v916 = vshrl.u32 %v915, 7
        %v917 = vsub.s32 %v914, %v916
        %v918 = vrot.slane %v902, %v917
        %v920 = vunpack.c.l.s4 1966171168
        %v921 = vunpack.c.0.s8 %v920
        %v922 = vlaneseq
        %v923 = vshrl.u32 %v922, 7
        %v924 = vsub.s32 %v921, %v923
        %v925 = vrot.slane %v909, %v924
        %v927 = vunpack.c.l.s4 1966171168
        %v928 = vunpack.c.0.s8 %v927
        %v929 = vlaneseq
        %v930 = vshrl.u32 %v929, 7
        %v931 = vsub.s32 %v928, %v930
        %v932 = vrot.slane %v910, %v931
        %v934 = vunpack.c.l.s4 1966171168
        %v935 = vunpack.c.0.s8 %v934
        %v936 = vlaneseq
        %v937 = vshrl.u32 %v936, 7
        %v938 = vsub.s32 %v935, %v937
        %v939 = vrot.slane %v911, %v938
        %v940 = vcombine.high %v918, %v918
        %v941 = vcombine.high %v925, %v925
        %v942 = vcombine.high %v932, %v932
        %v943 = vcombine.high %v939, %v939
        %v944 = vlaneseq
        %v945 = vshrl.u32 %v944, 7
        %v946 = vsub.s32 0, %v945
        %v947 = vrot.slane %v918, %v946
        %v948 = vlaneseq
        %v949 = vshrl.u32 %v948, 7
        %v950 = vsub.s32 0, %v949
        %v951 = vrot.slane %v932, %v950
        %v952 = vlaneseq
        %v953 = vshrl.u32 %v952, 7
        %v954 = vsub.s32 0, %v953
        %v955 = vrot.slane %v940, %v954
        %v956 = vlaneseq
        %v957 = vshrl.u32 %v956, 7
        %v958 = vsub.s32 0, %v957
        %v959 = vrot.slane %v942, %v958
        %v960 = vlaneseq
        %v961 = vshrl.u32 %v960, 7
        %v962 = vsub.s32 0, %v961
        %v963 = vrot.slane %v925, %v962
        %v964 = vlaneseq
        %v965 = vshrl.u32 %v964, 7
        %v966 = vsub.s32 0, %v965
        %v967 = vrot.slane %v939, %v966
        %v968 = vlaneseq
        %v969 = vshrl.u32 %v968, 7
        %v970 = vsub.s32 0, %v969
        %v971 = vrot.slane %v941, %v970
        %v972 = vlaneseq
        %v973 = vshrl.u32 %v972, 7
        %v974 = vsub.s32 0, %v973
        %v975 = vrot.slane %v943, %v974
        %v984 = vadd.f32 %v947, %v856
        %v985 = vadd.f32 %v951, %v861
        %v986 = vadd.f32 %v955, %v866
        %v987 = vadd.f32 %v959, %v871
        %v988 = vadd.f32 %v963, %v876
        %v989 = vadd.f32 %v967, %v881
        %v990 = vadd.f32 %v971, %v886
        %v991 = vadd.f32 %v975, %v891
        %v992 = vld [vmem:[%s5] sm:$0x1]
        %v994 = vlaneseq
        %v995 = vshrl.u32 %v994, 7
        %v996 = vsub.s32 0, %v995
        %v997 = vrot.slane %v992, %v996
        %v999 = vadd.f32 %v984, %v997
        %v1000 = vadd.f32 %v985, %v997
        %v1001 = vadd.f32 %v986, %v997
        %v1002 = vadd.f32 %v987, %v997
        %v1003 = vadd.f32 %v988, %v997
        %v1004 = vadd.f32 %v989, %v997
        %v1005 = vadd.f32 %v990, %v997
        %v1006 = vadd.f32 %v991, %v997
        %v1007 = vxor.u32 %v999, 2147483648
        %v1008 = vxor.u32 %v1000, 2147483648
        %v1009 = vxor.u32 %v1001, 2147483648
        %v1010 = vxor.u32 %v1002, 2147483648
        %v1011 = vxor.u32 %v1003, 2147483648
        %v1012 = vxor.u32 %v1004, 2147483648
        %v1013 = vxor.u32 %v1005, 2147483648
        %v1014 = vxor.u32 %v1006, 2147483648
        %v1015 = vmul.f32 %v1007, 1.442695
        %v1016 = vpow.pop %v1015
        %v1017 = vmul.f32 %v1008, 1.442695
        %v1018 = vpow.pop %v1017
        %v1019 = vmul.f32 %v1009, 1.442695
        %v1020 = vpow.pop %v1019
        %v1021 = vmul.f32 %v1010, 1.442695
        %v1022 = vpow.pop %v1021
        %v1023 = vmul.f32 %v1011, 1.442695
        %v1024 = vpow.pop %v1023
        %v1025 = vmul.f32 %v1012, 1.442695
        %v1026 = vpow.pop %v1025
        %v1027 = vmul.f32 %v1013, 1.442695
        %v1028 = vpow.pop %v1027
        %v1029 = vmul.f32 %v1014, 1.442695
        %v1030 = vpow.pop %v1029
        %v1031 = vadd.f32 %v1016, 1.0
        %v1032 = vadd.f32 %v1018, 1.0
        %v1033 = vadd.f32 %v1020, 1.0
        %v1034 = vadd.f32 %v1022, 1.0
        %v1035 = vadd.f32 %v1024, 1.0
        %v1036 = vadd.f32 %v1026, 1.0
        %v1037 = vadd.f32 %v1028, 1.0
        %v1038 = vadd.f32 %v1030, 1.0
        %v1039 = vrcp.pop %v1031
        %v1040 = vmul.f32 1.0, %v1039
        %v1041 = vrcp.pop %v1032
        %v1042 = vmul.f32 1.0, %v1041
        %v1043 = vrcp.pop %v1033
        %v1044 = vmul.f32 1.0, %v1043
        %v1045 = vrcp.pop %v1034
        %v1046 = vmul.f32 1.0, %v1045
        %v1047 = vrcp.pop %v1035
        %v1048 = vmul.f32 1.0, %v1047
        %v1049 = vrcp.pop %v1036
        %v1050 = vmul.f32 1.0, %v1049
        %v1051 = vrcp.pop %v1037
        %v1052 = vmul.f32 1.0, %v1051
        %v1053 = vrcp.pop %v1038
        %v1054 = vmul.f32 1.0, %v1053
        %v1055 = vmul.f32 %v999, %v1040
        %v1056 = vmul.f32 %v1000, %v1042
        %v1057 = vmul.f32 %v1001, %v1044
        %v1058 = vmul.f32 %v1002, %v1046
        %v1059 = vmul.f32 %v1003, %v1048
        %v1060 = vmul.f32 %v1004, %v1050
        %v1061 = vmul.f32 %v1005, %v1052
        %v1062 = vmul.f32 %v1006, %v1054
        %v1063 = vld [vmem:[#allocation9] sm:$0xff]
        %v1064 = vld [vmem:[#allocation9 + $0x8] sm:$0xff]
        %v1065 = vld [vmem:[#allocation9 + $0x10] sm:$0xff]
        %v1066 = vld [vmem:[#allocation9 + $0x18] sm:$0xff]
        %v1067 = vld [vmem:[%s7] sm:$0x1]
        %v1069 = vlaneseq
        %v1070 = vshrl.u32 %v1069, 7
        %v1071 = vsub.s32 0, %v1070
        %v1072 = vrot.slane %v1067, %v1071
        %v1075 = vsel %vm487, %v1055, 0
        %v1078 = vsel %vm487, %v1056, 0
        %v1081 = vsel %vm487, %v1057, 0
        %v1084 = vsel %vm487, %v1058, 0
        %v1087 = vsel %vm487, %v1059, 0
        %v1090 = vsel %vm487, %v1060, 0
        %v1093 = vsel %vm487, %v1061, 0
        %v1096 = vsel %vm487, %v1062, 0
        %1098 = vmatprep.subr.mxu0 0.0
        %1099 = vmatpush1.msra.mxu0 0.0
        %1100 = vmatprep.subr.mxu0 0.0
        %1101 = vmatpush1.msra.mxu0 0.0
        %1102 = vmatprep.subr.mxu0 0.0
        %1103 = vmatpush1.msra.mxu0 0.0
        %1104 = vmatprep.subr.mxu0 0.0
        %1105 = vmatpush1.msra.mxu0 0.0
        %1106 = vmatprep.subr.mxu0 0.0
        %1107 = vmatpush1.msra.mxu0 0.0
        %1108 = vmatprep.subr.mxu0 0.0
        %1109 = vmatpush1.msra.mxu0 0.0
        %1110 = vmatprep.subr.mxu0 0.0
        %1111 = vmatpush1.msra.mxu0 0.0
        %1112 = vmatprep.subr.mxu0 0.0
        %1113 = vmatpush1.msra.mxu0 0.0
        %1114 = vmatprep.subr.mxu0 0.0
        %1115 = vmatpush1.msra.mxu0 0.0
        %1116 = vmatprep.subr.mxu0 0.0
        %1117 = vmatpush1.msra.mxu0 0.0
        %1118 = vmatprep.subr.mxu0 0.0
        %1119 = vmatpush1.msra.mxu0 0.0
        %1120 = vmatprep.subr.mxu0 0.0
        %1121 = vmatpush1.msra.mxu0 0.0
        %1122 = vmatprep.subr.mxu0 0.0
        %1123 = vmatpush1.msra.mxu0 %v1066
        %1124 = vmatprep.subr.mxu0 0.0
        %1125 = vmatpush1.msra.mxu0 %v1065
        %1126 = vmatprep.subr.mxu0 0.0
        %1127 = vmatpush1.msra.mxu0 %v1064
        %1128 = vmatprep.subr.mxu0 0.0
        %1129 = vmatpush1.msra.mxu0 %v1063
        %1130 = vmatprep.subr.mxu0 0.0
        %1131 = vmatpush2.msra.mxu0 0.0
        %1132 = vmatprep.subr.mxu0 0.0
        %1133 = vmatpush2.msra.mxu0 0.0
        %1134 = vmatprep.subr.mxu0 0.0
        %1135 = vmatpush2.msra.mxu0 0.0
        %1136 = vmatprep.subr.mxu0 0.0
        %1137 = vmatpush2.msra.mxu0 0.0
        %1138 = vmatprep.subr.mxu0 0.0
        %1139 = vmatpush2.msra.mxu0 0.0
        %1140 = vmatprep.subr.mxu0 0.0
        %1141 = vmatpush2.msra.mxu0 0.0
        %1142 = vmatprep.subr.mxu0 0.0
        %1143 = vmatpush2.msra.mxu0 0.0
        %1144 = vmatprep.subr.mxu0 0.0
        %1145 = vmatpush2.msra.mxu0 0.0
        %1146 = vmatprep.subr.mxu0 0.0
        %1147 = vmatpush2.msra.mxu0 0.0
        %1148 = vmatprep.subr.mxu0 0.0
        %1149 = vmatpush2.msra.mxu0 0.0
        %1150 = vmatprep.subr.mxu0 0.0
        %1151 = vmatpush2.msra.mxu0 0.0
        %1152 = vmatprep.subr.mxu0 0.0
        %1153 = vmatpush2.msra.mxu0 0.0
        %1154 = vmatprep.subr.mxu0 0.0
        %1155 = vmatpush2.msra.mxu0 0.0
        %1156 = vmatprep.subr.mxu0 0.0
        %1157 = vmatpush2.msra.mxu0 0.0
        %1158 = vmatprep.subr.mxu0 0.0
        %1159 = vmatpush2.msra.mxu0 0.0
        %1160 = vmatprep.subr.mxu0 0.0
        %1161 = vmatpush2.msra.mxu0 0.0
        %1162 = vmatprep.mubr.f32.mxu0 0.0
        %1163 = vmatmul.mubr.f32.gmra.mxu0 %v1075
        %v1164 = vpop.f32.mrf.mxu0
        %v1165 = vadd.f32 %v1072, %v1164
        %v1166 = vpop.f32.mrf.mxu0
        %1167 = vmatprep.mubr.f32.mxu0 0.0
        %1168 = vmatmul.mubr.f32.gmra.mxu0 %v1078
        %v1169 = vpop.f32.mrf.mxu0
        %v1170 = vadd.f32 %v1072, %v1169
        %v1171 = vpop.f32.mrf.mxu0
        %1172 = vmatprep.mubr.f32.mxu0 0.0
        %1173 = vmatmul.mubr.f32.gmra.mxu0 %v1081
        %v1174 = vpop.f32.mrf.mxu0
        %v1175 = vadd.f32 %v1072, %v1174
        %v1176 = vpop.f32.mrf.mxu0
        %1177 = vmatprep.mubr.f32.mxu0 0.0
        %1178 = vmatmul.mubr.f32.gmra.mxu0 %v1084
        %v1179 = vpop.f32.mrf.mxu0
        %v1180 = vadd.f32 %v1072, %v1179
        %v1181 = vpop.f32.mrf.mxu0
        %1182 = vmatprep.mubr.f32.mxu0 0.0
        %1183 = vmatmul.mubr.f32.gmra.mxu0 %v1087
        %v1184 = vpop.f32.mrf.mxu0
        %v1185 = vadd.f32 %v1072, %v1184
        %v1186 = vpop.f32.mrf.mxu0
        %1187 = vmatprep.mubr.f32.mxu0 0.0
        %1188 = vmatmul.mubr.f32.gmra.mxu0 %v1090
        %v1189 = vpop.f32.mrf.mxu0
        %v1190 = vadd.f32 %v1072, %v1189
        %v1191 = vpop.f32.mrf.mxu0
        %1192 = vmatprep.mubr.f32.mxu0 0.0
        %1193 = vmatmul.mubr.f32.gmra.mxu0 %v1093
        %v1194 = vpop.f32.mrf.mxu0
        %v1195 = vadd.f32 %v1072, %v1194
        %v1196 = vpop.f32.mrf.mxu0
        %1197 = vmatprep.mubr.f32.mxu0 0.0
        %1198 = vmatmul.mubr.f32.gmra.mxu0 %v1096
        %v1199 = vpop.f32.mrf.mxu0
        %v1200 = vadd.f32 %v1072, %v1199
        %v1201 = vpop.f32.mrf.mxu0
        %1202 = vdwg.mxu0
        %1203 = vst.msk [vmem:[#allocation2] sm:$0xff] %vm487, %v1165
        %1204 = vst.msk [vmem:[#allocation2 + $0x8] sm:$0xff] %vm487, %v1170
        %1205 = vst.msk [vmem:[#allocation2 + $0x10] sm:$0xff] %vm487, %v1175
        %1206 = vst.msk [vmem:[#allocation2 + $0x18] sm:$0xff] %vm487, %v1180
        %1207 = vst.msk [vmem:[#allocation2 + $0x20] sm:$0xff] %vm487, %v1185
        %1208 = vst.msk [vmem:[#allocation2 + $0x28] sm:$0xff] %vm487, %v1190
        %1209 = vst.msk [vmem:[#allocation2 + $0x30] sm:$0xff] %vm487, %v1195
        %1210 = vst.msk [vmem:[#allocation2 + $0x38] sm:$0xff] %vm487, %v1200
        %v1211 = vld [vmem:[#allocation2] sm:$0xff]
        %v1212 = vld [vmem:[#allocation2 + $0x8] sm:$0xff]
        %v1213 = vld [vmem:[#allocation2 + $0x10] sm:$0xff]
        %v1214 = vld [vmem:[#allocation2 + $0x18] sm:$0xff]
        %v1215 = vld [vmem:[#allocation2 + $0x20] sm:$0xff]
        %v1216 = vld [vmem:[#allocation2 + $0x28] sm:$0xff]
        %v1217 = vld [vmem:[#allocation2 + $0x30] sm:$0xff]
        %v1218 = vld [vmem:[#allocation2 + $0x38] sm:$0xff]
        %v1219 = vld [vmem:[%s429] sm:$0x1]
        %v1220 = vld [vmem:[%s429 + $0x4] sm:$0x1]
        %v1221 = vld [vmem:[%s429 + $0x8] sm:$0x1]
        %v1222 = vld [vmem:[%s429 + $0xc] sm:$0x1]
        %1227 = vrot.lane.b32.xlu0 %v1219, 120
        %v1228 = vpop.permute.xlu0 %1227
        %1229 = vrot.lane.b32.xlu0 %v1220, 120
        %v1230 = vpop.permute.xlu0 %1229
        %1231 = vrot.lane.b32.xlu0 %v1221, 120
        %v1232 = vpop.permute.xlu0 %1231
        %1233 = vrot.lane.b32.xlu0 %v1222, 120
        %v1234 = vpop.permute.xlu0 %1233
        %1239 = vrot.lane.b32.xlu0 %v1219, 112
        %v1240 = vpop.permute.xlu0 %1239
        %1241 = vrot.lane.b32.xlu0 %v1220, 112
        %v1242 = vpop.permute.xlu0 %1241
        %1243 = vrot.lane.b32.xlu0 %v1221, 112
        %v1244 = vpop.permute.xlu0 %1243
        %1245 = vrot.lane.b32.xlu0 %v1222, 112
        %v1246 = vpop.permute.xlu0 %1245
        %1251 = vrot.lane.b32.xlu0 %v1219, 104
        %v1252 = vpop.permute.xlu0 %1251
        %1253 = vrot.lane.b32.xlu0 %v1220, 104
        %v1254 = vpop.permute.xlu0 %1253
        %1255 = vrot.lane.b32.xlu0 %v1221, 104
        %v1256 = vpop.permute.xlu0 %1255
        %1257 = vrot.lane.b32.xlu0 %v1222, 104
        %v1258 = vpop.permute.xlu0 %1257
        %1263 = vrot.lane.b32.xlu0 %v1219, 96
        %v1264 = vpop.permute.xlu0 %1263
        %1265 = vrot.lane.b32.xlu0 %v1220, 96
        %v1266 = vpop.permute.xlu0 %1265
        %1267 = vrot.lane.b32.xlu0 %v1221, 96
        %v1268 = vpop.permute.xlu0 %1267
        %1269 = vrot.lane.b32.xlu0 %v1222, 96
        %v1270 = vpop.permute.xlu0 %1269
        %1275 = vrot.lane.b32.xlu0 %v1219, 88
        %v1276 = vpop.permute.xlu0 %1275
        %1277 = vrot.lane.b32.xlu0 %v1220, 88
        %v1278 = vpop.permute.xlu0 %1277
        %1279 = vrot.lane.b32.xlu0 %v1221, 88
        %v1280 = vpop.permute.xlu0 %1279
        %1281 = vrot.lane.b32.xlu0 %v1222, 88
        %v1282 = vpop.permute.xlu0 %1281
        %1287 = vrot.lane.b32.xlu0 %v1219, 80
        %v1288 = vpop.permute.xlu0 %1287
        %1289 = vrot.lane.b32.xlu0 %v1220, 80
        %v1290 = vpop.permute.xlu0 %1289
        %1291 = vrot.lane.b32.xlu0 %v1221, 80
        %v1292 = vpop.permute.xlu0 %1291
        %1293 = vrot.lane.b32.xlu0 %v1222, 80
        %v1294 = vpop.permute.xlu0 %1293
        %1299 = vrot.lane.b32.xlu0 %v1219, 72
        %v1300 = vpop.permute.xlu0 %1299
        %1301 = vrot.lane.b32.xlu0 %v1220, 72
        %v1302 = vpop.permute.xlu0 %1301
        %1303 = vrot.lane.b32.xlu0 %v1221, 72
        %v1304 = vpop.permute.xlu0 %1303
        %1305 = vrot.lane.b32.xlu0 %v1222, 72
        %v1306 = vpop.permute.xlu0 %1305
        %v1311 = vcombine.low %v1219, %v1240
        %v1313 = vunpack.c.l.s4 1983009808
        %v1314 = vunpack.c.0.s8 %v1313
        %v1315 = vlaneseq
        %v1316 = vshrl.u32 %v1315, 7
        %v1317 = vsub.s32 %v1314, %v1316
        %v1318 = vrot.slane %v1311, %v1317
        %v1319 = vcombine.low %v1228, %v1252
        %v1321 = vunpack.c.l.s4 1983009808
        %v1322 = vunpack.c.0.s8 %v1321
        %v1323 = vlaneseq
        %v1324 = vshrl.u32 %v1323, 7
        %v1325 = vsub.s32 %v1322, %v1324
        %v1326 = vrot.slane %v1319, %v1325
        %v1327 = vcombine.low %v1264, %v1288
        %v1329 = vunpack.c.l.s4 1983009808
        %v1330 = vunpack.c.0.s8 %v1329
        %v1331 = vlaneseq
        %v1332 = vshrl.u32 %v1331, 7
        %v1333 = vsub.s32 %v1330, %v1332
        %v1334 = vrot.slane %v1327, %v1333
        %v1335 = vcombine.low %v1276, %v1300
        %v1337 = vunpack.c.l.s4 1983009808
        %v1338 = vunpack.c.0.s8 %v1337
        %v1339 = vlaneseq
        %v1340 = vshrl.u32 %v1339, 7
        %v1341 = vsub.s32 %v1338, %v1340
        %v1342 = vrot.slane %v1335, %v1341
        %v1343 = vcombine.low %v1318, %v1326
        %v1345 = vunpack.c.l.s4 1934713408
        %v1346 = vunpack.c.0.s8 %v1345
        %v1347 = vlaneseq
        %v1348 = vshrl.u32 %v1347, 7
        %v1349 = vsub.s32 %v1346, %v1348
        %v1350 = vrot.slane %v1343, %v1349
        %v1351 = vcombine.low %v1334, %v1342
        %v1353 = vunpack.c.l.s4 1934713408
        %v1354 = vunpack.c.0.s8 %v1353
        %v1355 = vlaneseq
        %v1356 = vshrl.u32 %v1355, 7
        %v1357 = vsub.s32 %v1354, %v1356
        %v1358 = vrot.slane %v1351, %v1357
        %v1359 = vcombine.low %v1350, %v1358
        %v1360 = vcombine.low %v1220, %v1242
        %v1362 = vunpack.c.l.s4 1983009808
        %v1363 = vunpack.c.0.s8 %v1362
        %v1364 = vlaneseq
        %v1365 = vshrl.u32 %v1364, 7
        %v1366 = vsub.s32 %v1363, %v1365
        %v1367 = vrot.slane %v1360, %v1366
        %v1368 = vcombine.low %v1230, %v1254
        %v1370 = vunpack.c.l.s4 1983009808
        %v1371 = vunpack.c.0.s8 %v1370
        %v1372 = vlaneseq
        %v1373 = vshrl.u32 %v1372, 7
        %v1374 = vsub.s32 %v1371, %v1373
        %v1375 = vrot.slane %v1368, %v1374
        %v1376 = vcombine.low %v1266, %v1290
        %v1378 = vunpack.c.l.s4 1983009808
        %v1379 = vunpack.c.0.s8 %v1378
        %v1380 = vlaneseq
        %v1381 = vshrl.u32 %v1380, 7
        %v1382 = vsub.s32 %v1379, %v1381
        %v1383 = vrot.slane %v1376, %v1382
        %v1384 = vcombine.low %v1278, %v1302
        %v1386 = vunpack.c.l.s4 1983009808
        %v1387 = vunpack.c.0.s8 %v1386
        %v1388 = vlaneseq
        %v1389 = vshrl.u32 %v1388, 7
        %v1390 = vsub.s32 %v1387, %v1389
        %v1391 = vrot.slane %v1384, %v1390
        %v1392 = vcombine.low %v1367, %v1375
        %v1394 = vunpack.c.l.s4 1934713408
        %v1395 = vunpack.c.0.s8 %v1394
        %v1396 = vlaneseq
        %v1397 = vshrl.u32 %v1396, 7
        %v1398 = vsub.s32 %v1395, %v1397
        %v1399 = vrot.slane %v1392, %v1398
        %v1400 = vcombine.low %v1383, %v1391
        %v1402 = vunpack.c.l.s4 1934713408
        %v1403 = vunpack.c.0.s8 %v1402
        %v1404 = vlaneseq
        %v1405 = vshrl.u32 %v1404, 7
        %v1406 = vsub.s32 %v1403, %v1405
        %v1407 = vrot.slane %v1400, %v1406
        %v1408 = vcombine.low %v1399, %v1407
        %v1409 = vcombine.low %v1221, %v1244
        %v1411 = vunpack.c.l.s4 1983009808
        %v1412 = vunpack.c.0.s8 %v1411
        %v1413 = vlaneseq
        %v1414 = vshrl.u32 %v1413, 7
        %v1415 = vsub.s32 %v1412, %v1414
        %v1416 = vrot.slane %v1409, %v1415
        %v1417 = vcombine.low %v1232, %v1256
        %v1419 = vunpack.c.l.s4 1983009808
        %v1420 = vunpack.c.0.s8 %v1419
        %v1421 = vlaneseq
        %v1422 = vshrl.u32 %v1421, 7
        %v1423 = vsub.s32 %v1420, %v1422
        %v1424 = vrot.slane %v1417, %v1423
        %v1425 = vcombine.low %v1268, %v1292
        %v1427 = vunpack.c.l.s4 1983009808
        %v1428 = vunpack.c.0.s8 %v1427
        %v1429 = vlaneseq
        %v1430 = vshrl.u32 %v1429, 7
        %v1431 = vsub.s32 %v1428, %v1430
        %v1432 = vrot.slane %v1425, %v1431
        %v1433 = vcombine.low %v1280, %v1304
        %v1435 = vunpack.c.l.s4 1983009808
        %v1436 = vunpack.c.0.s8 %v1435
        %v1437 = vlaneseq
        %v1438 = vshrl.u32 %v1437, 7
        %v1439 = vsub.s32 %v1436, %v1438
        %v1440 = vrot.slane %v1433, %v1439
        %v1441 = vcombine.low %v1416, %v1424
        %v1443 = vunpack.c.l.s4 1934713408
        %v1444 = vunpack.c.0.s8 %v1443
        %v1445 = vlaneseq
        %v1446 = vshrl.u32 %v1445, 7
        %v1447 = vsub.s32 %v1444, %v1446
        %v1448 = vrot.slane %v1441, %v1447
        %v1449 = vcombine.low %v1432, %v1440
        %v1451 = vunpack.c.l.s4 1934713408
        %v1452 = vunpack.c.0.s8 %v1451
        %v1453 = vlaneseq
        %v1454 = vshrl.u32 %v1453, 7
        %v1455 = vsub.s32 %v1452, %v1454
        %v1456 = vrot.slane %v1449, %v1455
        %v1457 = vcombine.low %v1448, %v1456
        %v1458 = vcombine.low %v1222, %v1246
        %v1460 = vunpack.c.l.s4 1983009808
        %v1461 = vunpack.c.0.s8 %v1460
        %v1462 = vlaneseq
        %v1463 = vshrl.u32 %v1462, 7
        %v1464 = vsub.s32 %v1461, %v1463
        %v1465 = vrot.slane %v1458, %v1464
        %v1466 = vcombine.low %v1234, %v1258
        %v1468 = vunpack.c.l.s4 1983009808
        %v1469 = vunpack.c.0.s8 %v1468
        %v1470 = vlaneseq
        %v1471 = vshrl.u32 %v1470, 7
        %v1472 = vsub.s32 %v1469, %v1471
        %v1473 = vrot.slane %v1466, %v1472
        %v1474 = vcombine.low %v1270, %v1294
        %v1476 = vunpack.c.l.s4 1983009808
        %v1477 = vunpack.c.0.s8 %v1476
        %v1478 = vlaneseq
        %v1479 = vshrl.u32 %v1478, 7
        %v1480 = vsub.s32 %v1477, %v1479
        %v1481 = vrot.slane %v1474, %v1480
        %v1482 = vcombine.low %v1282, %v1306
        %v1484 = vunpack.c.l.s4 1983009808
        %v1485 = vunpack.c.0.s8 %v1484
        %v1486 = vlaneseq
        %v1487 = vshrl.u32 %v1486, 7
        %v1488 = vsub.s32 %v1485, %v1487
        %v1489 = vrot.slane %v1482, %v1488
        %v1490 = vcombine.low %v1465, %v1473
        %v1492 = vunpack.c.l.s4 1934713408
        %v1493 = vunpack.c.0.s8 %v1492
        %v1494 = vlaneseq
        %v1495 = vshrl.u32 %v1494, 7
        %v1496 = vsub.s32 %v1493, %v1495
        %v1497 = vrot.slane %v1490, %v1496
        %v1498 = vcombine.low %v1481, %v1489
        %v1500 = vunpack.c.l.s4 1934713408
        %v1501 = vunpack.c.0.s8 %v1500
        %v1502 = vlaneseq
        %v1503 = vshrl.u32 %v1502, 7
        %v1504 = vsub.s32 %v1501, %v1503
        %v1505 = vrot.slane %v1498, %v1504
        %v1506 = vcombine.low %v1497, %v1505
        %v1507 = vcombine.low %v1359, %v1457
        %v1508 = vcombine.high %v1359, %v1457
        %v1510 = vunpack.c.l.s4 1983009808
        %v1511 = vunpack.c.0.s8 %v1510
        %v1512 = vlaneseq
        %v1513 = vshrl.u32 %v1512, 7
        %v1514 = vsub.s32 %v1511, %v1513
        %v1515 = vrot.slane %v1507, %v1514
        %v1517 = vunpack.c.l.s4 1983009808
        %v1518 = vunpack.c.0.s8 %v1517
        %v1519 = vlaneseq
        %v1520 = vshrl.u32 %v1519, 7
        %v1521 = vsub.s32 %v1518, %v1520
        %v1522 = vrot.slane %v1508, %v1521
        %v1523 = vcombine.low %v1408, %v1506
        %v1524 = vcombine.high %v1408, %v1506
        %v1526 = vunpack.c.l.s4 1983009808
        %v1527 = vunpack.c.0.s8 %v1526
        %v1528 = vlaneseq
        %v1529 = vshrl.u32 %v1528, 7
        %v1530 = vsub.s32 %v1527, %v1529
        %v1531 = vrot.slane %v1523, %v1530
        %v1533 = vunpack.c.l.s4 1983009808
        %v1534 = vunpack.c.0.s8 %v1533
        %v1535 = vlaneseq
        %v1536 = vshrl.u32 %v1535, 7
        %v1537 = vsub.s32 %v1534, %v1536
        %v1538 = vrot.slane %v1524, %v1537
        %v1539 = vcombine.low %v1515, %v1531
        %v1540 = vcombine.high %v1515, %v1531
        %v1542 = vunpack.c.l.s4 1934713408
        %v1543 = vunpack.c.0.s8 %v1542
        %v1544 = vlaneseq
        %v1545 = vshrl.u32 %v1544, 7
        %v1546 = vsub.s32 %v1543, %v1545
        %v1547 = vrot.slane %v1539, %v1546
        %v1549 = vunpack.c.l.s4 1934713408
        %v1550 = vunpack.c.0.s8 %v1549
        %v1551 = vlaneseq
        %v1552 = vshrl.u32 %v1551, 7
        %v1553 = vsub.s32 %v1550, %v1552
        %v1554 = vrot.slane %v1540, %v1553
        %v1555 = vcombine.low %v1522, %v1538
        %v1556 = vcombine.high %v1522, %v1538
        %v1558 = vunpack.c.l.s4 1934713408
        %v1559 = vunpack.c.0.s8 %v1558
        %v1560 = vlaneseq
        %v1561 = vshrl.u32 %v1560, 7
        %v1562 = vsub.s32 %v1559, %v1561
        %v1563 = vrot.slane %v1555, %v1562
        %v1565 = vunpack.c.l.s4 1934713408
        %v1566 = vunpack.c.0.s8 %v1565
        %v1567 = vlaneseq
        %v1568 = vshrl.u32 %v1567, 7
        %v1569 = vsub.s32 %v1566, %v1568
        %v1570 = vrot.slane %v1556, %v1569
        %v1571 = vcombine.high %v1547, 0.0
        %v1572 = vcombine.high %v1554, 0.0
        %v1573 = vcombine.high %v1563, 0.0
        %v1574 = vcombine.high %v1570, 0.0
        %vm1575 = vcmask 64512
        %v1577 = vsel %vm1575, %v1547, 0
        %v1580 = vsel %vm1575, %v1211, 0
        %1582 = vmatprep.subr.mxu0 0.0
        %1583 = vmatpush1.xpose.msra.mxu0 0.0
        %1584 = vmatprep.subr.mxu0 0.0
        %1585 = vmatpush1.xpose.msra.mxu0 0.0
        %1586 = vmatprep.subr.mxu0 0.0
        %1587 = vmatpush1.xpose.msra.mxu0 0.0
        %1588 = vmatprep.subr.mxu0 0.0
        %1589 = vmatpush1.xpose.msra.mxu0 0.0
        %1590 = vmatprep.subr.mxu0 0.0
        %1591 = vmatpush1.xpose.msra.mxu0 0.0
        %1592 = vmatprep.subr.mxu0 0.0
        %1593 = vmatpush1.xpose.msra.mxu0 0.0
        %1594 = vmatprep.subr.mxu0 0.0
        %1595 = vmatpush1.xpose.msra.mxu0 0.0
        %1596 = vmatprep.subr.mxu0 0.0
        %1597 = vmatpush1.xpose.msra.mxu0 0.0
        %1598 = vmatprep.subr.mxu0 0.0
        %1599 = vmatpush1.xpose.msra.mxu0 0.0
        %1600 = vmatprep.subr.mxu0 0.0
        %1601 = vmatpush1.xpose.msra.mxu0 0.0
        %1602 = vmatprep.subr.mxu0 0.0
        %1603 = vmatpush1.xpose.msra.mxu0 0.0
        %1604 = vmatprep.subr.mxu0 0.0
        %1605 = vmatpush1.xpose.msra.mxu0 0.0
        %1606 = vmatprep.subr.mxu0 0.0
        %1607 = vmatpush1.xpose.msra.mxu0 0.0
        %1608 = vmatprep.subr.mxu0 0.0
        %1609 = vmatpush1.xpose.msra.mxu0 0.0
        %1610 = vmatprep.subr.mxu0 0.0
        %1611 = vmatpush1.xpose.msra.mxu0 0.0
        %1612 = vmatprep.subr.mxu0 0.0
        %1613 = vmatpush1.xpose.msra.mxu0 %v1580
        %1614 = vmatprep.subr.mxu0 0.0
        %1615 = vmatpush2.xpose.msra.mxu0 0.0
        %1616 = vmatprep.subr.mxu0 0.0
        %1617 = vmatpush2.xpose.msra.mxu0 0.0
        %1618 = vmatprep.subr.mxu0 0.0
        %1619 = vmatpush2.xpose.msra.mxu0 0.0
        %1620 = vmatprep.subr.mxu0 0.0
        %1621 = vmatpush2.xpose.msra.mxu0 0.0
        %1622 = vmatprep.subr.mxu0 0.0
        %1623 = vmatpush2.xpose.msra.mxu0 0.0
        %1624 = vmatprep.subr.mxu0 0.0
        %1625 = vmatpush2.xpose.msra.mxu0 0.0
        %1626 = vmatprep.subr.mxu0 0.0
        %1627 = vmatpush2.xpose.msra.mxu0 0.0
        %1628 = vmatprep.subr.mxu0 0.0
        %1629 = vmatpush2.xpose.msra.mxu0 0.0
        %1630 = vmatprep.subr.mxu0 0.0
        %1631 = vmatpush2.xpose.msra.mxu0 0.0
        %1632 = vmatprep.subr.mxu0 0.0
        %1633 = vmatpush2.xpose.msra.mxu0 0.0
        %1634 = vmatprep.subr.mxu0 0.0
        %1635 = vmatpush2.xpose.msra.mxu0 0.0
        %1636 = vmatprep.subr.mxu0 0.0
        %1637 = vmatpush2.xpose.msra.mxu0 0.0
        %1638 = vmatprep.subr.mxu0 0.0
        %1639 = vmatpush2.xpose.msra.mxu0 0.0
        %1640 = vmatprep.subr.mxu0 0.0
        %1641 = vmatpush2.xpose.msra.mxu0 0.0
        %1642 = vmatprep.subr.mxu0 0.0
        %1643 = vmatpush2.xpose.msra.mxu0 0.0
        %1644 = vmatprep.subr.mxu0 0.0
        %1645 = vmatpush2.xpose.msra.mxu0 0.0
        %1646 = vmatprep.mubr.f32.mxu0 0.0
        %1647 = vmatmul.mubr.f32.gmra.mxu0 %v1577
        %v1648 = vpop.f32.mrf.mxu0
        %v1649 = vadd.f32 0.0, %v1648
        %v1650 = vpop.f32.mrf.mxu0
        %1651 = vdwg.mxu0
        %v1653 = vsel %vm1575, %v1571, 0
        %v1656 = vsel %vm1575, %v1212, 0
        %1658 = vmatprep.subr.mxu0 0.0
        %1659 = vmatpush1.xpose.msra.mxu0 0.0
        %1660 = vmatprep.subr.mxu0 0.0
        %1661 = vmatpush1.xpose.msra.mxu0 0.0
        %1662 = vmatprep.subr.mxu0 0.0
        %1663 = vmatpush1.xpose.msra.mxu0 0.0
        %1664 = vmatprep.subr.mxu0 0.0
        %1665 = vmatpush1.xpose.msra.mxu0 0.0
        %1666 = vmatprep.subr.mxu0 0.0
        %1667 = vmatpush1.xpose.msra.mxu0 0.0
        %1668 = vmatprep.subr.mxu0 0.0
        %1669 = vmatpush1.xpose.msra.mxu0 0.0
        %1670 = vmatprep.subr.mxu0 0.0
        %1671 = vmatpush1.xpose.msra.mxu0 0.0
        %1672 = vmatprep.subr.mxu0 0.0
        %1673 = vmatpush1.xpose.msra.mxu0 0.0
        %1674 = vmatprep.subr.mxu0 0.0
        %1675 = vmatpush1.xpose.msra.mxu0 0.0
        %1676 = vmatprep.subr.mxu0 0.0
        %1677 = vmatpush1.xpose.msra.mxu0 0.0
        %1678 = vmatprep.subr.mxu0 0.0
        %1679 = vmatpush1.xpose.msra.mxu0 0.0
        %1680 = vmatprep.subr.mxu0 0.0
        %1681 = vmatpush1.xpose.msra.mxu0 0.0
        %1682 = vmatprep.subr.mxu0 0.0
        %1683 = vmatpush1.xpose.msra.mxu0 0.0
        %1684 = vmatprep.subr.mxu0 0.0
        %1685 = vmatpush1.xpose.msra.mxu0 0.0
        %1686 = vmatprep.subr.mxu0 0.0
        %1687 = vmatpush1.xpose.msra.mxu0 0.0
        %1688 = vmatprep.subr.mxu0 0.0
        %1689 = vmatpush1.xpose.msra.mxu0 %v1656
        %1690 = vmatprep.subr.mxu0 0.0
        %1691 = vmatpush2.xpose.msra.mxu0 0.0
        %1692 = vmatprep.subr.mxu0 0.0
        %1693 = vmatpush2.xpose.msra.mxu0 0.0
        %1694 = vmatprep.subr.mxu0 0.0
        %1695 = vmatpush2.xpose.msra.mxu0 0.0
        %1696 = vmatprep.subr.mxu0 0.0
        %1697 = vmatpush2.xpose.msra.mxu0 0.0
        %1698 = vmatprep.subr.mxu0 0.0
        %1699 = vmatpush2.xpose.msra.mxu0 0.0
        %1700 = vmatprep.subr.mxu0 0.0
        %1701 = vmatpush2.xpose.msra.mxu0 0.0
        %1702 = vmatprep.subr.mxu0 0.0
        %1703 = vmatpush2.xpose.msra.mxu0 0.0
        %1704 = vmatprep.subr.mxu0 0.0
        %1705 = vmatpush2.xpose.msra.mxu0 0.0
        %1706 = vmatprep.subr.mxu0 0.0
        %1707 = vmatpush2.xpose.msra.mxu0 0.0
        %1708 = vmatprep.subr.mxu0 0.0
        %1709 = vmatpush2.xpose.msra.mxu0 0.0
        %1710 = vmatprep.subr.mxu0 0.0
        %1711 = vmatpush2.xpose.msra.mxu0 0.0
        %1712 = vmatprep.subr.mxu0 0.0
        %1713 = vmatpush2.xpose.msra.mxu0 0.0
        %1714 = vmatprep.subr.mxu0 0.0
        %1715 = vmatpush2.xpose.msra.mxu0 0.0
        %1716 = vmatprep.subr.mxu0 0.0
        %1717 = vmatpush2.xpose.msra.mxu0 0.0
        %1718 = vmatprep.subr.mxu0 0.0
        %1719 = vmatpush2.xpose.msra.mxu0 0.0
        %1720 = vmatprep.subr.mxu0 0.0
        %1721 = vmatpush2.xpose.msra.mxu0 0.0
        %1722 = vmatprep.mubr.f32.mxu0 0.0
        %1723 = vmatmul.mubr.f32.gmra.mxu0 %v1653
        %v1724 = vpop.f32.mrf.mxu0
        %v1725 = vadd.f32 0.0, %v1724
        %v1726 = vpop.f32.mrf.mxu0
        %1727 = vdwg.mxu0
        %v1729 = vsel %vm1575, %v1554, 0
        %v1732 = vsel %vm1575, %v1213, 0
        %1734 = vmatprep.subr.mxu0 0.0
        %1735 = vmatpush1.xpose.msra.mxu0 0.0
        %1736 = vmatprep.subr.mxu0 0.0
        %1737 = vmatpush1.xpose.msra.mxu0 0.0
        %1738 = vmatprep.subr.mxu0 0.0
        %1739 = vmatpush1.xpose.msra.mxu0 0.0
        %1740 = vmatprep.subr.mxu0 0.0
        %1741 = vmatpush1.xpose.msra.mxu0 0.0
        %1742 = vmatprep.subr.mxu0 0.0
        %1743 = vmatpush1.xpose.msra.mxu0 0.0
        %1744 = vmatprep.subr.mxu0 0.0
        %1745 = vmatpush1.xpose.msra.mxu0 0.0
        %1746 = vmatprep.subr.mxu0 0.0
        %1747 = vmatpush1.xpose.msra.mxu0 0.0
        %1748 = vmatprep.subr.mxu0 0.0
        %1749 = vmatpush1.xpose.msra.mxu0 0.0
        %1750 = vmatprep.subr.mxu0 0.0
        %1751 = vmatpush1.xpose.msra.mxu0 0.0
        %1752 = vmatprep.subr.mxu0 0.0
        %1753 = vmatpush1.xpose.msra.mxu0 0.0
        %1754 = vmatprep.subr.mxu0 0.0
        %1755 = vmatpush1.xpose.msra.mxu0 0.0
        %1756 = vmatprep.subr.mxu0 0.0
        %1757 = vmatpush1.xpose.msra.mxu0 0.0
        %1758 = vmatprep.subr.mxu0 0.0
        %1759 = vmatpush1.xpose.msra.mxu0 0.0
        %1760 = vmatprep.subr.mxu0 0.0
        %1761 = vmatpush1.xpose.msra.mxu0 0.0
        %1762 = vmatprep.subr.mxu0 0.0
        %1763 = vmatpush1.xpose.msra.mxu0 0.0
        %1764 = vmatprep.subr.mxu0 0.0
        %1765 = vmatpush1.xpose.msra.mxu0 %v1732
        %1766 = vmatprep.subr.mxu0 0.0
        %1767 = vmatpush2.xpose.msra.mxu0 0.0
        %1768 = vmatprep.subr.mxu0 0.0
        %1769 = vmatpush2.xpose.msra.mxu0 0.0
        %1770 = vmatprep.subr.mxu0 0.0
        %1771 = vmatpush2.xpose.msra.mxu0 0.0
        %1772 = vmatprep.subr.mxu0 0.0
        %1773 = vmatpush2.xpose.msra.mxu0 0.0
        %1774 = vmatprep.subr.mxu0 0.0
        %1775 = vmatpush2.xpose.msra.mxu0 0.0
        %1776 = vmatprep.subr.mxu0 0.0
        %1777 = vmatpush2.xpose.msra.mxu0 0.0
        %1778 = vmatprep.subr.mxu0 0.0
        %1779 = vmatpush2.xpose.msra.mxu0 0.0
        %1780 = vmatprep.subr.mxu0 0.0
        %1781 = vmatpush2.xpose.msra.mxu0 0.0
        %1782 = vmatprep.subr.mxu0 0.0
        %1783 = vmatpush2.xpose.msra.mxu0 0.0
        %1784 = vmatprep.subr.mxu0 0.0
        %1785 = vmatpush2.xpose.msra.mxu0 0.0
        %1786 = vmatprep.subr.mxu0 0.0
        %1787 = vmatpush2.xpose.msra.mxu0 0.0
        %1788 = vmatprep.subr.mxu0 0.0
        %1789 = vmatpush2.xpose.msra.mxu0 0.0
        %1790 = vmatprep.subr.mxu0 0.0
        %1791 = vmatpush2.xpose.msra.mxu0 0.0
        %1792 = vmatprep.subr.mxu0 0.0
        %1793 = vmatpush2.xpose.msra.mxu0 0.0
        %1794 = vmatprep.subr.mxu0 0.0
        %1795 = vmatpush2.xpose.msra.mxu0 0.0
        %1796 = vmatprep.subr.mxu0 0.0
        %1797 = vmatpush2.xpose.msra.mxu0 0.0
        %1798 = vmatprep.mubr.f32.mxu0 0.0
        %1799 = vmatmul.mubr.f32.gmra.mxu0 %v1729
        %v1800 = vpop.f32.mrf.mxu0
        %v1801 = vadd.f32 0.0, %v1800
        %v1802 = vpop.f32.mrf.mxu0
        %1803 = vdwg.mxu0
        %v1805 = vsel %vm1575, %v1572, 0
        %v1808 = vsel %vm1575, %v1214, 0
        %1810 = vmatprep.subr.mxu0 0.0
        %1811 = vmatpush1.xpose.msra.mxu0 0.0
        %1812 = vmatprep.subr.mxu0 0.0
        %1813 = vmatpush1.xpose.msra.mxu0 0.0
        %1814 = vmatprep.subr.mxu0 0.0
        %1815 = vmatpush1.xpose.msra.mxu0 0.0
        %1816 = vmatprep.subr.mxu0 0.0
        %1817 = vmatpush1.xpose.msra.mxu0 0.0
        %1818 = vmatprep.subr.mxu0 0.0
        %1819 = vmatpush1.xpose.msra.mxu0 0.0
        %1820 = vmatprep.subr.mxu0 0.0
        %1821 = vmatpush1.xpose.msra.mxu0 0.0
        %1822 = vmatprep.subr.mxu0 0.0
        %1823 = vmatpush1.xpose.msra.mxu0 0.0
        %1824 = vmatprep.subr.mxu0 0.0
        %1825 = vmatpush1.xpose.msra.mxu0 0.0
        %1826 = vmatprep.subr.mxu0 0.0
        %1827 = vmatpush1.xpose.msra.mxu0 0.0
        %1828 = vmatprep.subr.mxu0 0.0
        %1829 = vmatpush1.xpose.msra.mxu0 0.0
        %1830 = vmatprep.subr.mxu0 0.0
        %1831 = vmatpush1.xpose.msra.mxu0 0.0
        %1832 = vmatprep.subr.mxu0 0.0
        %1833 = vmatpush1.xpose.msra.mxu0 0.0
        %1834 = vmatprep.subr.mxu0 0.0
        %1835 = vmatpush1.xpose.msra.mxu0 0.0
        %1836 = vmatprep.subr.mxu0 0.0
        %1837 = vmatpush1.xpose.msra.mxu0 0.0
        %1838 = vmatprep.subr.mxu0 0.0
        %1839 = vmatpush1.xpose.msra.mxu0 0.0
        %1840 = vmatprep.subr.mxu0 0.0
        %1841 = vmatpush1.xpose.msra.mxu0 %v1808
        %1842 = vmatprep.subr.mxu0 0.0
        %1843 = vmatpush2.xpose.msra.mxu0 0.0
        %1844 = vmatprep.subr.mxu0 0.0
        %1845 = vmatpush2.xpose.msra.mxu0 0.0
        %1846 = vmatprep.subr.mxu0 0.0
        %1847 = vmatpush2.xpose.msra.mxu0 0.0
        %1848 = vmatprep.subr.mxu0 0.0
        %1849 = vmatpush2.xpose.msra.mxu0 0.0
        %1850 = vmatprep.subr.mxu0 0.0
        %1851 = vmatpush2.xpose.msra.mxu0 0.0
        %1852 = vmatprep.subr.mxu0 0.0
        %1853 = vmatpush2.xpose.msra.mxu0 0.0
        %1854 = vmatprep.subr.mxu0 0.0
        %1855 = vmatpush2.xpose.msra.mxu0 0.0
        %1856 = vmatprep.subr.mxu0 0.0
        %1857 = vmatpush2.xpose.msra.mxu0 0.0
        %1858 = vmatprep.subr.mxu0 0.0
        %1859 = vmatpush2.xpose.msra.mxu0 0.0
        %1860 = vmatprep.subr.mxu0 0.0
        %1861 = vmatpush2.xpose.msra.mxu0 0.0
        %1862 = vmatprep.subr.mxu0 0.0
        %1863 = vmatpush2.xpose.msra.mxu0 0.0
        %1864 = vmatprep.subr.mxu0 0.0
        %1865 = vmatpush2.xpose.msra.mxu0 0.0
        %1866 = vmatprep.subr.mxu0 0.0
        %1867 = vmatpush2.xpose.msra.mxu0 0.0
        %1868 = vmatprep.subr.mxu0 0.0
        %1869 = vmatpush2.xpose.msra.mxu0 0.0
        %1870 = vmatprep.subr.mxu0 0.0
        %1871 = vmatpush2.xpose.msra.mxu0 0.0
        %1872 = vmatprep.subr.mxu0 0.0
        %1873 = vmatpush2.xpose.msra.mxu0 0.0
        %1874 = vmatprep.mubr.f32.mxu0 0.0
        %1875 = vmatmul.mubr.f32.gmra.mxu0 %v1805
        %v1876 = vpop.f32.mrf.mxu0
        %v1877 = vadd.f32 0.0, %v1876
        %v1878 = vpop.f32.mrf.mxu0
        %1879 = vdwg.mxu0
        %v1881 = vsel %vm1575, %v1563, 0
        %v1884 = vsel %vm1575, %v1215, 0
        %1886 = vmatprep.subr.mxu0 0.0
        %1887 = vmatpush1.xpose.msra.mxu0 0.0
        %1888 = vmatprep.subr.mxu0 0.0
        %1889 = vmatpush1.xpose.msra.mxu0 0.0
        %1890 = vmatprep.subr.mxu0 0.0
        %1891 = vmatpush1.xpose.msra.mxu0 0.0
        %1892 = vmatprep.subr.mxu0 0.0
        %1893 = vmatpush1.xpose.msra.mxu0 0.0
        %1894 = vmatprep.subr.mxu0 0.0
        %1895 = vmatpush1.xpose.msra.mxu0 0.0
        %1896 = vmatprep.subr.mxu0 0.0
        %1897 = vmatpush1.xpose.msra.mxu0 0.0
        %1898 = vmatprep.subr.mxu0 0.0
        %1899 = vmatpush1.xpose.msra.mxu0 0.0
        %1900 = vmatprep.subr.mxu0 0.0
        %1901 = vmatpush1.xpose.msra.mxu0 0.0
        %1902 = vmatprep.subr.mxu0 0.0
        %1903 = vmatpush1.xpose.msra.mxu0 0.0
        %1904 = vmatprep.subr.mxu0 0.0
        %1905 = vmatpush1.xpose.msra.mxu0 0.0
        %1906 = vmatprep.subr.mxu0 0.0
        %1907 = vmatpush1.xpose.msra.mxu0 0.0
        %1908 = vmatprep.subr.mxu0 0.0
        %1909 = vmatpush1.xpose.msra.mxu0 0.0
        %1910 = vmatprep.subr.mxu0 0.0
        %1911 = vmatpush1.xpose.msra.mxu0 0.0
        %1912 = vmatprep.subr.mxu0 0.0
        %1913 = vmatpush1.xpose.msra.mxu0 0.0
        %1914 = vmatprep.subr.mxu0 0.0
        %1915 = vmatpush1.xpose.msra.mxu0 0.0
        %1916 = vmatprep.subr.mxu0 0.0
        %1917 = vmatpush1.xpose.msra.mxu0 %v1884
        %1918 = vmatprep.subr.mxu0 0.0
        %1919 = vmatpush2.xpose.msra.mxu0 0.0
        %1920 = vmatprep.subr.mxu0 0.0
        %1921 = vmatpush2.xpose.msra.mxu0 0.0
        %1922 = vmatprep.subr.mxu0 0.0
        %1923 = vmatpush2.xpose.msra.mxu0 0.0
        %1924 = vmatprep.subr.mxu0 0.0
        %1925 = vmatpush2.xpose.msra.mxu0 0.0
        %1926 = vmatprep.subr.mxu0 0.0
        %1927 = vmatpush2.xpose.msra.mxu0 0.0
        %1928 = vmatprep.subr.mxu0 0.0
        %1929 = vmatpush2.xpose.msra.mxu0 0.0
        %1930 = vmatprep.subr.mxu0 0.0
        %1931 = vmatpush2.xpose.msra.mxu0 0.0
        %1932 = vmatprep.subr.mxu0 0.0
        %1933 = vmatpush2.xpose.msra.mxu0 0.0
        %1934 = vmatprep.subr.mxu0 0.0
        %1935 = vmatpush2.xpose.msra.mxu0 0.0
        %1936 = vmatprep.subr.mxu0 0.0
        %1937 = vmatpush2.xpose.msra.mxu0 0.0
        %1938 = vmatprep.subr.mxu0 0.0
        %1939 = vmatpush2.xpose.msra.mxu0 0.0
        %1940 = vmatprep.subr.mxu0 0.0
        %1941 = vmatpush2.xpose.msra.mxu0 0.0
        %1942 = vmatprep.subr.mxu0 0.0
        %1943 = vmatpush2.xpose.msra.mxu0 0.0
        %1944 = vmatprep.subr.mxu0 0.0
        %1945 = vmatpush2.xpose.msra.mxu0 0.0
        %1946 = vmatprep.subr.mxu0 0.0
        %1947 = vmatpush2.xpose.msra.mxu0 0.0
        %1948 = vmatprep.subr.mxu0 0.0
        %1949 = vmatpush2.xpose.msra.mxu0 0.0
        %1950 = vmatprep.mubr.f32.mxu0 0.0
        %1951 = vmatmul.mubr.f32.gmra.mxu0 %v1881
        %v1952 = vpop.f32.mrf.mxu0
        %v1953 = vadd.f32 0.0, %v1952
        %v1954 = vpop.f32.mrf.mxu0
        %1955 = vdwg.mxu0
        %v1957 = vsel %vm1575, %v1573, 0
        %v1960 = vsel %vm1575, %v1216, 0
        %1962 = vmatprep.subr.mxu0 0.0
        %1963 = vmatpush1.xpose.msra.mxu0 0.0
        %1964 = vmatprep.subr.mxu0 0.0
        %1965 = vmatpush1.xpose.msra.mxu0 0.0
        %1966 = vmatprep.subr.mxu0 0.0
        %1967 = vmatpush1.xpose.msra.mxu0 0.0
        %1968 = vmatprep.subr.mxu0 0.0
        %1969 = vmatpush1.xpose.msra.mxu0 0.0
        %1970 = vmatprep.subr.mxu0 0.0
        %1971 = vmatpush1.xpose.msra.mxu0 0.0
        %1972 = vmatprep.subr.mxu0 0.0
        %1973 = vmatpush1.xpose.msra.mxu0 0.0
        %1974 = vmatprep.subr.mxu0 0.0
        %1975 = vmatpush1.xpose.msra.mxu0 0.0
        %1976 = vmatprep.subr.mxu0 0.0
        %1977 = vmatpush1.xpose.msra.mxu0 0.0
        %1978 = vmatprep.subr.mxu0 0.0
        %1979 = vmatpush1.xpose.msra.mxu0 0.0
        %1980 = vmatprep.subr.mxu0 0.0
        %1981 = vmatpush1.xpose.msra.mxu0 0.0
        %1982 = vmatprep.subr.mxu0 0.0
        %1983 = vmatpush1.xpose.msra.mxu0 0.0
        %1984 = vmatprep.subr.mxu0 0.0
        %1985 = vmatpush1.xpose.msra.mxu0 0.0
        %1986 = vmatprep.subr.mxu0 0.0
        %1987 = vmatpush1.xpose.msra.mxu0 0.0
        %1988 = vmatprep.subr.mxu0 0.0
        %1989 = vmatpush1.xpose.msra.mxu0 0.0
        %1990 = vmatprep.subr.mxu0 0.0
        %1991 = vmatpush1.xpose.msra.mxu0 0.0
        %1992 = vmatprep.subr.mxu0 0.0
        %1993 = vmatpush1.xpose.msra.mxu0 %v1960
        %1994 = vmatprep.subr.mxu0 0.0
        %1995 = vmatpush2.xpose.msra.mxu0 0.0
        %1996 = vmatprep.subr.mxu0 0.0
        %1997 = vmatpush2.xpose.msra.mxu0 0.0
        %1998 = vmatprep.subr.mxu0 0.0
        %1999 = vmatpush2.xpose.msra.mxu0 0.0
        %2000 = vmatprep.subr.mxu0 0.0
        %2001 = vmatpush2.xpose.msra.mxu0 0.0
        %2002 = vmatprep.subr.mxu0 0.0
        %2003 = vmatpush2.xpose.msra.mxu0 0.0
        %2004 = vmatprep.subr.mxu0 0.0
        %2005 = vmatpush2.xpose.msra.mxu0 0.0
        %2006 = vmatprep.subr.mxu0 0.0
        %2007 = vmatpush2.xpose.msra.mxu0 0.0
        %2008 = vmatprep.subr.mxu0 0.0
        %2009 = vmatpush2.xpose.msra.mxu0 0.0
        %2010 = vmatprep.subr.mxu0 0.0
        %2011 = vmatpush2.xpose.msra.mxu0 0.0
        %2012 = vmatprep.subr.mxu0 0.0
        %2013 = vmatpush2.xpose.msra.mxu0 0.0
        %2014 = vmatprep.subr.mxu0 0.0
        %2015 = vmatpush2.xpose.msra.mxu0 0.0
        %2016 = vmatprep.subr.mxu0 0.0
        %2017 = vmatpush2.xpose.msra.mxu0 0.0
        %2018 = vmatprep.subr.mxu0 0.0
        %2019 = vmatpush2.xpose.msra.mxu0 0.0
        %2020 = vmatprep.subr.mxu0 0.0
        %2021 = vmatpush2.xpose.msra.mxu0 0.0
        %2022 = vmatprep.subr.mxu0 0.0
        %2023 = vmatpush2.xpose.msra.mxu0 0.0
        %2024 = vmatprep.subr.mxu0 0.0
        %2025 = vmatpush2.xpose.msra.mxu0 0.0
        %2026 = vmatprep.mubr.f32.mxu0 0.0
        %2027 = vmatmul.mubr.f32.gmra.mxu0 %v1957
        %v2028 = vpop.f32.mrf.mxu0
        %v2029 = vadd.f32 0.0, %v2028
        %v2030 = vpop.f32.mrf.mxu0
        %2031 = vdwg.mxu0
        %v2033 = vsel %vm1575, %v1570, 0
        %v2036 = vsel %vm1575, %v1217, 0
        %2038 = vmatprep.subr.mxu0 0.0
        %2039 = vmatpush1.xpose.msra.mxu0 0.0
        %2040 = vmatprep.subr.mxu0 0.0
        %2041 = vmatpush1.xpose.msra.mxu0 0.0
        %2042 = vmatprep.subr.mxu0 0.0
        %2043 = vmatpush1.xpose.msra.mxu0 0.0
        %2044 = vmatprep.subr.mxu0 0.0
        %2045 = vmatpush1.xpose.msra.mxu0 0.0
        %2046 = vmatprep.subr.mxu0 0.0
        %2047 = vmatpush1.xpose.msra.mxu0 0.0
        %2048 = vmatprep.subr.mxu0 0.0
        %2049 = vmatpush1.xpose.msra.mxu0 0.0
        %2050 = vmatprep.subr.mxu0 0.0
        %2051 = vmatpush1.xpose.msra.mxu0 0.0
        %2052 = vmatprep.subr.mxu0 0.0
        %2053 = vmatpush1.xpose.msra.mxu0 0.0
        %2054 = vmatprep.subr.mxu0 0.0
        %2055 = vmatpush1.xpose.msra.mxu0 0.0
        %2056 = vmatprep.subr.mxu0 0.0
        %2057 = vmatpush1.xpose.msra.mxu0 0.0
        %2058 = vmatprep.subr.mxu0 0.0
        %2059 = vmatpush1.xpose.msra.mxu0 0.0
        %2060 = vmatprep.subr.mxu0 0.0
        %2061 = vmatpush1.xpose.msra.mxu0 0.0
        %2062 = vmatprep.subr.mxu0 0.0
        %2063 = vmatpush1.xpose.msra.mxu0 0.0
        %2064 = vmatprep.subr.mxu0 0.0
        %2065 = vmatpush1.xpose.msra.mxu0 0.0
        %2066 = vmatprep.subr.mxu0 0.0
        %2067 = vmatpush1.xpose.msra.mxu0 0.0
        %2068 = vmatprep.subr.mxu0 0.0
        %2069 = vmatpush1.xpose.msra.mxu0 %v2036
        %2070 = vmatprep.subr.mxu0 0.0
        %2071 = vmatpush2.xpose.msra.mxu0 0.0
        %2072 = vmatprep.subr.mxu0 0.0
        %2073 = vmatpush2.xpose.msra.mxu0 0.0
        %2074 = vmatprep.subr.mxu0 0.0
        %2075 = vmatpush2.xpose.msra.mxu0 0.0
        %2076 = vmatprep.subr.mxu0 0.0
        %2077 = vmatpush2.xpose.msra.mxu0 0.0
        %2078 = vmatprep.subr.mxu0 0.0
        %2079 = vmatpush2.xpose.msra.mxu0 0.0
        %2080 = vmatprep.subr.mxu0 0.0
        %2081 = vmatpush2.xpose.msra.mxu0 0.0
        %2082 = vmatprep.subr.mxu0 0.0
        %2083 = vmatpush2.xpose.msra.mxu0 0.0
        %2084 = vmatprep.subr.mxu0 0.0
        %2085 = vmatpush2.xpose.msra.mxu0 0.0
        %2086 = vmatprep.subr.mxu0 0.0
        %2087 = vmatpush2.xpose.msra.mxu0 0.0
        %2088 = vmatprep.subr.mxu0 0.0
        %2089 = vmatpush2.xpose.msra.mxu0 0.0
        %2090 = vmatprep.subr.mxu0 0.0
        %2091 = vmatpush2.xpose.msra.mxu0 0.0
        %2092 = vmatprep.subr.mxu0 0.0
        %2093 = vmatpush2.xpose.msra.mxu0 0.0
        %2094 = vmatprep.subr.mxu0 0.0
        %2095 = vmatpush2.xpose.msra.mxu0 0.0
        %2096 = vmatprep.subr.mxu0 0.0
        %2097 = vmatpush2.xpose.msra.mxu0 0.0
        %2098 = vmatprep.subr.mxu0 0.0
        %2099 = vmatpush2.xpose.msra.mxu0 0.0
        %2100 = vmatprep.subr.mxu0 0.0
        %2101 = vmatpush2.xpose.msra.mxu0 0.0
        %2102 = vmatprep.mubr.f32.mxu0 0.0
        %2103 = vmatmul.mubr.f32.gmra.mxu0 %v2033
        %v2104 = vpop.f32.mrf.mxu0
        %v2105 = vadd.f32 0.0, %v2104
        %v2106 = vpop.f32.mrf.mxu0
        %2107 = vdwg.mxu0
        %v2109 = vsel %vm1575, %v1574, 0
        %v2112 = vsel %vm1575, %v1218, 0
        %2114 = vmatprep.subr.mxu0 0.0
        %2115 = vmatpush1.xpose.msra.mxu0 0.0
        %2116 = vmatprep.subr.mxu0 0.0
        %2117 = vmatpush1.xpose.msra.mxu0 0.0
        %2118 = vmatprep.subr.mxu0 0.0
        %2119 = vmatpush1.xpose.msra.mxu0 0.0
        %2120 = vmatprep.subr.mxu0 0.0
        %2121 = vmatpush1.xpose.msra.mxu0 0.0
        %2122 = vmatprep.subr.mxu0 0.0
        %2123 = vmatpush1.xpose.msra.mxu0 0.0
        %2124 = vmatprep.subr.mxu0 0.0
        %2125 = vmatpush1.xpose.msra.mxu0 0.0
        %2126 = vmatprep.subr.mxu0 0.0
        %2127 = vmatpush1.xpose.msra.mxu0 0.0
        %2128 = vmatprep.subr.mxu0 0.0
        %2129 = vmatpush1.xpose.msra.mxu0 0.0
        %2130 = vmatprep.subr.mxu0 0.0
        %2131 = vmatpush1.xpose.msra.mxu0 0.0
        %2132 = vmatprep.subr.mxu0 0.0
        %2133 = vmatpush1.xpose.msra.mxu0 0.0
        %2134 = vmatprep.subr.mxu0 0.0
        %2135 = vmatpush1.xpose.msra.mxu0 0.0
        %2136 = vmatprep.subr.mxu0 0.0
        %2137 = vmatpush1.xpose.msra.mxu0 0.0
        %2138 = vmatprep.subr.mxu0 0.0
        %2139 = vmatpush1.xpose.msra.mxu0 0.0
        %2140 = vmatprep.subr.mxu0 0.0
        %2141 = vmatpush1.xpose.msra.mxu0 0.0
        %2142 = vmatprep.subr.mxu0 0.0
        %2143 = vmatpush1.xpose.msra.mxu0 0.0
        %2144 = vmatprep.subr.mxu0 0.0
        %2145 = vmatpush1.xpose.msra.mxu0 %v2112
        %2146 = vmatprep.subr.mxu0 0.0
        %2147 = vmatpush2.xpose.msra.mxu0 0.0
        %2148 = vmatprep.subr.mxu0 0.0
        %2149 = vmatpush2.xpose.msra.mxu0 0.0
        %2150 = vmatprep.subr.mxu0 0.0
        %2151 = vmatpush2.xpose.msra.mxu0 0.0
        %2152 = vmatprep.subr.mxu0 0.0
        %2153 = vmatpush2.xpose.msra.mxu0 0.0
        %2154 = vmatprep.subr.mxu0 0.0
        %2155 = vmatpush2.xpose.msra.mxu0 0.0
        %2156 = vmatprep.subr.mxu0 0.0
        %2157 = vmatpush2.xpose.msra.mxu0 0.0
        %2158 = vmatprep.subr.mxu0 0.0
        %2159 = vmatpush2.xpose.msra.mxu0 0.0
        %2160 = vmatprep.subr.mxu0 0.0
        %2161 = vmatpush2.xpose.msra.mxu0 0.0
        %2162 = vmatprep.subr.mxu0 0.0
        %2163 = vmatpush2.xpose.msra.mxu0 0.0
        %2164 = vmatprep.subr.mxu0 0.0
        %2165 = vmatpush2.xpose.msra.mxu0 0.0
        %2166 = vmatprep.subr.mxu0 0.0
        %2167 = vmatpush2.xpose.msra.mxu0 0.0
        %2168 = vmatprep.subr.mxu0 0.0
        %2169 = vmatpush2.xpose.msra.mxu0 0.0
        %2170 = vmatprep.subr.mxu0 0.0
        %2171 = vmatpush2.xpose.msra.mxu0 0.0
        %2172 = vmatprep.subr.mxu0 0.0
        %2173 = vmatpush2.xpose.msra.mxu0 0.0
        %2174 = vmatprep.subr.mxu0 0.0
        %2175 = vmatpush2.xpose.msra.mxu0 0.0
        %2176 = vmatprep.subr.mxu0 0.0
        %2177 = vmatpush2.xpose.msra.mxu0 0.0
        %2178 = vmatprep.mubr.f32.mxu0 0.0
        %2179 = vmatmul.mubr.f32.gmra.mxu0 %v2109
        %v2180 = vpop.f32.mrf.mxu0
        %v2181 = vadd.f32 0.0, %v2180
        %v2182 = vpop.f32.mrf.mxu0
        %2183 = vdwg.mxu0
        %v2184 = vcombine.low %v1649, %v1801
        %v2186 = vunpack.c.l.s4 1983009808
        %v2187 = vunpack.c.0.s8 %v2186
        %v2188 = vlaneseq
        %v2189 = vshrl.u32 %v2188, 7
        %v2190 = vsub.s32 %v2187, %v2189
        %v2191 = vrot.slane %v2184, %v2190
        %v2192 = vcombine.low %v1725, %v1877
        %v2194 = vunpack.c.l.s4 1983009808
        %v2195 = vunpack.c.0.s8 %v2194
        %v2196 = vlaneseq
        %v2197 = vshrl.u32 %v2196, 7
        %v2198 = vsub.s32 %v2195, %v2197
        %v2199 = vrot.slane %v2192, %v2198
        %v2200 = vcombine.low %v1953, %v2105
        %v2202 = vunpack.c.l.s4 1983009808
        %v2203 = vunpack.c.0.s8 %v2202
        %v2204 = vlaneseq
        %v2205 = vshrl.u32 %v2204, 7
        %v2206 = vsub.s32 %v2203, %v2205
        %v2207 = vrot.slane %v2200, %v2206
        %v2208 = vcombine.low %v2029, %v2181
        %v2210 = vunpack.c.l.s4 1983009808
        %v2211 = vunpack.c.0.s8 %v2210
        %v2212 = vlaneseq
        %v2213 = vshrl.u32 %v2212, 7
        %v2214 = vsub.s32 %v2211, %v2213
        %v2215 = vrot.slane %v2208, %v2214
        %v2216 = vcombine.low %v2191, %v2199
        %v2217 = vcombine.high %v2191, %v2199
        %v2219 = vunpack.c.l.s4 1934713408
        %v2220 = vunpack.c.0.s8 %v2219
        %v2221 = vlaneseq
        %v2222 = vshrl.u32 %v2221, 7
        %v2223 = vsub.s32 %v2220, %v2222
        %v2224 = vrot.slane %v2216, %v2223
        %v2226 = vunpack.c.l.s4 1934713408
        %v2227 = vunpack.c.0.s8 %v2226
        %v2228 = vlaneseq
        %v2229 = vshrl.u32 %v2228, 7
        %v2230 = vsub.s32 %v2227, %v2229
        %v2231 = vrot.slane %v2217, %v2230
        %v2232 = vcombine.low %v2207, %v2215
        %v2233 = vcombine.high %v2207, %v2215
        %v2235 = vunpack.c.l.s4 1934713408
        %v2236 = vunpack.c.0.s8 %v2235
        %v2237 = vlaneseq
        %v2238 = vshrl.u32 %v2237, 7
        %v2239 = vsub.s32 %v2236, %v2238
        %v2240 = vrot.slane %v2232, %v2239
        %v2242 = vunpack.c.l.s4 1934713408
        %v2243 = vunpack.c.0.s8 %v2242
        %v2244 = vlaneseq
        %v2245 = vshrl.u32 %v2244, 7
        %v2246 = vsub.s32 %v2243, %v2245
        %v2247 = vrot.slane %v2233, %v2246
        %v2248 = vcombine.low %v2224, %v2240
        %v2249 = vcombine.high %v2224, %v2240
        %v2250 = vcombine.low %v2231, %v2247
        %v2251 = vcombine.high %v2231, %v2247
        %v2252 = vcombine.high %v2248, 0.0
        %v2254 = vunpack.c.l.s4 1983009808
        %v2255 = vunpack.c.0.s8 %v2254
        %v2256 = vlaneseq
        %v2257 = vshrl.u32 %v2256, 7
        %v2258 = vsub.s32 %v2255, %v2257
        %v2259 = vrot.slane %v2248, %v2258
        %v2261 = vunpack.c.l.s4 1983009808
        %v2262 = vunpack.c.0.s8 %v2261
        %v2263 = vlaneseq
        %v2264 = vshrl.u32 %v2263, 7
        %v2265 = vsub.s32 %v2262, %v2264
        %v2266 = vrot.slane %v2252, %v2265
        %v2267 = vcombine.high %v2259, 0.0
        %v2269 = vunpack.c.l.s4 1934713408
        %v2270 = vunpack.c.0.s8 %v2269
        %v2271 = vlaneseq
        %v2272 = vshrl.u32 %v2271, 7
        %v2273 = vsub.s32 %v2270, %v2272
        %v2274 = vrot.slane %v2259, %v2273
        %v2276 = vunpack.c.l.s4 1934713408
        %v2277 = vunpack.c.0.s8 %v2276
        %v2278 = vlaneseq
        %v2279 = vshrl.u32 %v2278, 7
        %v2280 = vsub.s32 %v2277, %v2279
        %v2281 = vrot.slane %v2267, %v2280
        %v2282 = vcombine.high %v2266, 0.0
        %v2284 = vunpack.c.l.s4 1934713408
        %v2285 = vunpack.c.0.s8 %v2284
        %v2286 = vlaneseq
        %v2287 = vshrl.u32 %v2286, 7
        %v2288 = vsub.s32 %v2285, %v2287
        %v2289 = vrot.slane %v2266, %v2288
        %v2291 = vunpack.c.l.s4 1934713408
        %v2292 = vunpack.c.0.s8 %v2291
        %v2293 = vlaneseq
        %v2294 = vshrl.u32 %v2293, 7
        %v2295 = vsub.s32 %v2292, %v2294
        %v2296 = vrot.slane %v2282, %v2295
        %v2297 = vcombine.high %v2274, 0.0
        %v2298 = vcombine.high %v2281, 0.0
        %v2299 = vcombine.high %v2289, 0.0
        %v2300 = vcombine.high %v2296, 0.0
        %v2301 = vcombine.high %v2249, 0.0
        %v2303 = vunpack.c.l.s4 1983009808
        %v2304 = vunpack.c.0.s8 %v2303
        %v2305 = vlaneseq
        %v2306 = vshrl.u32 %v2305, 7
        %v2307 = vsub.s32 %v2304, %v2306
        %v2308 = vrot.slane %v2249, %v2307
        %v2310 = vunpack.c.l.s4 1983009808
        %v2311 = vunpack.c.0.s8 %v2310
        %v2312 = vlaneseq
        %v2313 = vshrl.u32 %v2312, 7
        %v2314 = vsub.s32 %v2311, %v2313
        %v2315 = vrot.slane %v2301, %v2314
        %v2316 = vcombine.high %v2308, 0.0
        %v2318 = vunpack.c.l.s4 1934713408
        %v2319 = vunpack.c.0.s8 %v2318
        %v2320 = vlaneseq
        %v2321 = vshrl.u32 %v2320, 7
        %v2322 = vsub.s32 %v2319, %v2321
        %v2323 = vrot.slane %v2308, %v2322
        %v2325 = vunpack.c.l.s4 1934713408
        %v2326 = vunpack.c.0.s8 %v2325
        %v2327 = vlaneseq
        %v2328 = vshrl.u32 %v2327, 7
        %v2329 = vsub.s32 %v2326, %v2328
        %v2330 = vrot.slane %v2316, %v2329
        %v2331 = vcombine.high %v2315, 0.0
        %v2333 = vunpack.c.l.s4 1934713408
        %v2334 = vunpack.c.0.s8 %v2333
        %v2335 = vlaneseq
        %v2336 = vshrl.u32 %v2335, 7
        %v2337 = vsub.s32 %v2334, %v2336
        %v2338 = vrot.slane %v2315, %v2337
        %v2340 = vunpack.c.l.s4 1934713408
        %v2341 = vunpack.c.0.s8 %v2340
        %v2342 = vlaneseq
        %v2343 = vshrl.u32 %v2342, 7
        %v2344 = vsub.s32 %v2341, %v2343
        %v2345 = vrot.slane %v2331, %v2344
        %v2346 = vcombine.high %v2323, 0.0
        %v2347 = vcombine.high %v2330, 0.0
        %v2348 = vcombine.high %v2338, 0.0
        %v2349 = vcombine.high %v2345, 0.0
        %v2350 = vcombine.high %v2250, 0.0
        %v2352 = vunpack.c.l.s4 1983009808
        %v2353 = vunpack.c.0.s8 %v2352
        %v2354 = vlaneseq
        %v2355 = vshrl.u32 %v2354, 7
        %v2356 = vsub.s32 %v2353, %v2355
        %v2357 = vrot.slane %v2250, %v2356
        %v2359 = vunpack.c.l.s4 1983009808
        %v2360 = vunpack.c.0.s8 %v2359
        %v2361 = vlaneseq
        %v2362 = vshrl.u32 %v2361, 7
        %v2363 = vsub.s32 %v2360, %v2362
        %v2364 = vrot.slane %v2350, %v2363
        %v2365 = vcombine.high %v2357, 0.0
        %v2367 = vunpack.c.l.s4 1934713408
        %v2368 = vunpack.c.0.s8 %v2367
        %v2369 = vlaneseq
        %v2370 = vshrl.u32 %v2369, 7
        %v2371 = vsub.s32 %v2368, %v2370
        %v2372 = vrot.slane %v2357, %v2371
        %v2374 = vunpack.c.l.s4 1934713408
        %v2375 = vunpack.c.0.s8 %v2374
        %v2376 = vlaneseq
        %v2377 = vshrl.u32 %v2376, 7
        %v2378 = vsub.s32 %v2375, %v2377
        %v2379 = vrot.slane %v2365, %v2378
        %v2380 = vcombine.high %v2364, 0.0
        %v2382 = vunpack.c.l.s4 1934713408
        %v2383 = vunpack.c.0.s8 %v2382
        %v2384 = vlaneseq
        %v2385 = vshrl.u32 %v2384, 7
        %v2386 = vsub.s32 %v2383, %v2385
        %v2387 = vrot.slane %v2364, %v2386
        %v2389 = vunpack.c.l.s4 1934713408
        %v2390 = vunpack.c.0.s8 %v2389
        %v2391 = vlaneseq
        %v2392 = vshrl.u32 %v2391, 7
        %v2393 = vsub.s32 %v2390, %v2392
        %v2394 = vrot.slane %v2380, %v2393
        %v2395 = vcombine.high %v2372, 0.0
        %v2396 = vcombine.high %v2379, 0.0
        %v2397 = vcombine.high %v2387, 0.0
        %v2398 = vcombine.high %v2394, 0.0
        %v2399 = vcombine.high %v2251, 0.0
        %v2401 = vunpack.c.l.s4 1983009808
        %v2402 = vunpack.c.0.s8 %v2401
        %v2403 = vlaneseq
        %v2404 = vshrl.u32 %v2403, 7
        %v2405 = vsub.s32 %v2402, %v2404
        %v2406 = vrot.slane %v2251, %v2405
        %v2408 = vunpack.c.l.s4 1983009808
        %v2409 = vunpack.c.0.s8 %v2408
        %v2410 = vlaneseq
        %v2411 = vshrl.u32 %v2410, 7
        %v2412 = vsub.s32 %v2409, %v2411
        %v2413 = vrot.slane %v2399, %v2412
        %v2414 = vcombine.high %v2406, 0.0
        %v2416 = vunpack.c.l.s4 1934713408
        %v2417 = vunpack.c.0.s8 %v2416
        %v2418 = vlaneseq
        %v2419 = vshrl.u32 %v2418, 7
        %v2420 = vsub.s32 %v2417, %v2419
        %v2421 = vrot.slane %v2406, %v2420
        %v2423 = vunpack.c.l.s4 1934713408
        %v2424 = vunpack.c.0.s8 %v2423
        %v2425 = vlaneseq
        %v2426 = vshrl.u32 %v2425, 7
        %v2427 = vsub.s32 %v2424, %v2426
        %v2428 = vrot.slane %v2414, %v2427
        %v2429 = vcombine.high %v2413, 0.0
        %v2431 = vunpack.c.l.s4 1934713408
        %v2432 = vunpack.c.0.s8 %v2431
        %v2433 = vlaneseq
        %v2434 = vshrl.u32 %v2433, 7
        %v2435 = vsub.s32 %v2432, %v2434
        %v2436 = vrot.slane %v2413, %v2435
        %v2438 = vunpack.c.l.s4 1934713408
        %v2439 = vunpack.c.0.s8 %v2438
        %v2440 = vlaneseq
        %v2441 = vshrl.u32 %v2440, 7
        %v2442 = vsub.s32 %v2439, %v2441
        %v2443 = vrot.slane %v2429, %v2442
        %v2444 = vcombine.high %v2421, 0.0
        %v2445 = vcombine.high %v2428, 0.0
        %v2446 = vcombine.high %v2436, 0.0
        %v2447 = vcombine.high %v2443, 0.0
        %2452 = vrot.lane.b32.xlu0 %v2297, 8
        %v2453 = vpop.permute.xlu0 %2452
        %2454 = vrot.lane.b32.xlu0 %v2346, 8
        %v2455 = vpop.permute.xlu0 %2454
        %2456 = vrot.lane.b32.xlu0 %v2395, 8
        %v2457 = vpop.permute.xlu0 %2456
        %2458 = vrot.lane.b32.xlu0 %v2444, 8
        %v2459 = vpop.permute.xlu0 %2458
        %2468 = vrot.lane.b32.xlu0 %v2281, 16
        %v2469 = vpop.permute.xlu0 %2468
        %2470 = vrot.lane.b32.xlu0 %v2330, 16
        %v2471 = vpop.permute.xlu0 %2470
        %2472 = vrot.lane.b32.xlu0 %v2379, 16
        %v2473 = vpop.permute.xlu0 %2472
        %2474 = vrot.lane.b32.xlu0 %v2428, 16
        %v2475 = vpop.permute.xlu0 %2474
        %2484 = vrot.lane.b32.xlu0 %v2298, 24
        %v2485 = vpop.permute.xlu0 %2484
        %2486 = vrot.lane.b32.xlu0 %v2347, 24
        %v2487 = vpop.permute.xlu0 %2486
        %2488 = vrot.lane.b32.xlu0 %v2396, 24
        %v2489 = vpop.permute.xlu0 %2488
        %2490 = vrot.lane.b32.xlu0 %v2445, 24
        %v2491 = vpop.permute.xlu0 %2490
        %2500 = vrot.lane.b32.xlu0 %v2289, 32
        %v2501 = vpop.permute.xlu0 %2500
        %2502 = vrot.lane.b32.xlu0 %v2338, 32
        %v2503 = vpop.permute.xlu0 %2502
        %2504 = vrot.lane.b32.xlu0 %v2387, 32
        %v2505 = vpop.permute.xlu0 %2504
        %2506 = vrot.lane.b32.xlu0 %v2436, 32
        %v2507 = vpop.permute.xlu0 %2506
        %2516 = vrot.lane.b32.xlu0 %v2299, 40
        %v2517 = vpop.permute.xlu0 %2516
        %2518 = vrot.lane.b32.xlu0 %v2348, 40
        %v2519 = vpop.permute.xlu0 %2518
        %2520 = vrot.lane.b32.xlu0 %v2397, 40
        %v2521 = vpop.permute.xlu0 %2520
        %2522 = vrot.lane.b32.xlu0 %v2446, 40
        %v2523 = vpop.permute.xlu0 %2522
        %2532 = vrot.lane.b32.xlu0 %v2296, 48
        %v2533 = vpop.permute.xlu0 %2532
        %2534 = vrot.lane.b32.xlu0 %v2345, 48
        %v2535 = vpop.permute.xlu0 %2534
        %2536 = vrot.lane.b32.xlu0 %v2394, 48
        %v2537 = vpop.permute.xlu0 %2536
        %2538 = vrot.lane.b32.xlu0 %v2443, 48
        %v2539 = vpop.permute.xlu0 %2538
        %2548 = vrot.lane.b32.xlu0 %v2300, 56
        %v2549 = vpop.permute.xlu0 %2548
        %2550 = vrot.lane.b32.xlu0 %v2349, 56
        %v2551 = vpop.permute.xlu0 %2550
        %2552 = vrot.lane.b32.xlu0 %v2398, 56
        %v2553 = vpop.permute.xlu0 %2552
        %2554 = vrot.lane.b32.xlu0 %v2447, 56
        %v2555 = vpop.permute.xlu0 %2554
        %v2560 = vsel %vm1575, %v2274, %v2453
        %v2561 = vsel %vm1575, %v2323, %v2455
        %v2562 = vsel %vm1575, %v2372, %v2457
        %v2563 = vsel %vm1575, %v2421, %v2459
        %vm2564 = vcmask 130048
        %v2565 = vsel %vm2564, %v2560, %v2469
        %v2566 = vsel %vm2564, %v2561, %v2471
        %v2567 = vsel %vm2564, %v2562, %v2473
        %v2568 = vsel %vm2564, %v2563, %v2475
        %vm2569 = vcmask 195584
        %v2570 = vsel %vm2569, %v2565, %v2485
        %v2571 = vsel %vm2569, %v2566, %v2487
        %v2572 = vsel %vm2569, %v2567, %v2489
        %v2573 = vsel %vm2569, %v2568, %v2491
        %v2574 = vsel %vm487, %v2570, %v2501
        %v2575 = vsel %vm487, %v2571, %v2503
        %v2576 = vsel %vm487, %v2572, %v2505
        %v2577 = vsel %vm487, %v2573, %v2507
        %vm2578 = vcmask 326656
        %v2579 = vsel %vm2578, %v2574, %v2517
        %v2580 = vsel %vm2578, %v2575, %v2519
        %v2581 = vsel %vm2578, %v2576, %v2521
        %v2582 = vsel %vm2578, %v2577, %v2523
        %vm2583 = vcmask 392192
        %v2584 = vsel %vm2583, %v2579, %v2533
        %v2585 = vsel %vm2583, %v2580, %v2535
        %v2586 = vsel %vm2583, %v2581, %v2537
        %v2587 = vsel %vm2583, %v2582, %v2539
        %vm2588 = vcmask 457728
        %v2589 = vsel %vm2588, %v2584, %v2549
        %v2590 = vsel %vm2588, %v2585, %v2551
        %v2591 = vsel %vm2588, %v2586, %v2553
        %v2592 = vsel %vm2588, %v2587, %v2555
        %vm2593 = vcmask 516096
        %2594 = vst.msk [vmem:[%s473] sm:$0x1] %vm2593, %v2589
        %2595 = vst.msk [vmem:[%s473 + $0x4] sm:$0x1] %vm2593, %v2590
        %2596 = vst.msk [vmem:[%s473 + $0x8] sm:$0x1] %vm2593, %v2591
        %2597 = vst.msk [vmem:[%s473 + $0xc] sm:$0x1] %vm2593, %v2592
        %v2598 = vld [vmem:[#allocation2] sm:$0xff]
        %v2599 = vld [vmem:[#allocation2 + $0x8] sm:$0xff]
        %v2600 = vld [vmem:[#allocation2 + $0x10] sm:$0xff]
        %v2601 = vld [vmem:[#allocation2 + $0x18] sm:$0xff]
        %v2602 = vld [vmem:[#allocation2 + $0x20] sm:$0xff]
        %v2603 = vld [vmem:[#allocation2 + $0x28] sm:$0xff]
        %v2604 = vld [vmem:[#allocation2 + $0x30] sm:$0xff]
        %v2605 = vld [vmem:[#allocation2 + $0x38] sm:$0xff]
        %v2606 = vld [vmem:[%s429 + $0x1] sm:$0x1]
        %v2607 = vld [vmem:[%s429 + $0x5] sm:$0x1]
        %v2608 = vld [vmem:[%s429 + $0x9] sm:$0x1]
        %v2609 = vld [vmem:[%s429 + $0xd] sm:$0x1]
        %2614 = vrot.lane.b32.xlu0 %v2606, 120
        %v2615 = vpop.permute.xlu0 %2614
        %2616 = vrot.lane.b32.xlu0 %v2607, 120
        %v2617 = vpop.permute.xlu0 %2616
        %2618 = vrot.lane.b32.xlu0 %v2608, 120
        %v2619 = vpop.permute.xlu0 %2618
        %2620 = vrot.lane.b32.xlu0 %v2609, 120
        %v2621 = vpop.permute.xlu0 %2620
        %2626 = vrot.lane.b32.xlu0 %v2606, 112
        %v2627 = vpop.permute.xlu0 %2626
        %2628 = vrot.lane.b32.xlu0 %v2607, 112
        %v2629 = vpop.permute.xlu0 %2628
        %2630 = vrot.lane.b32.xlu0 %v2608, 112
        %v2631 = vpop.permute.xlu0 %2630
        %2632 = vrot.lane.b32.xlu0 %v2609, 112
        %v2633 = vpop.permute.xlu0 %2632
        %2638 = vrot.lane.b32.xlu0 %v2606, 104
        %v2639 = vpop.permute.xlu0 %2638
        %2640 = vrot.lane.b32.xlu0 %v2607, 104
        %v2641 = vpop.permute.xlu0 %2640
        %2642 = vrot.lane.b32.xlu0 %v2608, 104
        %v2643 = vpop.permute.xlu0 %2642
        %2644 = vrot.lane.b32.xlu0 %v2609, 104
        %v2645 = vpop.permute.xlu0 %2644
        %2650 = vrot.lane.b32.xlu0 %v2606, 96
        %v2651 = vpop.permute.xlu0 %2650
        %2652 = vrot.lane.b32.xlu0 %v2607, 96
        %v2653 = vpop.permute.xlu0 %2652
        %2654 = vrot.lane.b32.xlu0 %v2608, 96
        %v2655 = vpop.permute.xlu0 %2654
        %2656 = vrot.lane.b32.xlu0 %v2609, 96
        %v2657 = vpop.permute.xlu0 %2656
        %2662 = vrot.lane.b32.xlu0 %v2606, 88
        %v2663 = vpop.permute.xlu0 %2662
        %2664 = vrot.lane.b32.xlu0 %v2607, 88
        %v2665 = vpop.permute.xlu0 %2664
        %2666 = vrot.lane.b32.xlu0 %v2608, 88
        %v2667 = vpop.permute.xlu0 %2666
        %2668 = vrot.lane.b32.xlu0 %v2609, 88
        %v2669 = vpop.permute.xlu0 %2668
        %2674 = vrot.lane.b32.xlu0 %v2606, 80
        %v2675 = vpop.permute.xlu0 %2674
        %2676 = vrot.lane.b32.xlu0 %v2607, 80
        %v2677 = vpop.permute.xlu0 %2676
        %2678 = vrot.lane.b32.xlu0 %v2608, 80
        %v2679 = vpop.permute.xlu0 %2678
        %2680 = vrot.lane.b32.xlu0 %v2609, 80
        %v2681 = vpop.permute.xlu0 %2680
        %2686 = vrot.lane.b32.xlu0 %v2606, 72
        %v2687 = vpop.permute.xlu0 %2686
        %2688 = vrot.lane.b32.xlu0 %v2607, 72
        %v2689 = vpop.permute.xlu0 %2688
        %2690 = vrot.lane.b32.xlu0 %v2608, 72
        %v2691 = vpop.permute.xlu0 %2690
        %2692 = vrot.lane.b32.xlu0 %v2609, 72
        %v2693 = vpop.permute.xlu0 %2692
        %v2698 = vcombine.low %v2606, %v2627
        %v2700 = vunpack.c.l.s4 1983009808
        %v2701 = vunpack.c.0.s8 %v2700
        %v2702 = vlaneseq
        %v2703 = vshrl.u32 %v2702, 7
        %v2704 = vsub.s32 %v2701, %v2703
        %v2705 = vrot.slane %v2698, %v2704
        %v2706 = vcombine.low %v2615, %v2639
        %v2708 = vunpack.c.l.s4 1983009808
        %v2709 = vunpack.c.0.s8 %v2708
        %v2710 = vlaneseq
        %v2711 = vshrl.u32 %v2710, 7
        %v2712 = vsub.s32 %v2709, %v2711
        %v2713 = vrot.slane %v2706, %v2712
        %v2714 = vcombine.low %v2651, %v2675
        %v2716 = vunpack.c.l.s4 1983009808
        %v2717 = vunpack.c.0.s8 %v2716
        %v2718 = vlaneseq
        %v2719 = vshrl.u32 %v2718, 7
        %v2720 = vsub.s32 %v2717, %v2719
        %v2721 = vrot.slane %v2714, %v2720
        %v2722 = vcombine.low %v2663, %v2687
        %v2724 = vunpack.c.l.s4 1983009808
        %v2725 = vunpack.c.0.s8 %v2724
        %v2726 = vlaneseq
        %v2727 = vshrl.u32 %v2726, 7
        %v2728 = vsub.s32 %v2725, %v2727
        %v2729 = vrot.slane %v2722, %v2728
        %v2730 = vcombine.low %v2705, %v2713
        %v2732 = vunpack.c.l.s4 1934713408
        %v2733 = vunpack.c.0.s8 %v2732
        %v2734 = vlaneseq
        %v2735 = vshrl.u32 %v2734, 7
        %v2736 = vsub.s32 %v2733, %v2735
        %v2737 = vrot.slane %v2730, %v2736
        %v2738 = vcombine.low %v2721, %v2729
        %v2740 = vunpack.c.l.s4 1934713408
        %v2741 = vunpack.c.0.s8 %v2740
        %v2742 = vlaneseq
        %v2743 = vshrl.u32 %v2742, 7
        %v2744 = vsub.s32 %v2741, %v2743
        %v2745 = vrot.slane %v2738, %v2744
        %v2746 = vcombine.low %v2737, %v2745
        %v2747 = vcombine.low %v2607, %v2629
        %v2749 = vunpack.c.l.s4 1983009808
        %v2750 = vunpack.c.0.s8 %v2749
        %v2751 = vlaneseq
        %v2752 = vshrl.u32 %v2751, 7
        %v2753 = vsub.s32 %v2750, %v2752
        %v2754 = vrot.slane %v2747, %v2753
        %v2755 = vcombine.low %v2617, %v2641
        %v2757 = vunpack.c.l.s4 1983009808
        %v2758 = vunpack.c.0.s8 %v2757
        %v2759 = vlaneseq
        %v2760 = vshrl.u32 %v2759, 7
        %v2761 = vsub.s32 %v2758, %v2760
        %v2762 = vrot.slane %v2755, %v2761
        %v2763 = vcombine.low %v2653, %v2677
        %v2765 = vunpack.c.l.s4 1983009808
        %v2766 = vunpack.c.0.s8 %v2765
        %v2767 = vlaneseq
        %v2768 = vshrl.u32 %v2767, 7
        %v2769 = vsub.s32 %v2766, %v2768
        %v2770 = vrot.slane %v2763, %v2769
        %v2771 = vcombine.low %v2665, %v2689
        %v2773 = vunpack.c.l.s4 1983009808
        %v2774 = vunpack.c.0.s8 %v2773
        %v2775 = vlaneseq
        %v2776 = vshrl.u32 %v2775, 7
        %v2777 = vsub.s32 %v2774, %v2776
        %v2778 = vrot.slane %v2771, %v2777
        %v2779 = vcombine.low %v2754, %v2762
        %v2781 = vunpack.c.l.s4 1934713408
        %v2782 = vunpack.c.0.s8 %v2781
        %v2783 = vlaneseq
        %v2784 = vshrl.u32 %v2783, 7
        %v2785 = vsub.s32 %v2782, %v2784
        %v2786 = vrot.slane %v2779, %v2785
        %v2787 = vcombine.low %v2770, %v2778
        %v2789 = vunpack.c.l.s4 1934713408
        %v2790 = vunpack.c.0.s8 %v2789
        %v2791 = vlaneseq
        %v2792 = vshrl.u32 %v2791, 7
        %v2793 = vsub.s32 %v2790, %v2792
        %v2794 = vrot.slane %v2787, %v2793
        %v2795 = vcombine.low %v2786, %v2794
        %v2796 = vcombine.low %v2608, %v2631
        %v2798 = vunpack.c.l.s4 1983009808
        %v2799 = vunpack.c.0.s8 %v2798
        %v2800 = vlaneseq
        %v2801 = vshrl.u32 %v2800, 7
        %v2802 = vsub.s32 %v2799, %v2801
        %v2803 = vrot.slane %v2796, %v2802
        %v2804 = vcombine.low %v2619, %v2643
        %v2806 = vunpack.c.l.s4 1983009808
        %v2807 = vunpack.c.0.s8 %v2806
        %v2808 = vlaneseq
        %v2809 = vshrl.u32 %v2808, 7
        %v2810 = vsub.s32 %v2807, %v2809
        %v2811 = vrot.slane %v2804, %v2810
        %v2812 = vcombine.low %v2655, %v2679
        %v2814 = vunpack.c.l.s4 1983009808
        %v2815 = vunpack.c.0.s8 %v2814
        %v2816 = vlaneseq
        %v2817 = vshrl.u32 %v2816, 7
        %v2818 = vsub.s32 %v2815, %v2817
        %v2819 = vrot.slane %v2812, %v2818
        %v2820 = vcombine.low %v2667, %v2691
        %v2822 = vunpack.c.l.s4 1983009808
        %v2823 = vunpack.c.0.s8 %v2822
        %v2824 = vlaneseq
        %v2825 = vshrl.u32 %v2824, 7
        %v2826 = vsub.s32 %v2823, %v2825
        %v2827 = vrot.slane %v2820, %v2826
        %v2828 = vcombine.low %v2803, %v2811
        %v2830 = vunpack.c.l.s4 1934713408
        %v2831 = vunpack.c.0.s8 %v2830
        %v2832 = vlaneseq
        %v2833 = vshrl.u32 %v2832, 7
        %v2834 = vsub.s32 %v2831, %v2833
        %v2835 = vrot.slane %v2828, %v2834
        %v2836 = vcombine.low %v2819, %v2827
        %v2838 = vunpack.c.l.s4 1934713408
        %v2839 = vunpack.c.0.s8 %v2838
        %v2840 = vlaneseq
        %v2841 = vshrl.u32 %v2840, 7
        %v2842 = vsub.s32 %v2839, %v2841
        %v2843 = vrot.slane %v2836, %v2842
        %v2844 = vcombine.low %v2835, %v2843
        %v2845 = vcombine.low %v2609, %v2633
        %v2847 = vunpack.c.l.s4 1983009808
        %v2848 = vunpack.c.0.s8 %v2847
        %v2849 = vlaneseq
        %v2850 = vshrl.u32 %v2849, 7
        %v2851 = vsub.s32 %v2848, %v2850
        %v2852 = vrot.slane %v2845, %v2851
        %v2853 = vcombine.low %v2621, %v2645
        %v2855 = vunpack.c.l.s4 1983009808
        %v2856 = vunpack.c.0.s8 %v2855
        %v2857 = vlaneseq
        %v2858 = vshrl.u32 %v2857, 7
        %v2859 = vsub.s32 %v2856, %v2858
        %v2860 = vrot.slane %v2853, %v2859
        %v2861 = vcombine.low %v2657, %v2681
        %v2863 = vunpack.c.l.s4 1983009808
        %v2864 = vunpack.c.0.s8 %v2863
        %v2865 = vlaneseq
        %v2866 = vshrl.u32 %v2865, 7
        %v2867 = vsub.s32 %v2864, %v2866
        %v2868 = vrot.slane %v2861, %v2867
        %v2869 = vcombine.low %v2669, %v2693
        %v2871 = vunpack.c.l.s4 1983009808
        %v2872 = vunpack.c.0.s8 %v2871
        %v2873 = vlaneseq
        %v2874 = vshrl.u32 %v2873, 7
        %v2875 = vsub.s32 %v2872, %v2874
        %v2876 = vrot.slane %v2869, %v2875
        %v2877 = vcombine.low %v2852, %v2860
        %v2879 = vunpack.c.l.s4 1934713408
        %v2880 = vunpack.c.0.s8 %v2879
        %v2881 = vlaneseq
        %v2882 = vshrl.u32 %v2881, 7
        %v2883 = vsub.s32 %v2880, %v2882
        %v2884 = vrot.slane %v2877, %v2883
        %v2885 = vcombine.low %v2868, %v2876
        %v2887 = vunpack.c.l.s4 1934713408
        %v2888 = vunpack.c.0.s8 %v2887
        %v2889 = vlaneseq
        %v2890 = vshrl.u32 %v2889, 7
        %v2891 = vsub.s32 %v2888, %v2890
        %v2892 = vrot.slane %v2885, %v2891
        %v2893 = vcombine.low %v2884, %v2892
        %v2894 = vcombine.low %v2746, %v2844
        %v2895 = vcombine.high %v2746, %v2844
        %v2897 = vunpack.c.l.s4 1983009808
        %v2898 = vunpack.c.0.s8 %v2897
        %v2899 = vlaneseq
        %v2900 = vshrl.u32 %v2899, 7
        %v2901 = vsub.s32 %v2898, %v2900
        %v2902 = vrot.slane %v2894, %v2901
        %v2904 = vunpack.c.l.s4 1983009808
        %v2905 = vunpack.c.0.s8 %v2904
        %v2906 = vlaneseq
        %v2907 = vshrl.u32 %v2906, 7
        %v2908 = vsub.s32 %v2905, %v2907
        %v2909 = vrot.slane %v2895, %v2908
        %v2910 = vcombine.low %v2795, %v2893
        %v2911 = vcombine.high %v2795, %v2893
        %v2913 = vunpack.c.l.s4 1983009808
        %v2914 = vunpack.c.0.s8 %v2913
        %v2915 = vlaneseq
        %v2916 = vshrl.u32 %v2915, 7
        %v2917 = vsub.s32 %v2914, %v2916
        %v2918 = vrot.slane %v2910, %v2917
        %v2920 = vunpack.c.l.s4 1983009808
        %v2921 = vunpack.c.0.s8 %v2920
        %v2922 = vlaneseq
        %v2923 = vshrl.u32 %v2922, 7
        %v2924 = vsub.s32 %v2921, %v2923
        %v2925 = vrot.slane %v2911, %v2924
        %v2926 = vcombine.low %v2902, %v2918
        %v2927 = vcombine.high %v2902, %v2918
        %v2929 = vunpack.c.l.s4 1934713408
        %v2930 = vunpack.c.0.s8 %v2929
        %v2931 = vlaneseq
        %v2932 = vshrl.u32 %v2931, 7
        %v2933 = vsub.s32 %v2930, %v2932
        %v2934 = vrot.slane %v2926, %v2933
        %v2936 = vunpack.c.l.s4 1934713408
        %v2937 = vunpack.c.0.s8 %v2936
        %v2938 = vlaneseq
        %v2939 = vshrl.u32 %v2938, 7
        %v2940 = vsub.s32 %v2937, %v2939
        %v2941 = vrot.slane %v2927, %v2940
        %v2942 = vcombine.low %v2909, %v2925
        %v2943 = vcombine.high %v2909, %v2925
        %v2945 = vunpack.c.l.s4 1934713408
        %v2946 = vunpack.c.0.s8 %v2945
        %v2947 = vlaneseq
        %v2948 = vshrl.u32 %v2947, 7
        %v2949 = vsub.s32 %v2946, %v2948
        %v2950 = vrot.slane %v2942, %v2949
        %v2952 = vunpack.c.l.s4 1934713408
        %v2953 = vunpack.c.0.s8 %v2952
        %v2954 = vlaneseq
        %v2955 = vshrl.u32 %v2954, 7
        %v2956 = vsub.s32 %v2953, %v2955
        %v2957 = vrot.slane %v2943, %v2956
        %v2958 = vcombine.high %v2934, 0.0
        %v2959 = vcombine.high %v2941, 0.0
        %v2960 = vcombine.high %v2950, 0.0
        %v2961 = vcombine.high %v2957, 0.0
        %2963 = vrot.lane.b32.xlu0 %v2598, 120
        %v2964 = vpop.permute.xlu0 %2963
        %v2966 = vsel %vm1575, %v2934, 0
        %v2968 = vsel %vm1575, %v2964, 0
        %2970 = vmatprep.subr.mxu0 0.0
        %2971 = vmatpush1.xpose.msra.mxu0 0.0
        %2972 = vmatprep.subr.mxu0 0.0
        %2973 = vmatpush1.xpose.msra.mxu0 0.0
        %2974 = vmatprep.subr.mxu0 0.0
        %2975 = vmatpush1.xpose.msra.mxu0 0.0
        %2976 = vmatprep.subr.mxu0 0.0
        %2977 = vmatpush1.xpose.msra.mxu0 0.0
        %2978 = vmatprep.subr.mxu0 0.0
        %2979 = vmatpush1.xpose.msra.mxu0 0.0
        %2980 = vmatprep.subr.mxu0 0.0
        %2981 = vmatpush1.xpose.msra.mxu0 0.0
        %2982 = vmatprep.subr.mxu0 0.0
        %2983 = vmatpush1.xpose.msra.mxu0 0.0
        %2984 = vmatprep.subr.mxu0 0.0
        %2985 = vmatpush1.xpose.msra.mxu0 0.0
        %2986 = vmatprep.subr.mxu0 0.0
        %2987 = vmatpush1.xpose.msra.mxu0 0.0
        %2988 = vmatprep.subr.mxu0 0.0
        %2989 = vmatpush1.xpose.msra.mxu0 0.0
        %2990 = vmatprep.subr.mxu0 0.0
        %2991 = vmatpush1.xpose.msra.mxu0 0.0
        %2992 = vmatprep.subr.mxu0 0.0
        %2993 = vmatpush1.xpose.msra.mxu0 0.0
        %2994 = vmatprep.subr.mxu0 0.0
        %2995 = vmatpush1.xpose.msra.mxu0 0.0
        %2996 = vmatprep.subr.mxu0 0.0
        %2997 = vmatpush1.xpose.msra.mxu0 0.0
        %2998 = vmatprep.subr.mxu0 0.0
        %2999 = vmatpush1.xpose.msra.mxu0 0.0
        %3000 = vmatprep.subr.mxu0 0.0
        %3001 = vmatpush1.xpose.msra.mxu0 %v2968
        %3002 = vmatprep.subr.mxu0 0.0
        %3003 = vmatpush2.xpose.msra.mxu0 0.0
        %3004 = vmatprep.subr.mxu0 0.0
        %3005 = vmatpush2.xpose.msra.mxu0 0.0
        %3006 = vmatprep.subr.mxu0 0.0
        %3007 = vmatpush2.xpose.msra.mxu0 0.0
        %3008 = vmatprep.subr.mxu0 0.0
        %3009 = vmatpush2.xpose.msra.mxu0 0.0
        %3010 = vmatprep.subr.mxu0 0.0
        %3011 = vmatpush2.xpose.msra.mxu0 0.0
        %3012 = vmatprep.subr.mxu0 0.0
        %3013 = vmatpush2.xpose.msra.mxu0 0.0
        %3014 = vmatprep.subr.mxu0 0.0
        %3015 = vmatpush2.xpose.msra.mxu0 0.0
        %3016 = vmatprep.subr.mxu0 0.0
        %3017 = vmatpush2.xpose.msra.mxu0 0.0
        %3018 = vmatprep.subr.mxu0 0.0
        %3019 = vmatpush2.xpose.msra.mxu0 0.0
        %3020 = vmatprep.subr.mxu0 0.0
        %3021 = vmatpush2.xpose.msra.mxu0 0.0
        %3022 = vmatprep.subr.mxu0 0.0
        %3023 = vmatpush2.xpose.msra.mxu0 0.0
        %3024 = vmatprep.subr.mxu0 0.0
        %3025 = vmatpush2.xpose.msra.mxu0 0.0
        %3026 = vmatprep.subr.mxu0 0.0
        %3027 = vmatpush2.xpose.msra.mxu0 0.0
        %3028 = vmatprep.subr.mxu0 0.0
        %3029 = vmatpush2.xpose.msra.mxu0 0.0
        %3030 = vmatprep.subr.mxu0 0.0
        %3031 = vmatpush2.xpose.msra.mxu0 0.0
        %3032 = vmatprep.subr.mxu0 0.0
        %3033 = vmatpush2.xpose.msra.mxu0 0.0
        %3034 = vmatprep.mubr.f32.mxu0 0.0
        %3035 = vmatmul.mubr.f32.gmra.mxu0 %v2966
        %v3036 = vpop.f32.mrf.mxu0
        %v3037 = vadd.f32 0.0, %v3036
        %v3038 = vpop.f32.mrf.mxu0
        %3039 = vdwg.mxu0
        %3041 = vrot.lane.b32.xlu0 %v2599, 120
        %v3042 = vpop.permute.xlu0 %3041
        %v3044 = vsel %vm1575, %v2958, 0
        %v3046 = vsel %vm1575, %v3042, 0
        %3048 = vmatprep.subr.mxu0 0.0
        %3049 = vmatpush1.xpose.msra.mxu0 0.0
        %3050 = vmatprep.subr.mxu0 0.0
        %3051 = vmatpush1.xpose.msra.mxu0 0.0
        %3052 = vmatprep.subr.mxu0 0.0
        %3053 = vmatpush1.xpose.msra.mxu0 0.0
        %3054 = vmatprep.subr.mxu0 0.0
        %3055 = vmatpush1.xpose.msra.mxu0 0.0
        %3056 = vmatprep.subr.mxu0 0.0
        %3057 = vmatpush1.xpose.msra.mxu0 0.0
        %3058 = vmatprep.subr.mxu0 0.0
        %3059 = vmatpush1.xpose.msra.mxu0 0.0
        %3060 = vmatprep.subr.mxu0 0.0
        %3061 = vmatpush1.xpose.msra.mxu0 0.0
        %3062 = vmatprep.subr.mxu0 0.0
        %3063 = vmatpush1.xpose.msra.mxu0 0.0
        %3064 = vmatprep.subr.mxu0 0.0
        %3065 = vmatpush1.xpose.msra.mxu0 0.0
        %3066 = vmatprep.subr.mxu0 0.0
        %3067 = vmatpush1.xpose.msra.mxu0 0.0
        %3068 = vmatprep.subr.mxu0 0.0
        %3069 = vmatpush1.xpose.msra.mxu0 0.0
        %3070 = vmatprep.subr.mxu0 0.0
        %3071 = vmatpush1.xpose.msra.mxu0 0.0
        %3072 = vmatprep.subr.mxu0 0.0
        %3073 = vmatpush1.xpose.msra.mxu0 0.0
        %3074 = vmatprep.subr.mxu0 0.0
        %3075 = vmatpush1.xpose.msra.mxu0 0.0
        %3076 = vmatprep.subr.mxu0 0.0
        %3077 = vmatpush1.xpose.msra.mxu0 0.0
        %3078 = vmatprep.subr.mxu0 0.0
        %3079 = vmatpush1.xpose.msra.mxu0 %v3046
        %3080 = vmatprep.subr.mxu0 0.0
        %3081 = vmatpush2.xpose.msra.mxu0 0.0
        %3082 = vmatprep.subr.mxu0 0.0
        %3083 = vmatpush2.xpose.msra.mxu0 0.0
        %3084 = vmatprep.subr.mxu0 0.0
        %3085 = vmatpush2.xpose.msra.mxu0 0.0
        %3086 = vmatprep.subr.mxu0 0.0
        %3087 = vmatpush2.xpose.msra.mxu0 0.0
        %3088 = vmatprep.subr.mxu0 0.0
        %3089 = vmatpush2.xpose.msra.mxu0 0.0
        %3090 = vmatprep.subr.mxu0 0.0
        %3091 = vmatpush2.xpose.msra.mxu0 0.0
        %3092 = vmatprep.subr.mxu0 0.0
        %3093 = vmatpush2.xpose.msra.mxu0 0.0
        %3094 = vmatprep.subr.mxu0 0.0
        %3095 = vmatpush2.xpose.msra.mxu0 0.0
        %3096 = vmatprep.subr.mxu0 0.0
        %3097 = vmatpush2.xpose.msra.mxu0 0.0
        %3098 = vmatprep.subr.mxu0 0.0
        %3099 = vmatpush2.xpose.msra.mxu0 0.0
        %3100 = vmatprep.subr.mxu0 0.0
        %3101 = vmatpush2.xpose.msra.mxu0 0.0
        %3102 = vmatprep.subr.mxu0 0.0
        %3103 = vmatpush2.xpose.msra.mxu0 0.0
        %3104 = vmatprep.subr.mxu0 0.0
        %3105 = vmatpush2.xpose.msra.mxu0 0.0
        %3106 = vmatprep.subr.mxu0 0.0
        %3107 = vmatpush2.xpose.msra.mxu0 0.0
        %3108 = vmatprep.subr.mxu0 0.0
        %3109 = vmatpush2.xpose.msra.mxu0 0.0
        %3110 = vmatprep.subr.mxu0 0.0
        %3111 = vmatpush2.xpose.msra.mxu0 0.0
        %3112 = vmatprep.mubr.f32.mxu0 0.0
        %3113 = vmatmul.mubr.f32.gmra.mxu0 %v3044
        %v3114 = vpop.f32.mrf.mxu0
        %v3115 = vadd.f32 0.0, %v3114
        %v3116 = vpop.f32.mrf.mxu0
        %3117 = vdwg.mxu0
        %3119 = vrot.lane.b32.xlu0 %v2600, 120
        %v3120 = vpop.permute.xlu0 %3119
        %v3122 = vsel %vm1575, %v2941, 0
        %v3124 = vsel %vm1575, %v3120, 0
        %3126 = vmatprep.subr.mxu0 0.0
        %3127 = vmatpush1.xpose.msra.mxu0 0.0
        %3128 = vmatprep.subr.mxu0 0.0
        %3129 = vmatpush1.xpose.msra.mxu0 0.0
        %3130 = vmatprep.subr.mxu0 0.0
        %3131 = vmatpush1.xpose.msra.mxu0 0.0
        %3132 = vmatprep.subr.mxu0 0.0
        %3133 = vmatpush1.xpose.msra.mxu0 0.0
        %3134 = vmatprep.subr.mxu0 0.0
        %3135 = vmatpush1.xpose.msra.mxu0 0.0
        %3136 = vmatprep.subr.mxu0 0.0
        %3137 = vmatpush1.xpose.msra.mxu0 0.0
        %3138 = vmatprep.subr.mxu0 0.0
        %3139 = vmatpush1.xpose.msra.mxu0 0.0
        %3140 = vmatprep.subr.mxu0 0.0
        %3141 = vmatpush1.xpose.msra.mxu0 0.0
        %3142 = vmatprep.subr.mxu0 0.0
        %3143 = vmatpush1.xpose.msra.mxu0 0.0
        %3144 = vmatprep.subr.mxu0 0.0
        %3145 = vmatpush1.xpose.msra.mxu0 0.0
        %3146 = vmatprep.subr.mxu0 0.0
        %3147 = vmatpush1.xpose.msra.mxu0 0.0
        %3148 = vmatprep.subr.mxu0 0.0
        %3149 = vmatpush1.xpose.msra.mxu0 0.0
        %3150 = vmatprep.subr.mxu0 0.0
        %3151 = vmatpush1.xpose.msra.mxu0 0.0
        %3152 = vmatprep.subr.mxu0 0.0
        %3153 = vmatpush1.xpose.msra.mxu0 0.0
        %3154 = vmatprep.subr.mxu0 0.0
        %3155 = vmatpush1.xpose.msra.mxu0 0.0
        %3156 = vmatprep.subr.mxu0 0.0
        %3157 = vmatpush1.xpose.msra.mxu0 %v3124
        %3158 = vmatprep.subr.mxu0 0.0
        %3159 = vmatpush2.xpose.msra.mxu0 0.0
        %3160 = vmatprep.subr.mxu0 0.0
        %3161 = vmatpush2.xpose.msra.mxu0 0.0
        %3162 = vmatprep.subr.mxu0 0.0
        %3163 = vmatpush2.xpose.msra.mxu0 0.0
        %3164 = vmatprep.subr.mxu0 0.0
        %3165 = vmatpush2.xpose.msra.mxu0 0.0
        %3166 = vmatprep.subr.mxu0 0.0
        %3167 = vmatpush2.xpose.msra.mxu0 0.0
        %3168 = vmatprep.subr.mxu0 0.0
        %3169 = vmatpush2.xpose.msra.mxu0 0.0
        %3170 = vmatprep.subr.mxu0 0.0
        %3171 = vmatpush2.xpose.msra.mxu0 0.0
        %3172 = vmatprep.subr.mxu0 0.0
        %3173 = vmatpush2.xpose.msra.mxu0 0.0
        %3174 = vmatprep.subr.mxu0 0.0
        %3175 = vmatpush2.xpose.msra.mxu0 0.0
        %3176 = vmatprep.subr.mxu0 0.0
        %3177 = vmatpush2.xpose.msra.mxu0 0.0
        %3178 = vmatprep.subr.mxu0 0.0
        %3179 = vmatpush2.xpose.msra.mxu0 0.0
        %3180 = vmatprep.subr.mxu0 0.0
        %3181 = vmatpush2.xpose.msra.mxu0 0.0
        %3182 = vmatprep.subr.mxu0 0.0
        %3183 = vmatpush2.xpose.msra.mxu0 0.0
        %3184 = vmatprep.subr.mxu0 0.0
        %3185 = vmatpush2.xpose.msra.mxu0 0.0
        %3186 = vmatprep.subr.mxu0 0.0
        %3187 = vmatpush2.xpose.msra.mxu0 0.0
        %3188 = vmatprep.subr.mxu0 0.0
        %3189 = vmatpush2.xpose.msra.mxu0 0.0
        %3190 = vmatprep.mubr.f32.mxu0 0.0
        %3191 = vmatmul.mubr.f32.gmra.mxu0 %v3122
        %v3192 = vpop.f32.mrf.mxu0
        %v3193 = vadd.f32 0.0, %v3192
        %v3194 = vpop.f32.mrf.mxu0
        %3195 = vdwg.mxu0
        %3197 = vrot.lane.b32.xlu0 %v2601, 120
        %v3198 = vpop.permute.xlu0 %3197
        %v3200 = vsel %vm1575, %v2959, 0
        %v3202 = vsel %vm1575, %v3198, 0
        %3204 = vmatprep.subr.mxu0 0.0
        %3205 = vmatpush1.xpose.msra.mxu0 0.0
        %3206 = vmatprep.subr.mxu0 0.0
        %3207 = vmatpush1.xpose.msra.mxu0 0.0
        %3208 = vmatprep.subr.mxu0 0.0
        %3209 = vmatpush1.xpose.msra.mxu0 0.0
        %3210 = vmatprep.subr.mxu0 0.0
        %3211 = vmatpush1.xpose.msra.mxu0 0.0
        %3212 = vmatprep.subr.mxu0 0.0
        %3213 = vmatpush1.xpose.msra.mxu0 0.0
        %3214 = vmatprep.subr.mxu0 0.0
        %3215 = vmatpush1.xpose.msra.mxu0 0.0
        %3216 = vmatprep.subr.mxu0 0.0
        %3217 = vmatpush1.xpose.msra.mxu0 0.0
        %3218 = vmatprep.subr.mxu0 0.0
        %3219 = vmatpush1.xpose.msra.mxu0 0.0
        %3220 = vmatprep.subr.mxu0 0.0
        %3221 = vmatpush1.xpose.msra.mxu0 0.0
        %3222 = vmatprep.subr.mxu0 0.0
        %3223 = vmatpush1.xpose.msra.mxu0 0.0
        %3224 = vmatprep.subr.mxu0 0.0
        %3225 = vmatpush1.xpose.msra.mxu0 0.0
        %3226 = vmatprep.subr.mxu0 0.0
        %3227 = vmatpush1.xpose.msra.mxu0 0.0
        %3228 = vmatprep.subr.mxu0 0.0
        %3229 = vmatpush1.xpose.msra.mxu0 0.0
        %3230 = vmatprep.subr.mxu0 0.0
        %3231 = vmatpush1.xpose.msra.mxu0 0.0
        %3232 = vmatprep.subr.mxu0 0.0
        %3233 = vmatpush1.xpose.msra.mxu0 0.0
        %3234 = vmatprep.subr.mxu0 0.0
        %3235 = vmatpush1.xpose.msra.mxu0 %v3202
        %3236 = vmatprep.subr.mxu0 0.0
        %3237 = vmatpush2.xpose.msra.mxu0 0.0
        %3238 = vmatprep.subr.mxu0 0.0
        %3239 = vmatpush2.xpose.msra.mxu0 0.0
        %3240 = vmatprep.subr.mxu0 0.0
        %3241 = vmatpush2.xpose.msra.mxu0 0.0
        %3242 = vmatprep.subr.mxu0 0.0
        %3243 = vmatpush2.xpose.msra.mxu0 0.0
        %3244 = vmatprep.subr.mxu0 0.0
        %3245 = vmatpush2.xpose.msra.mxu0 0.0
        %3246 = vmatprep.subr.mxu0 0.0
        %3247 = vmatpush2.xpose.msra.mxu0 0.0
        %3248 = vmatprep.subr.mxu0 0.0
        %3249 = vmatpush2.xpose.msra.mxu0 0.0
        %3250 = vmatprep.subr.mxu0 0.0
        %3251 = vmatpush2.xpose.msra.mxu0 0.0
        %3252 = vmatprep.subr.mxu0 0.0
        %3253 = vmatpush2.xpose.msra.mxu0 0.0
        %3254 = vmatprep.subr.mxu0 0.0
        %3255 = vmatpush2.xpose.msra.mxu0 0.0
        %3256 = vmatprep.subr.mxu0 0.0
        %3257 = vmatpush2.xpose.msra.mxu0 0.0
        %3258 = vmatprep.subr.mxu0 0.0
        %3259 = vmatpush2.xpose.msra.mxu0 0.0
        %3260 = vmatprep.subr.mxu0 0.0
        %3261 = vmatpush2.xpose.msra.mxu0 0.0
        %3262 = vmatprep.subr.mxu0 0.0
        %3263 = vmatpush2.xpose.msra.mxu0 0.0
        %3264 = vmatprep.subr.mxu0 0.0
        %3265 = vmatpush2.xpose.msra.mxu0 0.0
        %3266 = vmatprep.subr.mxu0 0.0
        %3267 = vmatpush2.xpose.msra.mxu0 0.0
        %3268 = vmatprep.mubr.f32.mxu0 0.0
        %3269 = vmatmul.mubr.f32.gmra.mxu0 %v3200
        %v3270 = vpop.f32.mrf.mxu0
        %v3271 = vadd.f32 0.0, %v3270
        %v3272 = vpop.f32.mrf.mxu0
        %3273 = vdwg.mxu0
        %3275 = vrot.lane.b32.xlu0 %v2602, 120
        %v3276 = vpop.permute.xlu0 %3275
        %v3278 = vsel %vm1575, %v2950, 0
        %v3280 = vsel %vm1575, %v3276, 0
        %3282 = vmatprep.subr.mxu0 0.0
        %3283 = vmatpush1.xpose.msra.mxu0 0.0
        %3284 = vmatprep.subr.mxu0 0.0
        %3285 = vmatpush1.xpose.msra.mxu0 0.0
        %3286 = vmatprep.subr.mxu0 0.0
        %3287 = vmatpush1.xpose.msra.mxu0 0.0
        %3288 = vmatprep.subr.mxu0 0.0
        %3289 = vmatpush1.xpose.msra.mxu0 0.0
        %3290 = vmatprep.subr.mxu0 0.0
        %3291 = vmatpush1.xpose.msra.mxu0 0.0
        %3292 = vmatprep.subr.mxu0 0.0
        %3293 = vmatpush1.xpose.msra.mxu0 0.0
        %3294 = vmatprep.subr.mxu0 0.0
        %3295 = vmatpush1.xpose.msra.mxu0 0.0
        %3296 = vmatprep.subr.mxu0 0.0
        %3297 = vmatpush1.xpose.msra.mxu0 0.0
        %3298 = vmatprep.subr.mxu0 0.0
        %3299 = vmatpush1.xpose.msra.mxu0 0.0
        %3300 = vmatprep.subr.mxu0 0.0
        %3301 = vmatpush1.xpose.msra.mxu0 0.0
        %3302 = vmatprep.subr.mxu0 0.0
        %3303 = vmatpush1.xpose.msra.mxu0 0.0
        %3304 = vmatprep.subr.mxu0 0.0
        %3305 = vmatpush1.xpose.msra.mxu0 0.0
        %3306 = vmatprep.subr.mxu0 0.0
        %3307 = vmatpush1.xpose.msra.mxu0 0.0
        %3308 = vmatprep.subr.mxu0 0.0
        %3309 = vmatpush1.xpose.msra.mxu0 0.0
        %3310 = vmatprep.subr.mxu0 0.0
        %3311 = vmatpush1.xpose.msra.mxu0 0.0
        %3312 = vmatprep.subr.mxu0 0.0
        %3313 = vmatpush1.xpose.msra.mxu0 %v3280
        %3314 = vmatprep.subr.mxu0 0.0
        %3315 = vmatpush2.xpose.msra.mxu0 0.0
        %3316 = vmatprep.subr.mxu0 0.0
        %3317 = vmatpush2.xpose.msra.mxu0 0.0
        %3318 = vmatprep.subr.mxu0 0.0
        %3319 = vmatpush2.xpose.msra.mxu0 0.0
        %3320 = vmatprep.subr.mxu0 0.0
        %3321 = vmatpush2.xpose.msra.mxu0 0.0
        %3322 = vmatprep.subr.mxu0 0.0
        %3323 = vmatpush2.xpose.msra.mxu0 0.0
        %3324 = vmatprep.subr.mxu0 0.0
        %3325 = vmatpush2.xpose.msra.mxu0 0.0
        %3326 = vmatprep.subr.mxu0 0.0
        %3327 = vmatpush2.xpose.msra.mxu0 0.0
        %3328 = vmatprep.subr.mxu0 0.0
        %3329 = vmatpush2.xpose.msra.mxu0 0.0
        %3330 = vmatprep.subr.mxu0 0.0
        %3331 = vmatpush2.xpose.msra.mxu0 0.0
        %3332 = vmatprep.subr.mxu0 0.0
        %3333 = vmatpush2.xpose.msra.mxu0 0.0
        %3334 = vmatprep.subr.mxu0 0.0
        %3335 = vmatpush2.xpose.msra.mxu0 0.0
        %3336 = vmatprep.subr.mxu0 0.0
        %3337 = vmatpush2.xpose.msra.mxu0 0.0
        %3338 = vmatprep.subr.mxu0 0.0
        %3339 = vmatpush2.xpose.msra.mxu0 0.0
        %3340 = vmatprep.subr.mxu0 0.0
        %3341 = vmatpush2.xpose.msra.mxu0 0.0
        %3342 = vmatprep.subr.mxu0 0.0
        %3343 = vmatpush2.xpose.msra.mxu0 0.0
        %3344 = vmatprep.subr.mxu0 0.0
        %3345 = vmatpush2.xpose.msra.mxu0 0.0
        %3346 = vmatprep.mubr.f32.mxu0 0.0
        %3347 = vmatmul.mubr.f32.gmra.mxu0 %v3278
        %v3348 = vpop.f32.mrf.mxu0
        %v3349 = vadd.f32 0.0, %v3348
        %v3350 = vpop.f32.mrf.mxu0
        %3351 = vdwg.mxu0
        %3353 = vrot.lane.b32.xlu0 %v2603, 120
        %v3354 = vpop.permute.xlu0 %3353
        %v3356 = vsel %vm1575, %v2960, 0
        %v3358 = vsel %vm1575, %v3354, 0
        %3360 = vmatprep.subr.mxu0 0.0
        %3361 = vmatpush1.xpose.msra.mxu0 0.0
        %3362 = vmatprep.subr.mxu0 0.0
        %3363 = vmatpush1.xpose.msra.mxu0 0.0
        %3364 = vmatprep.subr.mxu0 0.0
        %3365 = vmatpush1.xpose.msra.mxu0 0.0
        %3366 = vmatprep.subr.mxu0 0.0
        %3367 = vmatpush1.xpose.msra.mxu0 0.0
        %3368 = vmatprep.subr.mxu0 0.0
        %3369 = vmatpush1.xpose.msra.mxu0 0.0
        %3370 = vmatprep.subr.mxu0 0.0
        %3371 = vmatpush1.xpose.msra.mxu0 0.0
        %3372 = vmatprep.subr.mxu0 0.0
        %3373 = vmatpush1.xpose.msra.mxu0 0.0
        %3374 = vmatprep.subr.mxu0 0.0
        %3375 = vmatpush1.xpose.msra.mxu0 0.0
        %3376 = vmatprep.subr.mxu0 0.0
        %3377 = vmatpush1.xpose.msra.mxu0 0.0
        %3378 = vmatprep.subr.mxu0 0.0
        %3379 = vmatpush1.xpose.msra.mxu0 0.0
        %3380 = vmatprep.subr.mxu0 0.0
        %3381 = vmatpush1.xpose.msra.mxu0 0.0
        %3382 = vmatprep.subr.mxu0 0.0
        %3383 = vmatpush1.xpose.msra.mxu0 0.0
        %3384 = vmatprep.subr.mxu0 0.0
        %3385 = vmatpush1.xpose.msra.mxu0 0.0
        %3386 = vmatprep.subr.mxu0 0.0
        %3387 = vmatpush1.xpose.msra.mxu0 0.0
        %3388 = vmatprep.subr.mxu0 0.0
        %3389 = vmatpush1.xpose.msra.mxu0 0.0
        %3390 = vmatprep.subr.mxu0 0.0
        %3391 = vmatpush1.xpose.msra.mxu0 %v3358
        %3392 = vmatprep.subr.mxu0 0.0
        %3393 = vmatpush2.xpose.msra.mxu0 0.0
        %3394 = vmatprep.subr.mxu0 0.0
        %3395 = vmatpush2.xpose.msra.mxu0 0.0
        %3396 = vmatprep.subr.mxu0 0.0
        %3397 = vmatpush2.xpose.msra.mxu0 0.0
        %3398 = vmatprep.subr.mxu0 0.0
        %3399 = vmatpush2.xpose.msra.mxu0 0.0
        %3400 = vmatprep.subr.mxu0 0.0
        %3401 = vmatpush2.xpose.msra.mxu0 0.0
        %3402 = vmatprep.subr.mxu0 0.0
        %3403 = vmatpush2.xpose.msra.mxu0 0.0
        %3404 = vmatprep.subr.mxu0 0.0
        %3405 = vmatpush2.xpose.msra.mxu0 0.0
        %3406 = vmatprep.subr.mxu0 0.0
        %3407 = vmatpush2.xpose.msra.mxu0 0.0
        %3408 = vmatprep.subr.mxu0 0.0
        %3409 = vmatpush2.xpose.msra.mxu0 0.0
        %3410 = vmatprep.subr.mxu0 0.0
        %3411 = vmatpush2.xpose.msra.mxu0 0.0
        %3412 = vmatprep.subr.mxu0 0.0
        %3413 = vmatpush2.xpose.msra.mxu0 0.0
        %3414 = vmatprep.subr.mxu0 0.0
        %3415 = vmatpush2.xpose.msra.mxu0 0.0
        %3416 = vmatprep.subr.mxu0 0.0
        %3417 = vmatpush2.xpose.msra.mxu0 0.0
        %3418 = vmatprep.subr.mxu0 0.0
        %3419 = vmatpush2.xpose.msra.mxu0 0.0
        %3420 = vmatprep.subr.mxu0 0.0
        %3421 = vmatpush2.xpose.msra.mxu0 0.0
        %3422 = vmatprep.subr.mxu0 0.0
        %3423 = vmatpush2.xpose.msra.mxu0 0.0
        %3424 = vmatprep.mubr.f32.mxu0 0.0
        %3425 = vmatmul.mubr.f32.gmra.mxu0 %v3356
        %v3426 = vpop.f32.mrf.mxu0
        %v3427 = vadd.f32 0.0, %v3426
        %v3428 = vpop.f32.mrf.mxu0
        %3429 = vdwg.mxu0
        %3431 = vrot.lane.b32.xlu0 %v2604, 120
        %v3432 = vpop.permute.xlu0 %3431
        %v3434 = vsel %vm1575, %v2957, 0
        %v3436 = vsel %vm1575, %v3432, 0
        %3438 = vmatprep.subr.mxu0 0.0
        %3439 = vmatpush1.xpose.msra.mxu0 0.0
        %3440 = vmatprep.subr.mxu0 0.0
        %3441 = vmatpush1.xpose.msra.mxu0 0.0
        %3442 = vmatprep.subr.mxu0 0.0
        %3443 = vmatpush1.xpose.msra.mxu0 0.0
        %3444 = vmatprep.subr.mxu0 0.0
        %3445 = vmatpush1.xpose.msra.mxu0 0.0
        %3446 = vmatprep.subr.mxu0 0.0
        %3447 = vmatpush1.xpose.msra.mxu0 0.0
        %3448 = vmatprep.subr.mxu0 0.0
        %3449 = vmatpush1.xpose.msra.mxu0 0.0
        %3450 = vmatprep.subr.mxu0 0.0
        %3451 = vmatpush1.xpose.msra.mxu0 0.0
        %3452 = vmatprep.subr.mxu0 0.0
        %3453 = vmatpush1.xpose.msra.mxu0 0.0
        %3454 = vmatprep.subr.mxu0 0.0
        %3455 = vmatpush1.xpose.msra.mxu0 0.0
        %3456 = vmatprep.subr.mxu0 0.0
        %3457 = vmatpush1.xpose.msra.mxu0 0.0
        %3458 = vmatprep.subr.mxu0 0.0
        %3459 = vmatpush1.xpose.msra.mxu0 0.0
        %3460 = vmatprep.subr.mxu0 0.0
        %3461 = vmatpush1.xpose.msra.mxu0 0.0
        %3462 = vmatprep.subr.mxu0 0.0
        %3463 = vmatpush1.xpose.msra.mxu0 0.0
        %3464 = vmatprep.subr.mxu0 0.0
        %3465 = vmatpush1.xpose.msra.mxu0 0.0
        %3466 = vmatprep.subr.mxu0 0.0
        %3467 = vmatpush1.xpose.msra.mxu0 0.0
        %3468 = vmatprep.subr.mxu0 0.0
        %3469 = vmatpush1.xpose.msra.mxu0 %v3436
        %3470 = vmatprep.subr.mxu0 0.0
        %3471 = vmatpush2.xpose.msra.mxu0 0.0
        %3472 = vmatprep.subr.mxu0 0.0
        %3473 = vmatpush2.xpose.msra.mxu0 0.0
        %3474 = vmatprep.subr.mxu0 0.0
        %3475 = vmatpush2.xpose.msra.mxu0 0.0
        %3476 = vmatprep.subr.mxu0 0.0
        %3477 = vmatpush2.xpose.msra.mxu0 0.0
        %3478 = vmatprep.subr.mxu0 0.0
        %3479 = vmatpush2.xpose.msra.mxu0 0.0
        %3480 = vmatprep.subr.mxu0 0.0
        %3481 = vmatpush2.xpose.msra.mxu0 0.0
        %3482 = vmatprep.subr.mxu0 0.0
        %3483 = vmatpush2.xpose.msra.mxu0 0.0
        %3484 = vmatprep.subr.mxu0 0.0
        %3485 = vmatpush2.xpose.msra.mxu0 0.0
        %3486 = vmatprep.subr.mxu0 0.0
        %3487 = vmatpush2.xpose.msra.mxu0 0.0
        %3488 = vmatprep.subr.mxu0 0.0
        %3489 = vmatpush2.xpose.msra.mxu0 0.0
        %3490 = vmatprep.subr.mxu0 0.0
        %3491 = vmatpush2.xpose.msra.mxu0 0.0
        %3492 = vmatprep.subr.mxu0 0.0
        %3493 = vmatpush2.xpose.msra.mxu0 0.0
        %3494 = vmatprep.subr.mxu0 0.0
        %3495 = vmatpush2.xpose.msra.mxu0 0.0
        %3496 = vmatprep.subr.mxu0 0.0
        %3497 = vmatpush2.xpose.msra.mxu0 0.0
        %3498 = vmatprep.subr.mxu0 0.0
        %3499 = vmatpush2.xpose.msra.mxu0 0.0
        %3500 = vmatprep.subr.mxu0 0.0
        %3501 = vmatpush2.xpose.msra.mxu0 0.0
        %3502 = vmatprep.mubr.f32.mxu0 0.0
        %3503 = vmatmul.mubr.f32.gmra.mxu0 %v3434
        %v3504 = vpop.f32.mrf.mxu0
        %v3505 = vadd.f32 0.0, %v3504
        %v3506 = vpop.f32.mrf.mxu0
        %3507 = vdwg.mxu0
        %3509 = vrot.lane.b32.xlu0 %v2605, 120
        %v3510 = vpop.permute.xlu0 %3509
        %v3512 = vsel %vm1575, %v2961, 0
        %v3514 = vsel %vm1575, %v3510, 0
        %3516 = vmatprep.subr.mxu0 0.0
        %3517 = vmatpush1.xpose.msra.mxu0 0.0
        %3518 = vmatprep.subr.mxu0 0.0
        %3519 = vmatpush1.xpose.msra.mxu0 0.0
        %3520 = vmatprep.subr.mxu0 0.0
        %3521 = vmatpush1.xpose.msra.mxu0 0.0
        %3522 = vmatprep.subr.mxu0 0.0
        %3523 = vmatpush1.xpose.msra.mxu0 0.0
        %3524 = vmatprep.subr.mxu0 0.0
        %3525 = vmatpush1.xpose.msra.mxu0 0.0
        %3526 = vmatprep.subr.mxu0 0.0
        %3527 = vmatpush1.xpose.msra.mxu0 0.0
        %3528 = vmatprep.subr.mxu0 0.0
        %3529 = vmatpush1.xpose.msra.mxu0 0.0
        %3530 = vmatprep.subr.mxu0 0.0
        %3531 = vmatpush1.xpose.msra.mxu0 0.0
        %3532 = vmatprep.subr.mxu0 0.0
        %3533 = vmatpush1.xpose.msra.mxu0 0.0
        %3534 = vmatprep.subr.mxu0 0.0
        %3535 = vmatpush1.xpose.msra.mxu0 0.0
        %3536 = vmatprep.subr.mxu0 0.0
        %3537 = vmatpush1.xpose.msra.mxu0 0.0
        %3538 = vmatprep.subr.mxu0 0.0
        %3539 = vmatpush1.xpose.msra.mxu0 0.0
        %3540 = vmatprep.subr.mxu0 0.0
        %3541 = vmatpush1.xpose.msra.mxu0 0.0
        %3542 = vmatprep.subr.mxu0 0.0
        %3543 = vmatpush1.xpose.msra.mxu0 0.0
        %3544 = vmatprep.subr.mxu0 0.0
        %3545 = vmatpush1.xpose.msra.mxu0 0.0
        %3546 = vmatprep.subr.mxu0 0.0
        %3547 = vmatpush1.xpose.msra.mxu0 %v3514
        %3548 = vmatprep.subr.mxu0 0.0
        %3549 = vmatpush2.xpose.msra.mxu0 0.0
        %3550 = vmatprep.subr.mxu0 0.0
        %3551 = vmatpush2.xpose.msra.mxu0 0.0
        %3552 = vmatprep.subr.mxu0 0.0
        %3553 = vmatpush2.xpose.msra.mxu0 0.0
        %3554 = vmatprep.subr.mxu0 0.0
        %3555 = vmatpush2.xpose.msra.mxu0 0.0
        %3556 = vmatprep.subr.mxu0 0.0
        %3557 = vmatpush2.xpose.msra.mxu0 0.0
        %3558 = vmatprep.subr.mxu0 0.0
        %3559 = vmatpush2.xpose.msra.mxu0 0.0
        %3560 = vmatprep.subr.mxu0 0.0
        %3561 = vmatpush2.xpose.msra.mxu0 0.0
        %3562 = vmatprep.subr.mxu0 0.0
        %3563 = vmatpush2.xpose.msra.mxu0 0.0
        %3564 = vmatprep.subr.mxu0 0.0
        %3565 = vmatpush2.xpose.msra.mxu0 0.0
        %3566 = vmatprep.subr.mxu0 0.0
        %3567 = vmatpush2.xpose.msra.mxu0 0.0
        %3568 = vmatprep.subr.mxu0 0.0
        %3569 = vmatpush2.xpose.msra.mxu0 0.0
        %3570 = vmatprep.subr.mxu0 0.0
        %3571 = vmatpush2.xpose.msra.mxu0 0.0
        %3572 = vmatprep.subr.mxu0 0.0
        %3573 = vmatpush2.xpose.msra.mxu0 0.0
        %3574 = vmatprep.subr.mxu0 0.0
        %3575 = vmatpush2.xpose.msra.mxu0 0.0
        %3576 = vmatprep.subr.mxu0 0.0
        %3577 = vmatpush2.xpose.msra.mxu0 0.0
        %3578 = vmatprep.subr.mxu0 0.0
        %3579 = vmatpush2.xpose.msra.mxu0 0.0
        %3580 = vmatprep.mubr.f32.mxu0 0.0
        %3581 = vmatmul.mubr.f32.gmra.mxu0 %v3512
        %v3582 = vpop.f32.mrf.mxu0
        %v3583 = vadd.f32 0.0, %v3582
        %v3584 = vpop.f32.mrf.mxu0
        %3585 = vdwg.mxu0
        %v3586 = vcombine.low %v3037, %v3193
        %v3588 = vunpack.c.l.s4 1983009808
        %v3589 = vunpack.c.0.s8 %v3588
        %v3590 = vlaneseq
        %v3591 = vshrl.u32 %v3590, 7
        %v3592 = vsub.s32 %v3589, %v3591
        %v3593 = vrot.slane %v3586, %v3592
        %v3594 = vcombine.low %v3115, %v3271
        %v3596 = vunpack.c.l.s4 1983009808
        %v3597 = vunpack.c.0.s8 %v3596
        %v3598 = vlaneseq
        %v3599 = vshrl.u32 %v3598, 7
        %v3600 = vsub.s32 %v3597, %v3599
        %v3601 = vrot.slane %v3594, %v3600
        %v3602 = vcombine.low %v3349, %v3505
        %v3604 = vunpack.c.l.s4 1983009808
        %v3605 = vunpack.c.0.s8 %v3604
        %v3606 = vlaneseq
        %v3607 = vshrl.u32 %v3606, 7
        %v3608 = vsub.s32 %v3605, %v3607
        %v3609 = vrot.slane %v3602, %v3608
        %v3610 = vcombine.low %v3427, %v3583
        %v3612 = vunpack.c.l.s4 1983009808
        %v3613 = vunpack.c.0.s8 %v3612
        %v3614 = vlaneseq
        %v3615 = vshrl.u32 %v3614, 7
        %v3616 = vsub.s32 %v3613, %v3615
        %v3617 = vrot.slane %v3610, %v3616
        %v3618 = vcombine.low %v3593, %v3601
        %v3619 = vcombine.high %v3593, %v3601
        %v3621 = vunpack.c.l.s4 1934713408
        %v3622 = vunpack.c.0.s8 %v3621
        %v3623 = vlaneseq
        %v3624 = vshrl.u32 %v3623, 7
        %v3625 = vsub.s32 %v3622, %v3624
        %v3626 = vrot.slane %v3618, %v3625
        %v3628 = vunpack.c.l.s4 1934713408
        %v3629 = vunpack.c.0.s8 %v3628
        %v3630 = vlaneseq
        %v3631 = vshrl.u32 %v3630, 7
        %v3632 = vsub.s32 %v3629, %v3631
        %v3633 = vrot.slane %v3619, %v3632
        %v3634 = vcombine.low %v3609, %v3617
        %v3635 = vcombine.high %v3609, %v3617
        %v3637 = vunpack.c.l.s4 1934713408
        %v3638 = vunpack.c.0.s8 %v3637
        %v3639 = vlaneseq
        %v3640 = vshrl.u32 %v3639, 7
        %v3641 = vsub.s32 %v3638, %v3640
        %v3642 = vrot.slane %v3634, %v3641
        %v3644 = vunpack.c.l.s4 1934713408
        %v3645 = vunpack.c.0.s8 %v3644
        %v3646 = vlaneseq
        %v3647 = vshrl.u32 %v3646, 7
        %v3648 = vsub.s32 %v3645, %v3647
        %v3649 = vrot.slane %v3635, %v3648
        %v3650 = vcombine.low %v3626, %v3642
        %v3651 = vcombine.high %v3626, %v3642
        %v3652 = vcombine.low %v3633, %v3649
        %v3653 = vcombine.high %v3633, %v3649
        %v3654 = vcombine.high %v3650, 0.0
        %v3656 = vunpack.c.l.s4 1983009808
        %v3657 = vunpack.c.0.s8 %v3656
        %v3658 = vlaneseq
        %v3659 = vshrl.u32 %v3658, 7
        %v3660 = vsub.s32 %v3657, %v3659
        %v3661 = vrot.slane %v3650, %v3660
        %v3663 = vunpack.c.l.s4 1983009808
        %v3664 = vunpack.c.0.s8 %v3663
        %v3665 = vlaneseq
        %v3666 = vshrl.u32 %v3665, 7
        %v3667 = vsub.s32 %v3664, %v3666
        %v3668 = vrot.slane %v3654, %v3667
        %v3669 = vcombine.high %v3661, 0.0
        %v3671 = vunpack.c.l.s4 1934713408
        %v3672 = vunpack.c.0.s8 %v3671
        %v3673 = vlaneseq
        %v3674 = vshrl.u32 %v3673, 7
        %v3675 = vsub.s32 %v3672, %v3674
        %v3676 = vrot.slane %v3661, %v3675
        %v3678 = vunpack.c.l.s4 1934713408
        %v3679 = vunpack.c.0.s8 %v3678
        %v3680 = vlaneseq
        %v3681 = vshrl.u32 %v3680, 7
        %v3682 = vsub.s32 %v3679, %v3681
        %v3683 = vrot.slane %v3669, %v3682
        %v3684 = vcombine.high %v3668, 0.0
        %v3686 = vunpack.c.l.s4 1934713408
        %v3687 = vunpack.c.0.s8 %v3686
        %v3688 = vlaneseq
        %v3689 = vshrl.u32 %v3688, 7
        %v3690 = vsub.s32 %v3687, %v3689
        %v3691 = vrot.slane %v3668, %v3690
        %v3693 = vunpack.c.l.s4 1934713408
        %v3694 = vunpack.c.0.s8 %v3693
        %v3695 = vlaneseq
        %v3696 = vshrl.u32 %v3695, 7
        %v3697 = vsub.s32 %v3694, %v3696
        %v3698 = vrot.slane %v3684, %v3697
        %v3699 = vcombine.high %v3676, 0.0
        %v3700 = vcombine.high %v3683, 0.0
        %v3701 = vcombine.high %v3691, 0.0
        %v3702 = vcombine.high %v3698, 0.0
        %v3703 = vcombine.high %v3651, 0.0
        %v3705 = vunpack.c.l.s4 1983009808
        %v3706 = vunpack.c.0.s8 %v3705
        %v3707 = vlaneseq
        %v3708 = vshrl.u32 %v3707, 7
        %v3709 = vsub.s32 %v3706, %v3708
        %v3710 = vrot.slane %v3651, %v3709
        %v3712 = vunpack.c.l.s4 1983009808
        %v3713 = vunpack.c.0.s8 %v3712
        %v3714 = vlaneseq
        %v3715 = vshrl.u32 %v3714, 7
        %v3716 = vsub.s32 %v3713, %v3715
        %v3717 = vrot.slane %v3703, %v3716
        %v3718 = vcombine.high %v3710, 0.0
        %v3720 = vunpack.c.l.s4 1934713408
        %v3721 = vunpack.c.0.s8 %v3720
        %v3722 = vlaneseq
        %v3723 = vshrl.u32 %v3722, 7
        %v3724 = vsub.s32 %v3721, %v3723
        %v3725 = vrot.slane %v3710, %v3724
        %v3727 = vunpack.c.l.s4 1934713408
        %v3728 = vunpack.c.0.s8 %v3727
        %v3729 = vlaneseq
        %v3730 = vshrl.u32 %v3729, 7
        %v3731 = vsub.s32 %v3728, %v3730
        %v3732 = vrot.slane %v3718, %v3731
        %v3733 = vcombine.high %v3717, 0.0
        %v3735 = vunpack.c.l.s4 1934713408
        %v3736 = vunpack.c.0.s8 %v3735
        %v3737 = vlaneseq
        %v3738 = vshrl.u32 %v3737, 7
        %v3739 = vsub.s32 %v3736, %v3738
        %v3740 = vrot.slane %v3717, %v3739
        %v3742 = vunpack.c.l.s4 1934713408
        %v3743 = vunpack.c.0.s8 %v3742
        %v3744 = vlaneseq
        %v3745 = vshrl.u32 %v3744, 7
        %v3746 = vsub.s32 %v3743, %v3745
        %v3747 = vrot.slane %v3733, %v3746
        %v3748 = vcombine.high %v3725, 0.0
        %v3749 = vcombine.high %v3732, 0.0
        %v3750 = vcombine.high %v3740, 0.0
        %v3751 = vcombine.high %v3747, 0.0
        %v3752 = vcombine.high %v3652, 0.0
        %v3754 = vunpack.c.l.s4 1983009808
        %v3755 = vunpack.c.0.s8 %v3754
        %v3756 = vlaneseq
        %v3757 = vshrl.u32 %v3756, 7
        %v3758 = vsub.s32 %v3755, %v3757
        %v3759 = vrot.slane %v3652, %v3758
        %v3761 = vunpack.c.l.s4 1983009808
        %v3762 = vunpack.c.0.s8 %v3761
        %v3763 = vlaneseq
        %v3764 = vshrl.u32 %v3763, 7
        %v3765 = vsub.s32 %v3762, %v3764
        %v3766 = vrot.slane %v3752, %v3765
        %v3767 = vcombine.high %v3759, 0.0
        %v3769 = vunpack.c.l.s4 1934713408
        %v3770 = vunpack.c.0.s8 %v3769
        %v3771 = vlaneseq
        %v3772 = vshrl.u32 %v3771, 7
        %v3773 = vsub.s32 %v3770, %v3772
        %v3774 = vrot.slane %v3759, %v3773
        %v3776 = vunpack.c.l.s4 1934713408
        %v3777 = vunpack.c.0.s8 %v3776
        %v3778 = vlaneseq
        %v3779 = vshrl.u32 %v3778, 7
        %v3780 = vsub.s32 %v3777, %v3779
        %v3781 = vrot.slane %v3767, %v3780
        %v3782 = vcombine.high %v3766, 0.0
        %v3784 = vunpack.c.l.s4 1934713408
        %v3785 = vunpack.c.0.s8 %v3784
        %v3786 = vlaneseq
        %v3787 = vshrl.u32 %v3786, 7
        %v3788 = vsub.s32 %v3785, %v3787
        %v3789 = vrot.slane %v3766, %v3788
        %v3791 = vunpack.c.l.s4 1934713408
        %v3792 = vunpack.c.0.s8 %v3791
        %v3793 = vlaneseq
        %v3794 = vshrl.u32 %v3793, 7
        %v3795 = vsub.s32 %v3792, %v3794
        %v3796 = vrot.slane %v3782, %v3795
        %v3797 = vcombine.high %v3774, 0.0
        %v3798 = vcombine.high %v3781, 0.0
        %v3799 = vcombine.high %v3789, 0.0
        %v3800 = vcombine.high %v3796, 0.0
        %v3801 = vcombine.high %v3653, 0.0
        %v3803 = vunpack.c.l.s4 1983009808
        %v3804 = vunpack.c.0.s8 %v3803
        %v3805 = vlaneseq
        %v3806 = vshrl.u32 %v3805, 7
        %v3807 = vsub.s32 %v3804, %v3806
        %v3808 = vrot.slane %v3653, %v3807
        %v3810 = vunpack.c.l.s4 1983009808
        %v3811 = vunpack.c.0.s8 %v3810
        %v3812 = vlaneseq
        %v3813 = vshrl.u32 %v3812, 7
        %v3814 = vsub.s32 %v3811, %v3813
        %v3815 = vrot.slane %v3801, %v3814
        %v3816 = vcombine.high %v3808, 0.0
        %v3818 = vunpack.c.l.s4 1934713408
        %v3819 = vunpack.c.0.s8 %v3818
        %v3820 = vlaneseq
        %v3821 = vshrl.u32 %v3820, 7
        %v3822 = vsub.s32 %v3819, %v3821
        %v3823 = vrot.slane %v3808, %v3822
        %v3825 = vunpack.c.l.s4 1934713408
        %v3826 = vunpack.c.0.s8 %v3825
        %v3827 = vlaneseq
        %v3828 = vshrl.u32 %v3827, 7
        %v3829 = vsub.s32 %v3826, %v3828
        %v3830 = vrot.slane %v3816, %v3829
        %v3831 = vcombine.high %v3815, 0.0
        %v3833 = vunpack.c.l.s4 1934713408
        %v3834 = vunpack.c.0.s8 %v3833
        %v3835 = vlaneseq
        %v3836 = vshrl.u32 %v3835, 7
        %v3837 = vsub.s32 %v3834, %v3836
        %v3838 = vrot.slane %v3815, %v3837
        %v3840 = vunpack.c.l.s4 1934713408
        %v3841 = vunpack.c.0.s8 %v3840
        %v3842 = vlaneseq
        %v3843 = vshrl.u32 %v3842, 7
        %v3844 = vsub.s32 %v3841, %v3843
        %v3845 = vrot.slane %v3831, %v3844
        %v3846 = vcombine.high %v3823, 0.0
        %v3847 = vcombine.high %v3830, 0.0
        %v3848 = vcombine.high %v3838, 0.0
        %v3849 = vcombine.high %v3845, 0.0
        %3854 = vrot.lane.b32.xlu0 %v3699, 8
        %v3855 = vpop.permute.xlu0 %3854
        %3856 = vrot.lane.b32.xlu0 %v3748, 8
        %v3857 = vpop.permute.xlu0 %3856
        %3858 = vrot.lane.b32.xlu0 %v3797, 8
        %v3859 = vpop.permute.xlu0 %3858
        %3860 = vrot.lane.b32.xlu0 %v3846, 8
        %v3861 = vpop.permute.xlu0 %3860
        %3870 = vrot.lane.b32.xlu0 %v3683, 16
        %v3871 = vpop.permute.xlu0 %3870
        %3872 = vrot.lane.b32.xlu0 %v3732, 16
        %v3873 = vpop.permute.xlu0 %3872
        %3874 = vrot.lane.b32.xlu0 %v3781, 16
        %v3875 = vpop.permute.xlu0 %3874
        %3876 = vrot.lane.b32.xlu0 %v3830, 16
        %v3877 = vpop.permute.xlu0 %3876
        %3886 = vrot.lane.b32.xlu0 %v3700, 24
        %v3887 = vpop.permute.xlu0 %3886
        %3888 = vrot.lane.b32.xlu0 %v3749, 24
        %v3889 = vpop.permute.xlu0 %3888
        %3890 = vrot.lane.b32.xlu0 %v3798, 24
        %v3891 = vpop.permute.xlu0 %3890
        %3892 = vrot.lane.b32.xlu0 %v3847, 24
        %v3893 = vpop.permute.xlu0 %3892
        %3902 = vrot.lane.b32.xlu0 %v3691, 32
        %v3903 = vpop.permute.xlu0 %3902
        %3904 = vrot.lane.b32.xlu0 %v3740, 32
        %v3905 = vpop.permute.xlu0 %3904
        %3906 = vrot.lane.b32.xlu0 %v3789, 32
        %v3907 = vpop.permute.xlu0 %3906
        %3908 = vrot.lane.b32.xlu0 %v3838, 32
        %v3909 = vpop.permute.xlu0 %3908
        %3918 = vrot.lane.b32.xlu0 %v3701, 40
        %v3919 = vpop.permute.xlu0 %3918
        %3920 = vrot.lane.b32.xlu0 %v3750, 40
        %v3921 = vpop.permute.xlu0 %3920
        %3922 = vrot.lane.b32.xlu0 %v3799, 40
        %v3923 = vpop.permute.xlu0 %3922
        %3924 = vrot.lane.b32.xlu0 %v3848, 40
        %v3925 = vpop.permute.xlu0 %3924
        %3934 = vrot.lane.b32.xlu0 %v3698, 48
        %v3935 = vpop.permute.xlu0 %3934
        %3936 = vrot.lane.b32.xlu0 %v3747, 48
        %v3937 = vpop.permute.xlu0 %3936
        %3938 = vrot.lane.b32.xlu0 %v3796, 48
        %v3939 = vpop.permute.xlu0 %3938
        %3940 = vrot.lane.b32.xlu0 %v3845, 48
        %v3941 = vpop.permute.xlu0 %3940
        %3950 = vrot.lane.b32.xlu0 %v3702, 56
        %v3951 = vpop.permute.xlu0 %3950
        %3952 = vrot.lane.b32.xlu0 %v3751, 56
        %v3953 = vpop.permute.xlu0 %3952
        %3954 = vrot.lane.b32.xlu0 %v3800, 56
        %v3955 = vpop.permute.xlu0 %3954
        %3956 = vrot.lane.b32.xlu0 %v3849, 56
        %v3957 = vpop.permute.xlu0 %3956
        %v3962 = vsel %vm1575, %v3676, %v3855
        %v3963 = vsel %vm1575, %v3725, %v3857
        %v3964 = vsel %vm1575, %v3774, %v3859
        %v3965 = vsel %vm1575, %v3823, %v3861
        %v3966 = vsel %vm2564, %v3962, %v3871
        %v3967 = vsel %vm2564, %v3963, %v3873
        %v3968 = vsel %vm2564, %v3964, %v3875
        %v3969 = vsel %vm2564, %v3965, %v3877
        %v3970 = vsel %vm2569, %v3966, %v3887
        %v3971 = vsel %vm2569, %v3967, %v3889
        %v3972 = vsel %vm2569, %v3968, %v3891
        %v3973 = vsel %vm2569, %v3969, %v3893
        %v3974 = vsel %vm487, %v3970, %v3903
        %v3975 = vsel %vm487, %v3971, %v3905
        %v3976 = vsel %vm487, %v3972, %v3907
        %v3977 = vsel %vm487, %v3973, %v3909
        %v3978 = vsel %vm2578, %v3974, %v3919
        %v3979 = vsel %vm2578, %v3975, %v3921
        %v3980 = vsel %vm2578, %v3976, %v3923
        %v3981 = vsel %vm2578, %v3977, %v3925
        %v3982 = vsel %vm2583, %v3978, %v3935
        %v3983 = vsel %vm2583, %v3979, %v3937
        %v3984 = vsel %vm2583, %v3980, %v3939
        %v3985 = vsel %vm2583, %v3981, %v3941
        %v3986 = vsel %vm2588, %v3982, %v3951
        %v3987 = vsel %vm2588, %v3983, %v3953
        %v3988 = vsel %vm2588, %v3984, %v3955
        %v3989 = vsel %vm2588, %v3985, %v3957
        %3990 = vst.msk [vmem:[%s473 + $0x1] sm:$0x1] %vm2593, %v3986
        %3991 = vst.msk [vmem:[%s473 + $0x5] sm:$0x1] %vm2593, %v3987
        %3992 = vst.msk [vmem:[%s473 + $0x9] sm:$0x1] %vm2593, %v3988
        %3993 = vst.msk [vmem:[%s473 + $0xd] sm:$0x1] %vm2593, %v3989
        %v3994 = vld [vmem:[#allocation2] sm:$0xff]
        %v3995 = vld [vmem:[#allocation2 + $0x8] sm:$0xff]
        %v3996 = vld [vmem:[#allocation2 + $0x10] sm:$0xff]
        %v3997 = vld [vmem:[#allocation2 + $0x18] sm:$0xff]
        %v3998 = vld [vmem:[#allocation2 + $0x20] sm:$0xff]
        %v3999 = vld [vmem:[#allocation2 + $0x28] sm:$0xff]
        %v4000 = vld [vmem:[#allocation2 + $0x30] sm:$0xff]
        %v4001 = vld [vmem:[#allocation2 + $0x38] sm:$0xff]
        %v4002 = vld [vmem:[%s429 + $0x2] sm:$0x1]
        %v4003 = vld [vmem:[%s429 + $0x6] sm:$0x1]
        %v4004 = vld [vmem:[%s429 + $0xa] sm:$0x1]
        %v4005 = vld [vmem:[%s429 + $0xe] sm:$0x1]
        %4010 = vrot.lane.b32.xlu0 %v4002, 120
        %v4011 = vpop.permute.xlu0 %4010
        %4012 = vrot.lane.b32.xlu0 %v4003, 120
        %v4013 = vpop.permute.xlu0 %4012
        %4014 = vrot.lane.b32.xlu0 %v4004, 120
        %v4015 = vpop.permute.xlu0 %4014
        %4016 = vrot.lane.b32.xlu0 %v4005, 120
        %v4017 = vpop.permute.xlu0 %4016
        %4022 = vrot.lane.b32.xlu0 %v4002, 112
        %v4023 = vpop.permute.xlu0 %4022
        %4024 = vrot.lane.b32.xlu0 %v4003, 112
        %v4025 = vpop.permute.xlu0 %4024
        %4026 = vrot.lane.b32.xlu0 %v4004, 112
        %v4027 = vpop.permute.xlu0 %4026
        %4028 = vrot.lane.b32.xlu0 %v4005, 112
        %v4029 = vpop.permute.xlu0 %4028
        %4034 = vrot.lane.b32.xlu0 %v4002, 104
        %v4035 = vpop.permute.xlu0 %4034
        %4036 = vrot.lane.b32.xlu0 %v4003, 104
        %v4037 = vpop.permute.xlu0 %4036
        %4038 = vrot.lane.b32.xlu0 %v4004, 104
        %v4039 = vpop.permute.xlu0 %4038
        %4040 = vrot.lane.b32.xlu0 %v4005, 104
        %v4041 = vpop.permute.xlu0 %4040
        %4046 = vrot.lane.b32.xlu0 %v4002, 96
        %v4047 = vpop.permute.xlu0 %4046
        %4048 = vrot.lane.b32.xlu0 %v4003, 96
        %v4049 = vpop.permute.xlu0 %4048
        %4050 = vrot.lane.b32.xlu0 %v4004, 96
        %v4051 = vpop.permute.xlu0 %4050
        %4052 = vrot.lane.b32.xlu0 %v4005, 96
        %v4053 = vpop.permute.xlu0 %4052
        %4058 = vrot.lane.b32.xlu0 %v4002, 88
        %v4059 = vpop.permute.xlu0 %4058
        %4060 = vrot.lane.b32.xlu0 %v4003, 88
        %v4061 = vpop.permute.xlu0 %4060
        %4062 = vrot.lane.b32.xlu0 %v4004, 88
        %v4063 = vpop.permute.xlu0 %4062
        %4064 = vrot.lane.b32.xlu0 %v4005, 88
        %v4065 = vpop.permute.xlu0 %4064
        %4070 = vrot.lane.b32.xlu0 %v4002, 80
        %v4071 = vpop.permute.xlu0 %4070
        %4072 = vrot.lane.b32.xlu0 %v4003, 80
        %v4073 = vpop.permute.xlu0 %4072
        %4074 = vrot.lane.b32.xlu0 %v4004, 80
        %v4075 = vpop.permute.xlu0 %4074
        %4076 = vrot.lane.b32.xlu0 %v4005, 80
        %v4077 = vpop.permute.xlu0 %4076
        %4082 = vrot.lane.b32.xlu0 %v4002, 72
        %v4083 = vpop.permute.xlu0 %4082
        %4084 = vrot.lane.b32.xlu0 %v4003, 72
        %v4085 = vpop.permute.xlu0 %4084
        %4086 = vrot.lane.b32.xlu0 %v4004, 72
        %v4087 = vpop.permute.xlu0 %4086
        %4088 = vrot.lane.b32.xlu0 %v4005, 72
        %v4089 = vpop.permute.xlu0 %4088
        %v4094 = vcombine.low %v4002, %v4023
        %v4096 = vunpack.c.l.s4 1983009808
        %v4097 = vunpack.c.0.s8 %v4096
        %v4098 = vlaneseq
        %v4099 = vshrl.u32 %v4098, 7
        %v4100 = vsub.s32 %v4097, %v4099
        %v4101 = vrot.slane %v4094, %v4100
        %v4102 = vcombine.low %v4011, %v4035
        %v4104 = vunpack.c.l.s4 1983009808
        %v4105 = vunpack.c.0.s8 %v4104
        %v4106 = vlaneseq
        %v4107 = vshrl.u32 %v4106, 7
        %v4108 = vsub.s32 %v4105, %v4107
        %v4109 = vrot.slane %v4102, %v4108
        %v4110 = vcombine.low %v4047, %v4071
        %v4112 = vunpack.c.l.s4 1983009808
        %v4113 = vunpack.c.0.s8 %v4112
        %v4114 = vlaneseq
        %v4115 = vshrl.u32 %v4114, 7
        %v4116 = vsub.s32 %v4113, %v4115
        %v4117 = vrot.slane %v4110, %v4116
        %v4118 = vcombine.low %v4059, %v4083
        %v4120 = vunpack.c.l.s4 1983009808
        %v4121 = vunpack.c.0.s8 %v4120
        %v4122 = vlaneseq
        %v4123 = vshrl.u32 %v4122, 7
        %v4124 = vsub.s32 %v4121, %v4123
        %v4125 = vrot.slane %v4118, %v4124
        %v4126 = vcombine.low %v4101, %v4109
        %v4128 = vunpack.c.l.s4 1934713408
        %v4129 = vunpack.c.0.s8 %v4128
        %v4130 = vlaneseq
        %v4131 = vshrl.u32 %v4130, 7
        %v4132 = vsub.s32 %v4129, %v4131
        %v4133 = vrot.slane %v4126, %v4132
        %v4134 = vcombine.low %v4117, %v4125
        %v4136 = vunpack.c.l.s4 1934713408
        %v4137 = vunpack.c.0.s8 %v4136
        %v4138 = vlaneseq
        %v4139 = vshrl.u32 %v4138, 7
        %v4140 = vsub.s32 %v4137, %v4139
        %v4141 = vrot.slane %v4134, %v4140
        %v4142 = vcombine.low %v4133, %v4141
        %v4143 = vcombine.low %v4003, %v4025
        %v4145 = vunpack.c.l.s4 1983009808
        %v4146 = vunpack.c.0.s8 %v4145
        %v4147 = vlaneseq
        %v4148 = vshrl.u32 %v4147, 7
        %v4149 = vsub.s32 %v4146, %v4148
        %v4150 = vrot.slane %v4143, %v4149
        %v4151 = vcombine.low %v4013, %v4037
        %v4153 = vunpack.c.l.s4 1983009808
        %v4154 = vunpack.c.0.s8 %v4153
        %v4155 = vlaneseq
        %v4156 = vshrl.u32 %v4155, 7
        %v4157 = vsub.s32 %v4154, %v4156
        %v4158 = vrot.slane %v4151, %v4157
        %v4159 = vcombine.low %v4049, %v4073
        %v4161 = vunpack.c.l.s4 1983009808
        %v4162 = vunpack.c.0.s8 %v4161
        %v4163 = vlaneseq
        %v4164 = vshrl.u32 %v4163, 7
        %v4165 = vsub.s32 %v4162, %v4164
        %v4166 = vrot.slane %v4159, %v4165
        %v4167 = vcombine.low %v4061, %v4085
        %v4169 = vunpack.c.l.s4 1983009808
        %v4170 = vunpack.c.0.s8 %v4169
        %v4171 = vlaneseq
        %v4172 = vshrl.u32 %v4171, 7
        %v4173 = vsub.s32 %v4170, %v4172
        %v4174 = vrot.slane %v4167, %v4173
        %v4175 = vcombine.low %v4150, %v4158
        %v4177 = vunpack.c.l.s4 1934713408
        %v4178 = vunpack.c.0.s8 %v4177
        %v4179 = vlaneseq
        %v4180 = vshrl.u32 %v4179, 7
        %v4181 = vsub.s32 %v4178, %v4180
        %v4182 = vrot.slane %v4175, %v4181
        %v4183 = vcombine.low %v4166, %v4174
        %v4185 = vunpack.c.l.s4 1934713408
        %v4186 = vunpack.c.0.s8 %v4185
        %v4187 = vlaneseq
        %v4188 = vshrl.u32 %v4187, 7
        %v4189 = vsub.s32 %v4186, %v4188
        %v4190 = vrot.slane %v4183, %v4189
        %v4191 = vcombine.low %v4182, %v4190
        %v4192 = vcombine.low %v4004, %v4027
        %v4194 = vunpack.c.l.s4 1983009808
        %v4195 = vunpack.c.0.s8 %v4194
        %v4196 = vlaneseq
        %v4197 = vshrl.u32 %v4196, 7
        %v4198 = vsub.s32 %v4195, %v4197
        %v4199 = vrot.slane %v4192, %v4198
        %v4200 = vcombine.low %v4015, %v4039
        %v4202 = vunpack.c.l.s4 1983009808
        %v4203 = vunpack.c.0.s8 %v4202
        %v4204 = vlaneseq
        %v4205 = vshrl.u32 %v4204, 7
        %v4206 = vsub.s32 %v4203, %v4205
        %v4207 = vrot.slane %v4200, %v4206
        %v4208 = vcombine.low %v4051, %v4075
        %v4210 = vunpack.c.l.s4 1983009808
        %v4211 = vunpack.c.0.s8 %v4210
        %v4212 = vlaneseq
        %v4213 = vshrl.u32 %v4212, 7
        %v4214 = vsub.s32 %v4211, %v4213
        %v4215 = vrot.slane %v4208, %v4214
        %v4216 = vcombine.low %v4063, %v4087
        %v4218 = vunpack.c.l.s4 1983009808
        %v4219 = vunpack.c.0.s8 %v4218
        %v4220 = vlaneseq
        %v4221 = vshrl.u32 %v4220, 7
        %v4222 = vsub.s32 %v4219, %v4221
        %v4223 = vrot.slane %v4216, %v4222
        %v4224 = vcombine.low %v4199, %v4207
        %v4226 = vunpack.c.l.s4 1934713408
        %v4227 = vunpack.c.0.s8 %v4226
        %v4228 = vlaneseq
        %v4229 = vshrl.u32 %v4228, 7
        %v4230 = vsub.s32 %v4227, %v4229
        %v4231 = vrot.slane %v4224, %v4230
        %v4232 = vcombine.low %v4215, %v4223
        %v4234 = vunpack.c.l.s4 1934713408
        %v4235 = vunpack.c.0.s8 %v4234
        %v4236 = vlaneseq
        %v4237 = vshrl.u32 %v4236, 7
        %v4238 = vsub.s32 %v4235, %v4237
        %v4239 = vrot.slane %v4232, %v4238
        %v4240 = vcombine.low %v4231, %v4239
        %v4241 = vcombine.low %v4005, %v4029
        %v4243 = vunpack.c.l.s4 1983009808
        %v4244 = vunpack.c.0.s8 %v4243
        %v4245 = vlaneseq
        %v4246 = vshrl.u32 %v4245, 7
        %v4247 = vsub.s32 %v4244, %v4246
        %v4248 = vrot.slane %v4241, %v4247
        %v4249 = vcombine.low %v4017, %v4041
        %v4251 = vunpack.c.l.s4 1983009808
        %v4252 = vunpack.c.0.s8 %v4251
        %v4253 = vlaneseq
        %v4254 = vshrl.u32 %v4253, 7
        %v4255 = vsub.s32 %v4252, %v4254
        %v4256 = vrot.slane %v4249, %v4255
        %v4257 = vcombine.low %v4053, %v4077
        %v4259 = vunpack.c.l.s4 1983009808
        %v4260 = vunpack.c.0.s8 %v4259
        %v4261 = vlaneseq
        %v4262 = vshrl.u32 %v4261, 7
        %v4263 = vsub.s32 %v4260, %v4262
        %v4264 = vrot.slane %v4257, %v4263
        %v4265 = vcombine.low %v4065, %v4089
        %v4267 = vunpack.c.l.s4 1983009808
        %v4268 = vunpack.c.0.s8 %v4267
        %v4269 = vlaneseq
        %v4270 = vshrl.u32 %v4269, 7
        %v4271 = vsub.s32 %v4268, %v4270
        %v4272 = vrot.slane %v4265, %v4271
        %v4273 = vcombine.low %v4248, %v4256
        %v4275 = vunpack.c.l.s4 1934713408
        %v4276 = vunpack.c.0.s8 %v4275
        %v4277 = vlaneseq
        %v4278 = vshrl.u32 %v4277, 7
        %v4279 = vsub.s32 %v4276, %v4278
        %v4280 = vrot.slane %v4273, %v4279
        %v4281 = vcombine.low %v4264, %v4272
        %v4283 = vunpack.c.l.s4 1934713408
        %v4284 = vunpack.c.0.s8 %v4283
        %v4285 = vlaneseq
        %v4286 = vshrl.u32 %v4285, 7
        %v4287 = vsub.s32 %v4284, %v4286
        %v4288 = vrot.slane %v4281, %v4287
        %v4289 = vcombine.low %v4280, %v4288
        %v4290 = vcombine.low %v4142, %v4240
        %v4291 = vcombine.high %v4142, %v4240
        %v4293 = vunpack.c.l.s4 1983009808
        %v4294 = vunpack.c.0.s8 %v4293
        %v4295 = vlaneseq
        %v4296 = vshrl.u32 %v4295, 7
        %v4297 = vsub.s32 %v4294, %v4296
        %v4298 = vrot.slane %v4290, %v4297
        %v4300 = vunpack.c.l.s4 1983009808
        %v4301 = vunpack.c.0.s8 %v4300
        %v4302 = vlaneseq
        %v4303 = vshrl.u32 %v4302, 7
        %v4304 = vsub.s32 %v4301, %v4303
        %v4305 = vrot.slane %v4291, %v4304
        %v4306 = vcombine.low %v4191, %v4289
        %v4307 = vcombine.high %v4191, %v4289
        %v4309 = vunpack.c.l.s4 1983009808
        %v4310 = vunpack.c.0.s8 %v4309
        %v4311 = vlaneseq
        %v4312 = vshrl.u32 %v4311, 7
        %v4313 = vsub.s32 %v4310, %v4312
        %v4314 = vrot.slane %v4306, %v4313
        %v4316 = vunpack.c.l.s4 1983009808
        %v4317 = vunpack.c.0.s8 %v4316
        %v4318 = vlaneseq
        %v4319 = vshrl.u32 %v4318, 7
        %v4320 = vsub.s32 %v4317, %v4319
        %v4321 = vrot.slane %v4307, %v4320
        %v4322 = vcombine.low %v4298, %v4314
        %v4323 = vcombine.high %v4298, %v4314
        %v4325 = vunpack.c.l.s4 1934713408
        %v4326 = vunpack.c.0.s8 %v4325
        %v4327 = vlaneseq
        %v4328 = vshrl.u32 %v4327, 7
        %v4329 = vsub.s32 %v4326, %v4328
        %v4330 = vrot.slane %v4322, %v4329
        %v4332 = vunpack.c.l.s4 1934713408
        %v4333 = vunpack.c.0.s8 %v4332
        %v4334 = vlaneseq
        %v4335 = vshrl.u32 %v4334, 7
        %v4336 = vsub.s32 %v4333, %v4335
        %v4337 = vrot.slane %v4323, %v4336
        %v4338 = vcombine.low %v4305, %v4321
        %v4339 = vcombine.high %v4305, %v4321
        %v4341 = vunpack.c.l.s4 1934713408
        %v4342 = vunpack.c.0.s8 %v4341
        %v4343 = vlaneseq
        %v4344 = vshrl.u32 %v4343, 7
        %v4345 = vsub.s32 %v4342, %v4344
        %v4346 = vrot.slane %v4338, %v4345
        %v4348 = vunpack.c.l.s4 1934713408
        %v4349 = vunpack.c.0.s8 %v4348
        %v4350 = vlaneseq
        %v4351 = vshrl.u32 %v4350, 7
        %v4352 = vsub.s32 %v4349, %v4351
        %v4353 = vrot.slane %v4339, %v4352
        %v4354 = vcombine.high %v4330, 0.0
        %v4355 = vcombine.high %v4337, 0.0
        %v4356 = vcombine.high %v4346, 0.0
        %v4357 = vcombine.high %v4353, 0.0
        %4359 = vrot.lane.b32.xlu0 %v3994, 112
        %v4360 = vpop.permute.xlu0 %4359
        %v4362 = vsel %vm1575, %v4330, 0
        %v4364 = vsel %vm1575, %v4360, 0
        %4366 = vmatprep.subr.mxu0 0.0
        %4367 = vmatpush1.xpose.msra.mxu0 0.0
        %4368 = vmatprep.subr.mxu0 0.0
        %4369 = vmatpush1.xpose.msra.mxu0 0.0
        %4370 = vmatprep.subr.mxu0 0.0
        %4371 = vmatpush1.xpose.msra.mxu0 0.0
        %4372 = vmatprep.subr.mxu0 0.0
        %4373 = vmatpush1.xpose.msra.mxu0 0.0
        %4374 = vmatprep.subr.mxu0 0.0
        %4375 = vmatpush1.xpose.msra.mxu0 0.0
        %4376 = vmatprep.subr.mxu0 0.0
        %4377 = vmatpush1.xpose.msra.mxu0 0.0
        %4378 = vmatprep.subr.mxu0 0.0
        %4379 = vmatpush1.xpose.msra.mxu0 0.0
        %4380 = vmatprep.subr.mxu0 0.0
        %4381 = vmatpush1.xpose.msra.mxu0 0.0
        %4382 = vmatprep.subr.mxu0 0.0
        %4383 = vmatpush1.xpose.msra.mxu0 0.0
        %4384 = vmatprep.subr.mxu0 0.0
        %4385 = vmatpush1.xpose.msra.mxu0 0.0
        %4386 = vmatprep.subr.mxu0 0.0
        %4387 = vmatpush1.xpose.msra.mxu0 0.0
        %4388 = vmatprep.subr.mxu0 0.0
        %4389 = vmatpush1.xpose.msra.mxu0 0.0
        %4390 = vmatprep.subr.mxu0 0.0
        %4391 = vmatpush1.xpose.msra.mxu0 0.0
        %4392 = vmatprep.subr.mxu0 0.0
        %4393 = vmatpush1.xpose.msra.mxu0 0.0
        %4394 = vmatprep.subr.mxu0 0.0
        %4395 = vmatpush1.xpose.msra.mxu0 0.0
        %4396 = vmatprep.subr.mxu0 0.0
        %4397 = vmatpush1.xpose.msra.mxu0 %v4364
        %4398 = vmatprep.subr.mxu0 0.0
        %4399 = vmatpush2.xpose.msra.mxu0 0.0
        %4400 = vmatprep.subr.mxu0 0.0
        %4401 = vmatpush2.xpose.msra.mxu0 0.0
        %4402 = vmatprep.subr.mxu0 0.0
        %4403 = vmatpush2.xpose.msra.mxu0 0.0
        %4404 = vmatprep.subr.mxu0 0.0
        %4405 = vmatpush2.xpose.msra.mxu0 0.0
        %4406 = vmatprep.subr.mxu0 0.0
        %4407 = vmatpush2.xpose.msra.mxu0 0.0
        %4408 = vmatprep.subr.mxu0 0.0
        %4409 = vmatpush2.xpose.msra.mxu0 0.0
        %4410 = vmatprep.subr.mxu0 0.0
        %4411 = vmatpush2.xpose.msra.mxu0 0.0
        %4412 = vmatprep.subr.mxu0 0.0
        %4413 = vmatpush2.xpose.msra.mxu0 0.0
        %4414 = vmatprep.subr.mxu0 0.0
        %4415 = vmatpush2.xpose.msra.mxu0 0.0
        %4416 = vmatprep.subr.mxu0 0.0
        %4417 = vmatpush2.xpose.msra.mxu0 0.0
        %4418 = vmatprep.subr.mxu0 0.0
        %4419 = vmatpush2.xpose.msra.mxu0 0.0
        %4420 = vmatprep.subr.mxu0 0.0
        %4421 = vmatpush2.xpose.msra.mxu0 0.0
        %4422 = vmatprep.subr.mxu0 0.0
        %4423 = vmatpush2.xpose.msra.mxu0 0.0
        %4424 = vmatprep.subr.mxu0 0.0
        %4425 = vmatpush2.xpose.msra.mxu0 0.0
        %4426 = vmatprep.subr.mxu0 0.0
        %4427 = vmatpush2.xpose.msra.mxu0 0.0
        %4428 = vmatprep.subr.mxu0 0.0
        %4429 = vmatpush2.xpose.msra.mxu0 0.0
        %4430 = vmatprep.mubr.f32.mxu0 0.0
        %4431 = vmatmul.mubr.f32.gmra.mxu0 %v4362
        %v4432 = vpop.f32.mrf.mxu0
        %v4433 = vadd.f32 0.0, %v4432
        %v4434 = vpop.f32.mrf.mxu0
        %4435 = vdwg.mxu0
        %4437 = vrot.lane.b32.xlu0 %v3995, 112
        %v4438 = vpop.permute.xlu0 %4437
        %v4440 = vsel %vm1575, %v4354, 0
        %v4442 = vsel %vm1575, %v4438, 0
        %4444 = vmatprep.subr.mxu0 0.0
        %4445 = vmatpush1.xpose.msra.mxu0 0.0
        %4446 = vmatprep.subr.mxu0 0.0
        %4447 = vmatpush1.xpose.msra.mxu0 0.0
        %4448 = vmatprep.subr.mxu0 0.0
        %4449 = vmatpush1.xpose.msra.mxu0 0.0
        %4450 = vmatprep.subr.mxu0 0.0
        %4451 = vmatpush1.xpose.msra.mxu0 0.0
        %4452 = vmatprep.subr.mxu0 0.0
        %4453 = vmatpush1.xpose.msra.mxu0 0.0
        %4454 = vmatprep.subr.mxu0 0.0
        %4455 = vmatpush1.xpose.msra.mxu0 0.0
        %4456 = vmatprep.subr.mxu0 0.0
        %4457 = vmatpush1.xpose.msra.mxu0 0.0
        %4458 = vmatprep.subr.mxu0 0.0
        %4459 = vmatpush1.xpose.msra.mxu0 0.0
        %4460 = vmatprep.subr.mxu0 0.0
        %4461 = vmatpush1.xpose.msra.mxu0 0.0
        %4462 = vmatprep.subr.mxu0 0.0
        %4463 = vmatpush1.xpose.msra.mxu0 0.0
        %4464 = vmatprep.subr.mxu0 0.0
        %4465 = vmatpush1.xpose.msra.mxu0 0.0
        %4466 = vmatprep.subr.mxu0 0.0
        %4467 = vmatpush1.xpose.msra.mxu0 0.0
        %4468 = vmatprep.subr.mxu0 0.0
        %4469 = vmatpush1.xpose.msra.mxu0 0.0
        %4470 = vmatprep.subr.mxu0 0.0
        %4471 = vmatpush1.xpose.msra.mxu0 0.0
        %4472 = vmatprep.subr.mxu0 0.0
        %4473 = vmatpush1.xpose.msra.mxu0 0.0
        %4474 = vmatprep.subr.mxu0 0.0
        %4475 = vmatpush1.xpose.msra.mxu0 %v4442
        %4476 = vmatprep.subr.mxu0 0.0
        %4477 = vmatpush2.xpose.msra.mxu0 0.0
        %4478 = vmatprep.subr.mxu0 0.0
        %4479 = vmatpush2.xpose.msra.mxu0 0.0
        %4480 = vmatprep.subr.mxu0 0.0
        %4481 = vmatpush2.xpose.msra.mxu0 0.0
        %4482 = vmatprep.subr.mxu0 0.0
        %4483 = vmatpush2.xpose.msra.mxu0 0.0
        %4484 = vmatprep.subr.mxu0 0.0
        %4485 = vmatpush2.xpose.msra.mxu0 0.0
        %4486 = vmatprep.subr.mxu0 0.0
        %4487 = vmatpush2.xpose.msra.mxu0 0.0
        %4488 = vmatprep.subr.mxu0 0.0
        %4489 = vmatpush2.xpose.msra.mxu0 0.0
        %4490 = vmatprep.subr.mxu0 0.0
        %4491 = vmatpush2.xpose.msra.mxu0 0.0
        %4492 = vmatprep.subr.mxu0 0.0
        %4493 = vmatpush2.xpose.msra.mxu0 0.0
        %4494 = vmatprep.subr.mxu0 0.0
        %4495 = vmatpush2.xpose.msra.mxu0 0.0
        %4496 = vmatprep.subr.mxu0 0.0
        %4497 = vmatpush2.xpose.msra.mxu0 0.0
        %4498 = vmatprep.subr.mxu0 0.0
        %4499 = vmatpush2.xpose.msra.mxu0 0.0
        %4500 = vmatprep.subr.mxu0 0.0
        %4501 = vmatpush2.xpose.msra.mxu0 0.0
        %4502 = vmatprep.subr.mxu0 0.0
        %4503 = vmatpush2.xpose.msra.mxu0 0.0
        %4504 = vmatprep.subr.mxu0 0.0
        %4505 = vmatpush2.xpose.msra.mxu0 0.0
        %4506 = vmatprep.subr.mxu0 0.0
        %4507 = vmatpush2.xpose.msra.mxu0 0.0
        %4508 = vmatprep.mubr.f32.mxu0 0.0
        %4509 = vmatmul.mubr.f32.gmra.mxu0 %v4440
        %v4510 = vpop.f32.mrf.mxu0
        %v4511 = vadd.f32 0.0, %v4510
        %v4512 = vpop.f32.mrf.mxu0
        %4513 = vdwg.mxu0
        %4515 = vrot.lane.b32.xlu0 %v3996, 112
        %v4516 = vpop.permute.xlu0 %4515
        %v4518 = vsel %vm1575, %v4337, 0
        %v4520 = vsel %vm1575, %v4516, 0
        %4522 = vmatprep.subr.mxu0 0.0
        %4523 = vmatpush1.xpose.msra.mxu0 0.0
        %4524 = vmatprep.subr.mxu0 0.0
        %4525 = vmatpush1.xpose.msra.mxu0 0.0
        %4526 = vmatprep.subr.mxu0 0.0
        %4527 = vmatpush1.xpose.msra.mxu0 0.0
        %4528 = vmatprep.subr.mxu0 0.0
        %4529 = vmatpush1.xpose.msra.mxu0 0.0
        %4530 = vmatprep.subr.mxu0 0.0
        %4531 = vmatpush1.xpose.msra.mxu0 0.0
        %4532 = vmatprep.subr.mxu0 0.0
        %4533 = vmatpush1.xpose.msra.mxu0 0.0
        %4534 = vmatprep.subr.mxu0 0.0
        %4535 = vmatpush1.xpose.msra.mxu0 0.0
        %4536 = vmatprep.subr.mxu0 0.0
        %4537 = vmatpush1.xpose.msra.mxu0 0.0
        %4538 = vmatprep.subr.mxu0 0.0
        %4539 = vmatpush1.xpose.msra.mxu0 0.0
        %4540 = vmatprep.subr.mxu0 0.0
        %4541 = vmatpush1.xpose.msra.mxu0 0.0
        %4542 = vmatprep.subr.mxu0 0.0
        %4543 = vmatpush1.xpose.msra.mxu0 0.0
        %4544 = vmatprep.subr.mxu0 0.0
        %4545 = vmatpush1.xpose.msra.mxu0 0.0
        %4546 = vmatprep.subr.mxu0 0.0
        %4547 = vmatpush1.xpose.msra.mxu0 0.0
        %4548 = vmatprep.subr.mxu0 0.0
        %4549 = vmatpush1.xpose.msra.mxu0 0.0
        %4550 = vmatprep.subr.mxu0 0.0
        %4551 = vmatpush1.xpose.msra.mxu0 0.0
        %4552 = vmatprep.subr.mxu0 0.0
        %4553 = vmatpush1.xpose.msra.mxu0 %v4520
        %4554 = vmatprep.subr.mxu0 0.0
        %4555 = vmatpush2.xpose.msra.mxu0 0.0
        %4556 = vmatprep.subr.mxu0 0.0
        %4557 = vmatpush2.xpose.msra.mxu0 0.0
        %4558 = vmatprep.subr.mxu0 0.0
        %4559 = vmatpush2.xpose.msra.mxu0 0.0
        %4560 = vmatprep.subr.mxu0 0.0
        %4561 = vmatpush2.xpose.msra.mxu0 0.0
        %4562 = vmatprep.subr.mxu0 0.0
        %4563 = vmatpush2.xpose.msra.mxu0 0.0
        %4564 = vmatprep.subr.mxu0 0.0
        %4565 = vmatpush2.xpose.msra.mxu0 0.0
        %4566 = vmatprep.subr.mxu0 0.0
        %4567 = vmatpush2.xpose.msra.mxu0 0.0
        %4568 = vmatprep.subr.mxu0 0.0
        %4569 = vmatpush2.xpose.msra.mxu0 0.0
        %4570 = vmatprep.subr.mxu0 0.0
        %4571 = vmatpush2.xpose.msra.mxu0 0.0
        %4572 = vmatprep.subr.mxu0 0.0
        %4573 = vmatpush2.xpose.msra.mxu0 0.0
        %4574 = vmatprep.subr.mxu0 0.0
        %4575 = vmatpush2.xpose.msra.mxu0 0.0
        %4576 = vmatprep.subr.mxu0 0.0
        %4577 = vmatpush2.xpose.msra.mxu0 0.0
        %4578 = vmatprep.subr.mxu0 0.0
        %4579 = vmatpush2.xpose.msra.mxu0 0.0
        %4580 = vmatprep.subr.mxu0 0.0
        %4581 = vmatpush2.xpose.msra.mxu0 0.0
        %4582 = vmatprep.subr.mxu0 0.0
        %4583 = vmatpush2.xpose.msra.mxu0 0.0
        %4584 = vmatprep.subr.mxu0 0.0
        %4585 = vmatpush2.xpose.msra.mxu0 0.0
        %4586 = vmatprep.mubr.f32.mxu0 0.0
        %4587 = vmatmul.mubr.f32.gmra.mxu0 %v4518
        %v4588 = vpop.f32.mrf.mxu0
        %v4589 = vadd.f32 0.0, %v4588
        %v4590 = vpop.f32.mrf.mxu0
        %4591 = vdwg.mxu0
        %4593 = vrot.lane.b32.xlu0 %v3997, 112
        %v4594 = vpop.permute.xlu0 %4593
        %v4596 = vsel %vm1575, %v4355, 0
        %v4598 = vsel %vm1575, %v4594, 0
        %4600 = vmatprep.subr.mxu0 0.0
        %4601 = vmatpush1.xpose.msra.mxu0 0.0
        %4602 = vmatprep.subr.mxu0 0.0
        %4603 = vmatpush1.xpose.msra.mxu0 0.0
        %4604 = vmatprep.subr.mxu0 0.0
        %4605 = vmatpush1.xpose.msra.mxu0 0.0
        %4606 = vmatprep.subr.mxu0 0.0
        %4607 = vmatpush1.xpose.msra.mxu0 0.0
        %4608 = vmatprep.subr.mxu0 0.0
        %4609 = vmatpush1.xpose.msra.mxu0 0.0
        %4610 = vmatprep.subr.mxu0 0.0
        %4611 = vmatpush1.xpose.msra.mxu0 0.0
        %4612 = vmatprep.subr.mxu0 0.0
        %4613 = vmatpush1.xpose.msra.mxu0 0.0
        %4614 = vmatprep.subr.mxu0 0.0
        %4615 = vmatpush1.xpose.msra.mxu0 0.0
        %4616 = vmatprep.subr.mxu0 0.0
        %4617 = vmatpush1.xpose.msra.mxu0 0.0
        %4618 = vmatprep.subr.mxu0 0.0
        %4619 = vmatpush1.xpose.msra.mxu0 0.0
        %4620 = vmatprep.subr.mxu0 0.0
        %4621 = vmatpush1.xpose.msra.mxu0 0.0
        %4622 = vmatprep.subr.mxu0 0.0
        %4623 = vmatpush1.xpose.msra.mxu0 0.0
        %4624 = vmatprep.subr.mxu0 0.0
        %4625 = vmatpush1.xpose.msra.mxu0 0.0
        %4626 = vmatprep.subr.mxu0 0.0
        %4627 = vmatpush1.xpose.msra.mxu0 0.0
        %4628 = vmatprep.subr.mxu0 0.0
        %4629 = vmatpush1.xpose.msra.mxu0 0.0
        %4630 = vmatprep.subr.mxu0 0.0
        %4631 = vmatpush1.xpose.msra.mxu0 %v4598
        %4632 = vmatprep.subr.mxu0 0.0
        %4633 = vmatpush2.xpose.msra.mxu0 0.0
        %4634 = vmatprep.subr.mxu0 0.0
        %4635 = vmatpush2.xpose.msra.mxu0 0.0
        %4636 = vmatprep.subr.mxu0 0.0
        %4637 = vmatpush2.xpose.msra.mxu0 0.0
        %4638 = vmatprep.subr.mxu0 0.0
        %4639 = vmatpush2.xpose.msra.mxu0 0.0
        %4640 = vmatprep.subr.mxu0 0.0
        %4641 = vmatpush2.xpose.msra.mxu0 0.0
        %4642 = vmatprep.subr.mxu0 0.0
        %4643 = vmatpush2.xpose.msra.mxu0 0.0
        %4644 = vmatprep.subr.mxu0 0.0
        %4645 = vmatpush2.xpose.msra.mxu0 0.0
        %4646 = vmatprep.subr.mxu0 0.0
        %4647 = vmatpush2.xpose.msra.mxu0 0.0
        %4648 = vmatprep.subr.mxu0 0.0
        %4649 = vmatpush2.xpose.msra.mxu0 0.0
        %4650 = vmatprep.subr.mxu0 0.0
        %4651 = vmatpush2.xpose.msra.mxu0 0.0
        %4652 = vmatprep.subr.mxu0 0.0
        %4653 = vmatpush2.xpose.msra.mxu0 0.0
        %4654 = vmatprep.subr.mxu0 0.0
        %4655 = vmatpush2.xpose.msra.mxu0 0.0
        %4656 = vmatprep.subr.mxu0 0.0
        %4657 = vmatpush2.xpose.msra.mxu0 0.0
        %4658 = vmatprep.subr.mxu0 0.0
        %4659 = vmatpush2.xpose.msra.mxu0 0.0
        %4660 = vmatprep.subr.mxu0 0.0
        %4661 = vmatpush2.xpose.msra.mxu0 0.0
        %4662 = vmatprep.subr.mxu0 0.0
        %4663 = vmatpush2.xpose.msra.mxu0 0.0
        %4664 = vmatprep.mubr.f32.mxu0 0.0
        %4665 = vmatmul.mubr.f32.gmra.mxu0 %v4596
        %v4666 = vpop.f32.mrf.mxu0
        %v4667 = vadd.f32 0.0, %v4666
        %v4668 = vpop.f32.mrf.mxu0
        %4669 = vdwg.mxu0
        %4671 = vrot.lane.b32.xlu0 %v3998, 112
        %v4672 = vpop.permute.xlu0 %4671
        %v4674 = vsel %vm1575, %v4346, 0
        %v4676 = vsel %vm1575, %v4672, 0
        %4678 = vmatprep.subr.mxu0 0.0
        %4679 = vmatpush1.xpose.msra.mxu0 0.0
        %4680 = vmatprep.subr.mxu0 0.0
        %4681 = vmatpush1.xpose.msra.mxu0 0.0
        %4682 = vmatprep.subr.mxu0 0.0
        %4683 = vmatpush1.xpose.msra.mxu0 0.0
        %4684 = vmatprep.subr.mxu0 0.0
        %4685 = vmatpush1.xpose.msra.mxu0 0.0
        %4686 = vmatprep.subr.mxu0 0.0
        %4687 = vmatpush1.xpose.msra.mxu0 0.0
        %4688 = vmatprep.subr.mxu0 0.0
        %4689 = vmatpush1.xpose.msra.mxu0 0.0
        %4690 = vmatprep.subr.mxu0 0.0
        %4691 = vmatpush1.xpose.msra.mxu0 0.0
        %4692 = vmatprep.subr.mxu0 0.0
        %4693 = vmatpush1.xpose.msra.mxu0 0.0
        %4694 = vmatprep.subr.mxu0 0.0
        %4695 = vmatpush1.xpose.msra.mxu0 0.0
        %4696 = vmatprep.subr.mxu0 0.0
        %4697 = vmatpush1.xpose.msra.mxu0 0.0
        %4698 = vmatprep.subr.mxu0 0.0
        %4699 = vmatpush1.xpose.msra.mxu0 0.0
        %4700 = vmatprep.subr.mxu0 0.0
        %4701 = vmatpush1.xpose.msra.mxu0 0.0
        %4702 = vmatprep.subr.mxu0 0.0
        %4703 = vmatpush1.xpose.msra.mxu0 0.0
        %4704 = vmatprep.subr.mxu0 0.0
        %4705 = vmatpush1.xpose.msra.mxu0 0.0
        %4706 = vmatprep.subr.mxu0 0.0
        %4707 = vmatpush1.xpose.msra.mxu0 0.0
        %4708 = vmatprep.subr.mxu0 0.0
        %4709 = vmatpush1.xpose.msra.mxu0 %v4676
        %4710 = vmatprep.subr.mxu0 0.0
        %4711 = vmatpush2.xpose.msra.mxu0 0.0
        %4712 = vmatprep.subr.mxu0 0.0
        %4713 = vmatpush2.xpose.msra.mxu0 0.0
        %4714 = vmatprep.subr.mxu0 0.0
        %4715 = vmatpush2.xpose.msra.mxu0 0.0
        %4716 = vmatprep.subr.mxu0 0.0
        %4717 = vmatpush2.xpose.msra.mxu0 0.0
        %4718 = vmatprep.subr.mxu0 0.0
        %4719 = vmatpush2.xpose.msra.mxu0 0.0
        %4720 = vmatprep.subr.mxu0 0.0
        %4721 = vmatpush2.xpose.msra.mxu0 0.0
        %4722 = vmatprep.subr.mxu0 0.0
        %4723 = vmatpush2.xpose.msra.mxu0 0.0
        %4724 = vmatprep.subr.mxu0 0.0
        %4725 = vmatpush2.xpose.msra.mxu0 0.0
        %4726 = vmatprep.subr.mxu0 0.0
        %4727 = vmatpush2.xpose.msra.mxu0 0.0
        %4728 = vmatprep.subr.mxu0 0.0
        %4729 = vmatpush2.xpose.msra.mxu0 0.0
        %4730 = vmatprep.subr.mxu0 0.0
        %4731 = vmatpush2.xpose.msra.mxu0 0.0
        %4732 = vmatprep.subr.mxu0 0.0
        %4733 = vmatpush2.xpose.msra.mxu0 0.0
        %4734 = vmatprep.subr.mxu0 0.0
        %4735 = vmatpush2.xpose.msra.mxu0 0.0
        %4736 = vmatprep.subr.mxu0 0.0
        %4737 = vmatpush2.xpose.msra.mxu0 0.0
        %4738 = vmatprep.subr.mxu0 0.0
        %4739 = vmatpush2.xpose.msra.mxu0 0.0
        %4740 = vmatprep.subr.mxu0 0.0
        %4741 = vmatpush2.xpose.msra.mxu0 0.0
        %4742 = vmatprep.mubr.f32.mxu0 0.0
        %4743 = vmatmul.mubr.f32.gmra.mxu0 %v4674
        %v4744 = vpop.f32.mrf.mxu0
        %v4745 = vadd.f32 0.0, %v4744
        %v4746 = vpop.f32.mrf.mxu0
        %4747 = vdwg.mxu0
        %4749 = vrot.lane.b32.xlu0 %v3999, 112
        %v4750 = vpop.permute.xlu0 %4749
        %v4752 = vsel %vm1575, %v4356, 0
        %v4754 = vsel %vm1575, %v4750, 0
        %4756 = vmatprep.subr.mxu0 0.0
        %4757 = vmatpush1.xpose.msra.mxu0 0.0
        %4758 = vmatprep.subr.mxu0 0.0
        %4759 = vmatpush1.xpose.msra.mxu0 0.0
        %4760 = vmatprep.subr.mxu0 0.0
        %4761 = vmatpush1.xpose.msra.mxu0 0.0
        %4762 = vmatprep.subr.mxu0 0.0
        %4763 = vmatpush1.xpose.msra.mxu0 0.0
        %4764 = vmatprep.subr.mxu0 0.0
        %4765 = vmatpush1.xpose.msra.mxu0 0.0
        %4766 = vmatprep.subr.mxu0 0.0
        %4767 = vmatpush1.xpose.msra.mxu0 0.0
        %4768 = vmatprep.subr.mxu0 0.0
        %4769 = vmatpush1.xpose.msra.mxu0 0.0
        %4770 = vmatprep.subr.mxu0 0.0
        %4771 = vmatpush1.xpose.msra.mxu0 0.0
        %4772 = vmatprep.subr.mxu0 0.0
        %4773 = vmatpush1.xpose.msra.mxu0 0.0
        %4774 = vmatprep.subr.mxu0 0.0
        %4775 = vmatpush1.xpose.msra.mxu0 0.0
        %4776 = vmatprep.subr.mxu0 0.0
        %4777 = vmatpush1.xpose.msra.mxu0 0.0
        %4778 = vmatprep.subr.mxu0 0.0
        %4779 = vmatpush1.xpose.msra.mxu0 0.0
        %4780 = vmatprep.subr.mxu0 0.0
        %4781 = vmatpush1.xpose.msra.mxu0 0.0
        %4782 = vmatprep.subr.mxu0 0.0
        %4783 = vmatpush1.xpose.msra.mxu0 0.0
        %4784 = vmatprep.subr.mxu0 0.0
        %4785 = vmatpush1.xpose.msra.mxu0 0.0
        %4786 = vmatprep.subr.mxu0 0.0
        %4787 = vmatpush1.xpose.msra.mxu0 %v4754
        %4788 = vmatprep.subr.mxu0 0.0
        %4789 = vmatpush2.xpose.msra.mxu0 0.0
        %4790 = vmatprep.subr.mxu0 0.0
        %4791 = vmatpush2.xpose.msra.mxu0 0.0
        %4792 = vmatprep.subr.mxu0 0.0
        %4793 = vmatpush2.xpose.msra.mxu0 0.0
        %4794 = vmatprep.subr.mxu0 0.0
        %4795 = vmatpush2.xpose.msra.mxu0 0.0
        %4796 = vmatprep.subr.mxu0 0.0
        %4797 = vmatpush2.xpose.msra.mxu0 0.0
        %4798 = vmatprep.subr.mxu0 0.0
        %4799 = vmatpush2.xpose.msra.mxu0 0.0
        %4800 = vmatprep.subr.mxu0 0.0
        %4801 = vmatpush2.xpose.msra.mxu0 0.0
        %4802 = vmatprep.subr.mxu0 0.0
        %4803 = vmatpush2.xpose.msra.mxu0 0.0
        %4804 = vmatprep.subr.mxu0 0.0
        %4805 = vmatpush2.xpose.msra.mxu0 0.0
        %4806 = vmatprep.subr.mxu0 0.0
        %4807 = vmatpush2.xpose.msra.mxu0 0.0
        %4808 = vmatprep.subr.mxu0 0.0
        %4809 = vmatpush2.xpose.msra.mxu0 0.0
        %4810 = vmatprep.subr.mxu0 0.0
        %4811 = vmatpush2.xpose.msra.mxu0 0.0
        %4812 = vmatprep.subr.mxu0 0.0
        %4813 = vmatpush2.xpose.msra.mxu0 0.0
        %4814 = vmatprep.subr.mxu0 0.0
        %4815 = vmatpush2.xpose.msra.mxu0 0.0
        %4816 = vmatprep.subr.mxu0 0.0
        %4817 = vmatpush2.xpose.msra.mxu0 0.0
        %4818 = vmatprep.subr.mxu0 0.0
        %4819 = vmatpush2.xpose.msra.mxu0 0.0
        %4820 = vmatprep.mubr.f32.mxu0 0.0
        %4821 = vmatmul.mubr.f32.gmra.mxu0 %v4752
        %v4822 = vpop.f32.mrf.mxu0
        %v4823 = vadd.f32 0.0, %v4822
        %v4824 = vpop.f32.mrf.mxu0
        %4825 = vdwg.mxu0
        %4827 = vrot.lane.b32.xlu0 %v4000, 112
        %v4828 = vpop.permute.xlu0 %4827
        %v4830 = vsel %vm1575, %v4353, 0
        %v4832 = vsel %vm1575, %v4828, 0
        %4834 = vmatprep.subr.mxu0 0.0
        %4835 = vmatpush1.xpose.msra.mxu0 0.0
        %4836 = vmatprep.subr.mxu0 0.0
        %4837 = vmatpush1.xpose.msra.mxu0 0.0
        %4838 = vmatprep.subr.mxu0 0.0
        %4839 = vmatpush1.xpose.msra.mxu0 0.0
        %4840 = vmatprep.subr.mxu0 0.0
        %4841 = vmatpush1.xpose.msra.mxu0 0.0
        %4842 = vmatprep.subr.mxu0 0.0
        %4843 = vmatpush1.xpose.msra.mxu0 0.0
        %4844 = vmatprep.subr.mxu0 0.0
        %4845 = vmatpush1.xpose.msra.mxu0 0.0
        %4846 = vmatprep.subr.mxu0 0.0
        %4847 = vmatpush1.xpose.msra.mxu0 0.0
        %4848 = vmatprep.subr.mxu0 0.0
        %4849 = vmatpush1.xpose.msra.mxu0 0.0
        %4850 = vmatprep.subr.mxu0 0.0
        %4851 = vmatpush1.xpose.msra.mxu0 0.0
        %4852 = vmatprep.subr.mxu0 0.0
        %4853 = vmatpush1.xpose.msra.mxu0 0.0
        %4854 = vmatprep.subr.mxu0 0.0
        %4855 = vmatpush1.xpose.msra.mxu0 0.0
        %4856 = vmatprep.subr.mxu0 0.0
        %4857 = vmatpush1.xpose.msra.mxu0 0.0
        %4858 = vmatprep.subr.mxu0 0.0
        %4859 = vmatpush1.xpose.msra.mxu0 0.0
        %4860 = vmatprep.subr.mxu0 0.0
        %4861 = vmatpush1.xpose.msra.mxu0 0.0
        %4862 = vmatprep.subr.mxu0 0.0
        %4863 = vmatpush1.xpose.msra.mxu0 0.0
        %4864 = vmatprep.subr.mxu0 0.0
        %4865 = vmatpush1.xpose.msra.mxu0 %v4832
        %4866 = vmatprep.subr.mxu0 0.0
        %4867 = vmatpush2.xpose.msra.mxu0 0.0
        %4868 = vmatprep.subr.mxu0 0.0
        %4869 = vmatpush2.xpose.msra.mxu0 0.0
        %4870 = vmatprep.subr.mxu0 0.0
        %4871 = vmatpush2.xpose.msra.mxu0 0.0
        %4872 = vmatprep.subr.mxu0 0.0
        %4873 = vmatpush2.xpose.msra.mxu0 0.0
        %4874 = vmatprep.subr.mxu0 0.0
        %4875 = vmatpush2.xpose.msra.mxu0 0.0
        %4876 = vmatprep.subr.mxu0 0.0
        %4877 = vmatpush2.xpose.msra.mxu0 0.0
        %4878 = vmatprep.subr.mxu0 0.0
        %4879 = vmatpush2.xpose.msra.mxu0 0.0
        %4880 = vmatprep.subr.mxu0 0.0
        %4881 = vmatpush2.xpose.msra.mxu0 0.0
        %4882 = vmatprep.subr.mxu0 0.0
        %4883 = vmatpush2.xpose.msra.mxu0 0.0
        %4884 = vmatprep.subr.mxu0 0.0
        %4885 = vmatpush2.xpose.msra.mxu0 0.0
        %4886 = vmatprep.subr.mxu0 0.0
        %4887 = vmatpush2.xpose.msra.mxu0 0.0
        %4888 = vmatprep.subr.mxu0 0.0
        %4889 = vmatpush2.xpose.msra.mxu0 0.0
        %4890 = vmatprep.subr.mxu0 0.0
        %4891 = vmatpush2.xpose.msra.mxu0 0.0
        %4892 = vmatprep.subr.mxu0 0.0
        %4893 = vmatpush2.xpose.msra.mxu0 0.0
        %4894 = vmatprep.subr.mxu0 0.0
        %4895 = vmatpush2.xpose.msra.mxu0 0.0
        %4896 = vmatprep.subr.mxu0 0.0
        %4897 = vmatpush2.xpose.msra.mxu0 0.0
        %4898 = vmatprep.mubr.f32.mxu0 0.0
        %4899 = vmatmul.mubr.f32.gmra.mxu0 %v4830
        %v4900 = vpop.f32.mrf.mxu0
        %v4901 = vadd.f32 0.0, %v4900
        %v4902 = vpop.f32.mrf.mxu0
        %4903 = vdwg.mxu0
        %4905 = vrot.lane.b32.xlu0 %v4001, 112
        %v4906 = vpop.permute.xlu0 %4905
        %v4908 = vsel %vm1575, %v4357, 0
        %v4910 = vsel %vm1575, %v4906, 0
        %4912 = vmatprep.subr.mxu0 0.0
        %4913 = vmatpush1.xpose.msra.mxu0 0.0
        %4914 = vmatprep.subr.mxu0 0.0
        %4915 = vmatpush1.xpose.msra.mxu0 0.0
        %4916 = vmatprep.subr.mxu0 0.0
        %4917 = vmatpush1.xpose.msra.mxu0 0.0
        %4918 = vmatprep.subr.mxu0 0.0
        %4919 = vmatpush1.xpose.msra.mxu0 0.0
        %4920 = vmatprep.subr.mxu0 0.0
        %4921 = vmatpush1.xpose.msra.mxu0 0.0
        %4922 = vmatprep.subr.mxu0 0.0
        %4923 = vmatpush1.xpose.msra.mxu0 0.0
        %4924 = vmatprep.subr.mxu0 0.0
        %4925 = vmatpush1.xpose.msra.mxu0 0.0
        %4926 = vmatprep.subr.mxu0 0.0
        %4927 = vmatpush1.xpose.msra.mxu0 0.0
        %4928 = vmatprep.subr.mxu0 0.0
        %4929 = vmatpush1.xpose.msra.mxu0 0.0
        %4930 = vmatprep.subr.mxu0 0.0
        %4931 = vmatpush1.xpose.msra.mxu0 0.0
        %4932 = vmatprep.subr.mxu0 0.0
        %4933 = vmatpush1.xpose.msra.mxu0 0.0
        %4934 = vmatprep.subr.mxu0 0.0
        %4935 = vmatpush1.xpose.msra.mxu0 0.0
        %4936 = vmatprep.subr.mxu0 0.0
        %4937 = vmatpush1.xpose.msra.mxu0 0.0
        %4938 = vmatprep.subr.mxu0 0.0
        %4939 = vmatpush1.xpose.msra.mxu0 0.0
        %4940 = vmatprep.subr.mxu0 0.0
        %4941 = vmatpush1.xpose.msra.mxu0 0.0
        %4942 = vmatprep.subr.mxu0 0.0
        %4943 = vmatpush1.xpose.msra.mxu0 %v4910
        %4944 = vmatprep.subr.mxu0 0.0
        %4945 = vmatpush2.xpose.msra.mxu0 0.0
        %4946 = vmatprep.subr.mxu0 0.0
        %4947 = vmatpush2.xpose.msra.mxu0 0.0
        %4948 = vmatprep.subr.mxu0 0.0
        %4949 = vmatpush2.xpose.msra.mxu0 0.0
        %4950 = vmatprep.subr.mxu0 0.0
        %4951 = vmatpush2.xpose.msra.mxu0 0.0
        %4952 = vmatprep.subr.mxu0 0.0
        %4953 = vmatpush2.xpose.msra.mxu0 0.0
        %4954 = vmatprep.subr.mxu0 0.0
        %4955 = vmatpush2.xpose.msra.mxu0 0.0
        %4956 = vmatprep.subr.mxu0 0.0
        %4957 = vmatpush2.xpose.msra.mxu0 0.0
        %4958 = vmatprep.subr.mxu0 0.0
        %4959 = vmatpush2.xpose.msra.mxu0 0.0
        %4960 = vmatprep.subr.mxu0 0.0
        %4961 = vmatpush2.xpose.msra.mxu0 0.0
        %4962 = vmatprep.subr.mxu0 0.0
        %4963 = vmatpush2.xpose.msra.mxu0 0.0
        %4964 = vmatprep.subr.mxu0 0.0
        %4965 = vmatpush2.xpose.msra.mxu0 0.0
        %4966 = vmatprep.subr.mxu0 0.0
        %4967 = vmatpush2.xpose.msra.mxu0 0.0
        %4968 = vmatprep.subr.mxu0 0.0
        %4969 = vmatpush2.xpose.msra.mxu0 0.0
        %4970 = vmatprep.subr.mxu0 0.0
        %4971 = vmatpush2.xpose.msra.mxu0 0.0
        %4972 = vmatprep.subr.mxu0 0.0
        %4973 = vmatpush2.xpose.msra.mxu0 0.0
        %4974 = vmatprep.subr.mxu0 0.0
        %4975 = vmatpush2.xpose.msra.mxu0 0.0
        %4976 = vmatprep.mubr.f32.mxu0 0.0
        %4977 = vmatmul.mubr.f32.gmra.mxu0 %v4908
        %v4978 = vpop.f32.mrf.mxu0
        %v4979 = vadd.f32 0.0, %v4978
        %v4980 = vpop.f32.mrf.mxu0
        %4981 = vdwg.mxu0
        %v4982 = vcombine.low %v4433, %v4589
        %v4984 = vunpack.c.l.s4 1983009808
        %v4985 = vunpack.c.0.s8 %v4984
        %v4986 = vlaneseq
        %v4987 = vshrl.u32 %v4986, 7
        %v4988 = vsub.s32 %v4985, %v4987
        %v4989 = vrot.slane %v4982, %v4988
        %v4990 = vcombine.low %v4511, %v4667
        %v4992 = vunpack.c.l.s4 1983009808
        %v4993 = vunpack.c.0.s8 %v4992
        %v4994 = vlaneseq
        %v4995 = vshrl.u32 %v4994, 7
        %v4996 = vsub.s32 %v4993, %v4995
        %v4997 = vrot.slane %v4990, %v4996
        %v4998 = vcombine.low %v4745, %v4901
        %v5000 = vunpack.c.l.s4 1983009808
        %v5001 = vunpack.c.0.s8 %v5000
        %v5002 = vlaneseq
        %v5003 = vshrl.u32 %v5002, 7
        %v5004 = vsub.s32 %v5001, %v5003
        %v5005 = vrot.slane %v4998, %v5004
        %v5006 = vcombine.low %v4823, %v4979
        %v5008 = vunpack.c.l.s4 1983009808
        %v5009 = vunpack.c.0.s8 %v5008
        %v5010 = vlaneseq
        %v5011 = vshrl.u32 %v5010, 7
        %v5012 = vsub.s32 %v5009, %v5011
        %v5013 = vrot.slane %v5006, %v5012
        %v5014 = vcombine.low %v4989, %v4997
        %v5015 = vcombine.high %v4989, %v4997
        %v5017 = vunpack.c.l.s4 1934713408
        %v5018 = vunpack.c.0.s8 %v5017
        %v5019 = vlaneseq
        %v5020 = vshrl.u32 %v5019, 7
        %v5021 = vsub.s32 %v5018, %v5020
        %v5022 = vrot.slane %v5014, %v5021
        %v5024 = vunpack.c.l.s4 1934713408
        %v5025 = vunpack.c.0.s8 %v5024
        %v5026 = vlaneseq
        %v5027 = vshrl.u32 %v5026, 7
        %v5028 = vsub.s32 %v5025, %v5027
        %v5029 = vrot.slane %v5015, %v5028
        %v5030 = vcombine.low %v5005, %v5013
        %v5031 = vcombine.high %v5005, %v5013
        %v5033 = vunpack.c.l.s4 1934713408
        %v5034 = vunpack.c.0.s8 %v5033
        %v5035 = vlaneseq
        %v5036 = vshrl.u32 %v5035, 7
        %v5037 = vsub.s32 %v5034, %v5036
        %v5038 = vrot.slane %v5030, %v5037
        %v5040 = vunpack.c.l.s4 1934713408
        %v5041 = vunpack.c.0.s8 %v5040
        %v5042 = vlaneseq
        %v5043 = vshrl.u32 %v5042, 7
        %v5044 = vsub.s32 %v5041, %v5043
        %v5045 = vrot.slane %v5031, %v5044
        %v5046 = vcombine.low %v5022, %v5038
        %v5047 = vcombine.high %v5022, %v5038
        %v5048 = vcombine.low %v5029, %v5045
        %v5049 = vcombine.high %v5029, %v5045
        %v5050 = vcombine.high %v5046, 0.0
        %v5052 = vunpack.c.l.s4 1983009808
        %v5053 = vunpack.c.0.s8 %v5052
        %v5054 = vlaneseq
        %v5055 = vshrl.u32 %v5054, 7
        %v5056 = vsub.s32 %v5053, %v5055
        %v5057 = vrot.slane %v5046, %v5056
        %v5059 = vunpack.c.l.s4 1983009808
        %v5060 = vunpack.c.0.s8 %v5059
        %v5061 = vlaneseq
        %v5062 = vshrl.u32 %v5061, 7
        %v5063 = vsub.s32 %v5060, %v5062
        %v5064 = vrot.slane %v5050, %v5063
        %v5065 = vcombine.high %v5057, 0.0
        %v5067 = vunpack.c.l.s4 1934713408
        %v5068 = vunpack.c.0.s8 %v5067
        %v5069 = vlaneseq
        %v5070 = vshrl.u32 %v5069, 7
        %v5071 = vsub.s32 %v5068, %v5070
        %v5072 = vrot.slane %v5057, %v5071
        %v5074 = vunpack.c.l.s4 1934713408
        %v5075 = vunpack.c.0.s8 %v5074
        %v5076 = vlaneseq
        %v5077 = vshrl.u32 %v5076, 7
        %v5078 = vsub.s32 %v5075, %v5077
        %v5079 = vrot.slane %v5065, %v5078
        %v5080 = vcombine.high %v5064, 0.0
        %v5082 = vunpack.c.l.s4 1934713408
        %v5083 = vunpack.c.0.s8 %v5082
        %v5084 = vlaneseq
        %v5085 = vshrl.u32 %v5084, 7
        %v5086 = vsub.s32 %v5083, %v5085
        %v5087 = vrot.slane %v5064, %v5086
        %v5089 = vunpack.c.l.s4 1934713408
        %v5090 = vunpack.c.0.s8 %v5089
        %v5091 = vlaneseq
        %v5092 = vshrl.u32 %v5091, 7
        %v5093 = vsub.s32 %v5090, %v5092
        %v5094 = vrot.slane %v5080, %v5093
        %v5095 = vcombine.high %v5072, 0.0
        %v5096 = vcombine.high %v5079, 0.0
        %v5097 = vcombine.high %v5087, 0.0
        %v5098 = vcombine.high %v5094, 0.0
        %v5099 = vcombine.high %v5047, 0.0
        %v5101 = vunpack.c.l.s4 1983009808
        %v5102 = vunpack.c.0.s8 %v5101
        %v5103 = vlaneseq
        %v5104 = vshrl.u32 %v5103, 7
        %v5105 = vsub.s32 %v5102, %v5104
        %v5106 = vrot.slane %v5047, %v5105
        %v5108 = vunpack.c.l.s4 1983009808
        %v5109 = vunpack.c.0.s8 %v5108
        %v5110 = vlaneseq
        %v5111 = vshrl.u32 %v5110, 7
        %v5112 = vsub.s32 %v5109, %v5111
        %v5113 = vrot.slane %v5099, %v5112
        %v5114 = vcombine.high %v5106, 0.0
        %v5116 = vunpack.c.l.s4 1934713408
        %v5117 = vunpack.c.0.s8 %v5116
        %v5118 = vlaneseq
        %v5119 = vshrl.u32 %v5118, 7
        %v5120 = vsub.s32 %v5117, %v5119
        %v5121 = vrot.slane %v5106, %v5120
        %v5123 = vunpack.c.l.s4 1934713408
        %v5124 = vunpack.c.0.s8 %v5123
        %v5125 = vlaneseq
        %v5126 = vshrl.u32 %v5125, 7
        %v5127 = vsub.s32 %v5124, %v5126
        %v5128 = vrot.slane %v5114, %v5127
        %v5129 = vcombine.high %v5113, 0.0
        %v5131 = vunpack.c.l.s4 1934713408
        %v5132 = vunpack.c.0.s8 %v5131
        %v5133 = vlaneseq
        %v5134 = vshrl.u32 %v5133, 7
        %v5135 = vsub.s32 %v5132, %v5134
        %v5136 = vrot.slane %v5113, %v5135
        %v5138 = vunpack.c.l.s4 1934713408
        %v5139 = vunpack.c.0.s8 %v5138
        %v5140 = vlaneseq
        %v5141 = vshrl.u32 %v5140, 7
        %v5142 = vsub.s32 %v5139, %v5141
        %v5143 = vrot.slane %v5129, %v5142
        %v5144 = vcombine.high %v5121, 0.0
        %v5145 = vcombine.high %v5128, 0.0
        %v5146 = vcombine.high %v5136, 0.0
        %v5147 = vcombine.high %v5143, 0.0
        %v5148 = vcombine.high %v5048, 0.0
        %v5150 = vunpack.c.l.s4 1983009808
        %v5151 = vunpack.c.0.s8 %v5150
        %v5152 = vlaneseq
        %v5153 = vshrl.u32 %v5152, 7
        %v5154 = vsub.s32 %v5151, %v5153
        %v5155 = vrot.slane %v5048, %v5154
        %v5157 = vunpack.c.l.s4 1983009808
        %v5158 = vunpack.c.0.s8 %v5157
        %v5159 = vlaneseq
        %v5160 = vshrl.u32 %v5159, 7
        %v5161 = vsub.s32 %v5158, %v5160
        %v5162 = vrot.slane %v5148, %v5161
        %v5163 = vcombine.high %v5155, 0.0
        %v5165 = vunpack.c.l.s4 1934713408
        %v5166 = vunpack.c.0.s8 %v5165
        %v5167 = vlaneseq
        %v5168 = vshrl.u32 %v5167, 7
        %v5169 = vsub.s32 %v5166, %v5168
        %v5170 = vrot.slane %v5155, %v5169
        %v5172 = vunpack.c.l.s4 1934713408
        %v5173 = vunpack.c.0.s8 %v5172
        %v5174 = vlaneseq
        %v5175 = vshrl.u32 %v5174, 7
        %v5176 = vsub.s32 %v5173, %v5175
        %v5177 = vrot.slane %v5163, %v5176
        %v5178 = vcombine.high %v5162, 0.0
        %v5180 = vunpack.c.l.s4 1934713408
        %v5181 = vunpack.c.0.s8 %v5180
        %v5182 = vlaneseq
        %v5183 = vshrl.u32 %v5182, 7
        %v5184 = vsub.s32 %v5181, %v5183
        %v5185 = vrot.slane %v5162, %v5184
        %v5187 = vunpack.c.l.s4 1934713408
        %v5188 = vunpack.c.0.s8 %v5187
        %v5189 = vlaneseq
        %v5190 = vshrl.u32 %v5189, 7
        %v5191 = vsub.s32 %v5188, %v5190
        %v5192 = vrot.slane %v5178, %v5191
        %v5193 = vcombine.high %v5170, 0.0
        %v5194 = vcombine.high %v5177, 0.0
        %v5195 = vcombine.high %v5185, 0.0
        %v5196 = vcombine.high %v5192, 0.0
        %v5197 = vcombine.high %v5049, 0.0
        %v5199 = vunpack.c.l.s4 1983009808
        %v5200 = vunpack.c.0.s8 %v5199
        %v5201 = vlaneseq
        %v5202 = vshrl.u32 %v5201, 7
        %v5203 = vsub.s32 %v5200, %v5202
        %v5204 = vrot.slane %v5049, %v5203
        %v5206 = vunpack.c.l.s4 1983009808
        %v5207 = vunpack.c.0.s8 %v5206
        %v5208 = vlaneseq
        %v5209 = vshrl.u32 %v5208, 7
        %v5210 = vsub.s32 %v5207, %v5209
        %v5211 = vrot.slane %v5197, %v5210
        %v5212 = vcombine.high %v5204, 0.0
        %v5214 = vunpack.c.l.s4 1934713408
        %v5215 = vunpack.c.0.s8 %v5214
        %v5216 = vlaneseq
        %v5217 = vshrl.u32 %v5216, 7
        %v5218 = vsub.s32 %v5215, %v5217
        %v5219 = vrot.slane %v5204, %v5218
        %v5221 = vunpack.c.l.s4 1934713408
        %v5222 = vunpack.c.0.s8 %v5221
        %v5223 = vlaneseq
        %v5224 = vshrl.u32 %v5223, 7
        %v5225 = vsub.s32 %v5222, %v5224
        %v5226 = vrot.slane %v5212, %v5225
        %v5227 = vcombine.high %v5211, 0.0
        %v5229 = vunpack.c.l.s4 1934713408
        %v5230 = vunpack.c.0.s8 %v5229
        %v5231 = vlaneseq
        %v5232 = vshrl.u32 %v5231, 7
        %v5233 = vsub.s32 %v5230, %v5232
        %v5234 = vrot.slane %v5211, %v5233
        %v5236 = vunpack.c.l.s4 1934713408
        %v5237 = vunpack.c.0.s8 %v5236
        %v5238 = vlaneseq
        %v5239 = vshrl.u32 %v5238, 7
        %v5240 = vsub.s32 %v5237, %v5239
        %v5241 = vrot.slane %v5227, %v5240
        %v5242 = vcombine.high %v5219, 0.0
        %v5243 = vcombine.high %v5226, 0.0
        %v5244 = vcombine.high %v5234, 0.0
        %v5245 = vcombine.high %v5241, 0.0
        %5250 = vrot.lane.b32.xlu0 %v5095, 8
        %v5251 = vpop.permute.xlu0 %5250
        %5252 = vrot.lane.b32.xlu0 %v5144, 8
        %v5253 = vpop.permute.xlu0 %5252
        %5254 = vrot.lane.b32.xlu0 %v5193, 8
        %v5255 = vpop.permute.xlu0 %5254
        %5256 = vrot.lane.b32.xlu0 %v5242, 8
        %v5257 = vpop.permute.xlu0 %5256
        %5266 = vrot.lane.b32.xlu0 %v5079, 16
        %v5267 = vpop.permute.xlu0 %5266
        %5268 = vrot.lane.b32.xlu0 %v5128, 16
        %v5269 = vpop.permute.xlu0 %5268
        %5270 = vrot.lane.b32.xlu0 %v5177, 16
        %v5271 = vpop.permute.xlu0 %5270
        %5272 = vrot.lane.b32.xlu0 %v5226, 16
        %v5273 = vpop.permute.xlu0 %5272
        %5282 = vrot.lane.b32.xlu0 %v5096, 24
        %v5283 = vpop.permute.xlu0 %5282
        %5284 = vrot.lane.b32.xlu0 %v5145, 24
        %v5285 = vpop.permute.xlu0 %5284
        %5286 = vrot.lane.b32.xlu0 %v5194, 24
        %v5287 = vpop.permute.xlu0 %5286
        %5288 = vrot.lane.b32.xlu0 %v5243, 24
        %v5289 = vpop.permute.xlu0 %5288
        %5298 = vrot.lane.b32.xlu0 %v5087, 32
        %v5299 = vpop.permute.xlu0 %5298
        %5300 = vrot.lane.b32.xlu0 %v5136, 32
        %v5301 = vpop.permute.xlu0 %5300
        %5302 = vrot.lane.b32.xlu0 %v5185, 32
        %v5303 = vpop.permute.xlu0 %5302
        %5304 = vrot.lane.b32.xlu0 %v5234, 32
        %v5305 = vpop.permute.xlu0 %5304
        %5314 = vrot.lane.b32.xlu0 %v5097, 40
        %v5315 = vpop.permute.xlu0 %5314
        %5316 = vrot.lane.b32.xlu0 %v5146, 40
        %v5317 = vpop.permute.xlu0 %5316
        %5318 = vrot.lane.b32.xlu0 %v5195, 40
        %v5319 = vpop.permute.xlu0 %5318
        %5320 = vrot.lane.b32.xlu0 %v5244, 40
        %v5321 = vpop.permute.xlu0 %5320
        %5330 = vrot.lane.b32.xlu0 %v5094, 48
        %v5331 = vpop.permute.xlu0 %5330
        %5332 = vrot.lane.b32.xlu0 %v5143, 48
        %v5333 = vpop.permute.xlu0 %5332
        %5334 = vrot.lane.b32.xlu0 %v5192, 48
        %v5335 = vpop.permute.xlu0 %5334
        %5336 = vrot.lane.b32.xlu0 %v5241, 48
        %v5337 = vpop.permute.xlu0 %5336
        %5346 = vrot.lane.b32.xlu0 %v5098, 56
        %v5347 = vpop.permute.xlu0 %5346
        %5348 = vrot.lane.b32.xlu0 %v5147, 56
        %v5349 = vpop.permute.xlu0 %5348
        %5350 = vrot.lane.b32.xlu0 %v5196, 56
        %v5351 = vpop.permute.xlu0 %5350
        %5352 = vrot.lane.b32.xlu0 %v5245, 56
        %v5353 = vpop.permute.xlu0 %5352
        %v5358 = vsel %vm1575, %v5072, %v5251
        %v5359 = vsel %vm1575, %v5121, %v5253
        %v5360 = vsel %vm1575, %v5170, %v5255
        %v5361 = vsel %vm1575, %v5219, %v5257
        %v5362 = vsel %vm2564, %v5358, %v5267
        %v5363 = vsel %vm2564, %v5359, %v5269
        %v5364 = vsel %vm2564, %v5360, %v5271
        %v5365 = vsel %vm2564, %v5361, %v5273
        %v5366 = vsel %vm2569, %v5362, %v5283
        %v5367 = vsel %vm2569, %v5363, %v5285
        %v5368 = vsel %vm2569, %v5364, %v5287
        %v5369 = vsel %vm2569, %v5365, %v5289
        %v5370 = vsel %vm487, %v5366, %v5299
        %v5371 = vsel %vm487, %v5367, %v5301
        %v5372 = vsel %vm487, %v5368, %v5303
        %v5373 = vsel %vm487, %v5369, %v5305
        %v5374 = vsel %vm2578, %v5370, %v5315
        %v5375 = vsel %vm2578, %v5371, %v5317
        %v5376 = vsel %vm2578, %v5372, %v5319
        %v5377 = vsel %vm2578, %v5373, %v5321
        %v5378 = vsel %vm2583, %v5374, %v5331
        %v5379 = vsel %vm2583, %v5375, %v5333
        %v5380 = vsel %vm2583, %v5376, %v5335
        %v5381 = vsel %vm2583, %v5377, %v5337
        %v5382 = vsel %vm2588, %v5378, %v5347
        %v5383 = vsel %vm2588, %v5379, %v5349
        %v5384 = vsel %vm2588, %v5380, %v5351
        %v5385 = vsel %vm2588, %v5381, %v5353
        %5386 = vst.msk [vmem:[%s473 + $0x2] sm:$0x1] %vm2593, %v5382
        %5387 = vst.msk [vmem:[%s473 + $0x6] sm:$0x1] %vm2593, %v5383
        %5388 = vst.msk [vmem:[%s473 + $0xa] sm:$0x1] %vm2593, %v5384
        %5389 = vst.msk [vmem:[%s473 + $0xe] sm:$0x1] %vm2593, %v5385
        %v5390 = vld [vmem:[#allocation2] sm:$0xff]
        %v5391 = vld [vmem:[#allocation2 + $0x8] sm:$0xff]
        %v5392 = vld [vmem:[#allocation2 + $0x10] sm:$0xff]
        %v5393 = vld [vmem:[#allocation2 + $0x18] sm:$0xff]
        %v5394 = vld [vmem:[#allocation2 + $0x20] sm:$0xff]
        %v5395 = vld [vmem:[#allocation2 + $0x28] sm:$0xff]
        %v5396 = vld [vmem:[#allocation2 + $0x30] sm:$0xff]
        %v5397 = vld [vmem:[#allocation2 + $0x38] sm:$0xff]
        %v5398 = vld [vmem:[%s429 + $0x3] sm:$0x1]
        %v5399 = vld [vmem:[%s429 + $0x7] sm:$0x1]
        %v5400 = vld [vmem:[%s429 + $0xb] sm:$0x1]
        %v5401 = vld [vmem:[%s429 + $0xf] sm:$0x1]
        %5406 = vrot.lane.b32.xlu0 %v5398, 120
        %v5407 = vpop.permute.xlu0 %5406
        %5408 = vrot.lane.b32.xlu0 %v5399, 120
        %v5409 = vpop.permute.xlu0 %5408
        %5410 = vrot.lane.b32.xlu0 %v5400, 120
        %v5411 = vpop.permute.xlu0 %5410
        %5412 = vrot.lane.b32.xlu0 %v5401, 120
        %v5413 = vpop.permute.xlu0 %5412
        %5418 = vrot.lane.b32.xlu0 %v5398, 112
        %v5419 = vpop.permute.xlu0 %5418
        %5420 = vrot.lane.b32.xlu0 %v5399, 112
        %v5421 = vpop.permute.xlu0 %5420
        %5422 = vrot.lane.b32.xlu0 %v5400, 112
        %v5423 = vpop.permute.xlu0 %5422
        %5424 = vrot.lane.b32.xlu0 %v5401, 112
        %v5425 = vpop.permute.xlu0 %5424
        %5430 = vrot.lane.b32.xlu0 %v5398, 104
        %v5431 = vpop.permute.xlu0 %5430
        %5432 = vrot.lane.b32.xlu0 %v5399, 104
        %v5433 = vpop.permute.xlu0 %5432
        %5434 = vrot.lane.b32.xlu0 %v5400, 104
        %v5435 = vpop.permute.xlu0 %5434
        %5436 = vrot.lane.b32.xlu0 %v5401, 104
        %v5437 = vpop.permute.xlu0 %5436
        %5442 = vrot.lane.b32.xlu0 %v5398, 96
        %v5443 = vpop.permute.xlu0 %5442
        %5444 = vrot.lane.b32.xlu0 %v5399, 96
        %v5445 = vpop.permute.xlu0 %5444
        %5446 = vrot.lane.b32.xlu0 %v5400, 96
        %v5447 = vpop.permute.xlu0 %5446
        %5448 = vrot.lane.b32.xlu0 %v5401, 96
        %v5449 = vpop.permute.xlu0 %5448
        %5454 = vrot.lane.b32.xlu0 %v5398, 88
        %v5455 = vpop.permute.xlu0 %5454
        %5456 = vrot.lane.b32.xlu0 %v5399, 88
        %v5457 = vpop.permute.xlu0 %5456
        %5458 = vrot.lane.b32.xlu0 %v5400, 88
        %v5459 = vpop.permute.xlu0 %5458
        %5460 = vrot.lane.b32.xlu0 %v5401, 88
        %v5461 = vpop.permute.xlu0 %5460
        %5466 = vrot.lane.b32.xlu0 %v5398, 80
        %v5467 = vpop.permute.xlu0 %5466
        %5468 = vrot.lane.b32.xlu0 %v5399, 80
        %v5469 = vpop.permute.xlu0 %5468
        %5470 = vrot.lane.b32.xlu0 %v5400, 80
        %v5471 = vpop.permute.xlu0 %5470
        %5472 = vrot.lane.b32.xlu0 %v5401, 80
        %v5473 = vpop.permute.xlu0 %5472
        %5478 = vrot.lane.b32.xlu0 %v5398, 72
        %v5479 = vpop.permute.xlu0 %5478
        %5480 = vrot.lane.b32.xlu0 %v5399, 72
        %v5481 = vpop.permute.xlu0 %5480
        %5482 = vrot.lane.b32.xlu0 %v5400, 72
        %v5483 = vpop.permute.xlu0 %5482
        %5484 = vrot.lane.b32.xlu0 %v5401, 72
        %v5485 = vpop.permute.xlu0 %5484
        %v5490 = vcombine.low %v5398, %v5419
        %v5492 = vunpack.c.l.s4 1983009808
        %v5493 = vunpack.c.0.s8 %v5492
        %v5494 = vlaneseq
        %v5495 = vshrl.u32 %v5494, 7
        %v5496 = vsub.s32 %v5493, %v5495
        %v5497 = vrot.slane %v5490, %v5496
        %v5498 = vcombine.low %v5407, %v5431
        %v5500 = vunpack.c.l.s4 1983009808
        %v5501 = vunpack.c.0.s8 %v5500
        %v5502 = vlaneseq
        %v5503 = vshrl.u32 %v5502, 7
        %v5504 = vsub.s32 %v5501, %v5503
        %v5505 = vrot.slane %v5498, %v5504
        %v5506 = vcombine.low %v5443, %v5467
        %v5508 = vunpack.c.l.s4 1983009808
        %v5509 = vunpack.c.0.s8 %v5508
        %v5510 = vlaneseq
        %v5511 = vshrl.u32 %v5510, 7
        %v5512 = vsub.s32 %v5509, %v5511
        %v5513 = vrot.slane %v5506, %v5512
        %v5514 = vcombine.low %v5455, %v5479
        %v5516 = vunpack.c.l.s4 1983009808
        %v5517 = vunpack.c.0.s8 %v5516
        %v5518 = vlaneseq
        %v5519 = vshrl.u32 %v5518, 7
        %v5520 = vsub.s32 %v5517, %v5519
        %v5521 = vrot.slane %v5514, %v5520
        %v5522 = vcombine.low %v5497, %v5505
        %v5524 = vunpack.c.l.s4 1934713408
        %v5525 = vunpack.c.0.s8 %v5524
        %v5526 = vlaneseq
        %v5527 = vshrl.u32 %v5526, 7
        %v5528 = vsub.s32 %v5525, %v5527
        %v5529 = vrot.slane %v5522, %v5528
        %v5530 = vcombine.low %v5513, %v5521
        %v5532 = vunpack.c.l.s4 1934713408
        %v5533 = vunpack.c.0.s8 %v5532
        %v5534 = vlaneseq
        %v5535 = vshrl.u32 %v5534, 7
        %v5536 = vsub.s32 %v5533, %v5535
        %v5537 = vrot.slane %v5530, %v5536
        %v5538 = vcombine.low %v5529, %v5537
        %v5539 = vcombine.low %v5399, %v5421
        %v5541 = vunpack.c.l.s4 1983009808
        %v5542 = vunpack.c.0.s8 %v5541
        %v5543 = vlaneseq
        %v5544 = vshrl.u32 %v5543, 7
        %v5545 = vsub.s32 %v5542, %v5544
        %v5546 = vrot.slane %v5539, %v5545
        %v5547 = vcombine.low %v5409, %v5433
        %v5549 = vunpack.c.l.s4 1983009808
        %v5550 = vunpack.c.0.s8 %v5549
        %v5551 = vlaneseq
        %v5552 = vshrl.u32 %v5551, 7
        %v5553 = vsub.s32 %v5550, %v5552
        %v5554 = vrot.slane %v5547, %v5553
        %v5555 = vcombine.low %v5445, %v5469
        %v5557 = vunpack.c.l.s4 1983009808
        %v5558 = vunpack.c.0.s8 %v5557
        %v5559 = vlaneseq
        %v5560 = vshrl.u32 %v5559, 7
        %v5561 = vsub.s32 %v5558, %v5560
        %v5562 = vrot.slane %v5555, %v5561
        %v5563 = vcombine.low %v5457, %v5481
        %v5565 = vunpack.c.l.s4 1983009808
        %v5566 = vunpack.c.0.s8 %v5565
        %v5567 = vlaneseq
        %v5568 = vshrl.u32 %v5567, 7
        %v5569 = vsub.s32 %v5566, %v5568
        %v5570 = vrot.slane %v5563, %v5569
        %v5571 = vcombine.low %v5546, %v5554
        %v5573 = vunpack.c.l.s4 1934713408
        %v5574 = vunpack.c.0.s8 %v5573
        %v5575 = vlaneseq
        %v5576 = vshrl.u32 %v5575, 7
        %v5577 = vsub.s32 %v5574, %v5576
        %v5578 = vrot.slane %v5571, %v5577
        %v5579 = vcombine.low %v5562, %v5570
        %v5581 = vunpack.c.l.s4 1934713408
        %v5582 = vunpack.c.0.s8 %v5581
        %v5583 = vlaneseq
        %v5584 = vshrl.u32 %v5583, 7
        %v5585 = vsub.s32 %v5582, %v5584
        %v5586 = vrot.slane %v5579, %v5585
        %v5587 = vcombine.low %v5578, %v5586
        %v5588 = vcombine.low %v5400, %v5423
        %v5590 = vunpack.c.l.s4 1983009808
        %v5591 = vunpack.c.0.s8 %v5590
        %v5592 = vlaneseq
        %v5593 = vshrl.u32 %v5592, 7
        %v5594 = vsub.s32 %v5591, %v5593
        %v5595 = vrot.slane %v5588, %v5594
        %v5596 = vcombine.low %v5411, %v5435
        %v5598 = vunpack.c.l.s4 1983009808
        %v5599 = vunpack.c.0.s8 %v5598
        %v5600 = vlaneseq
        %v5601 = vshrl.u32 %v5600, 7
        %v5602 = vsub.s32 %v5599, %v5601
        %v5603 = vrot.slane %v5596, %v5602
        %v5604 = vcombine.low %v5447, %v5471
        %v5606 = vunpack.c.l.s4 1983009808
        %v5607 = vunpack.c.0.s8 %v5606
        %v5608 = vlaneseq
        %v5609 = vshrl.u32 %v5608, 7
        %v5610 = vsub.s32 %v5607, %v5609
        %v5611 = vrot.slane %v5604, %v5610
        %v5612 = vcombine.low %v5459, %v5483
        %v5614 = vunpack.c.l.s4 1983009808
        %v5615 = vunpack.c.0.s8 %v5614
        %v5616 = vlaneseq
        %v5617 = vshrl.u32 %v5616, 7
        %v5618 = vsub.s32 %v5615, %v5617
        %v5619 = vrot.slane %v5612, %v5618
        %v5620 = vcombine.low %v5595, %v5603
        %v5622 = vunpack.c.l.s4 1934713408
        %v5623 = vunpack.c.0.s8 %v5622
        %v5624 = vlaneseq
        %v5625 = vshrl.u32 %v5624, 7
        %v5626 = vsub.s32 %v5623, %v5625
        %v5627 = vrot.slane %v5620, %v5626
        %v5628 = vcombine.low %v5611, %v5619
        %v5630 = vunpack.c.l.s4 1934713408
        %v5631 = vunpack.c.0.s8 %v5630
        %v5632 = vlaneseq
        %v5633 = vshrl.u32 %v5632, 7
        %v5634 = vsub.s32 %v5631, %v5633
        %v5635 = vrot.slane %v5628, %v5634
        %v5636 = vcombine.low %v5627, %v5635
        %v5637 = vcombine.low %v5401, %v5425
        %v5639 = vunpack.c.l.s4 1983009808
        %v5640 = vunpack.c.0.s8 %v5639
        %v5641 = vlaneseq
        %v5642 = vshrl.u32 %v5641, 7
        %v5643 = vsub.s32 %v5640, %v5642
        %v5644 = vrot.slane %v5637, %v5643
        %v5645 = vcombine.low %v5413, %v5437
        %v5647 = vunpack.c.l.s4 1983009808
        %v5648 = vunpack.c.0.s8 %v5647
        %v5649 = vlaneseq
        %v5650 = vshrl.u32 %v5649, 7
        %v5651 = vsub.s32 %v5648, %v5650
        %v5652 = vrot.slane %v5645, %v5651
        %v5653 = vcombine.low %v5449, %v5473
        %v5655 = vunpack.c.l.s4 1983009808
        %v5656 = vunpack.c.0.s8 %v5655
        %v5657 = vlaneseq
        %v5658 = vshrl.u32 %v5657, 7
        %v5659 = vsub.s32 %v5656, %v5658
        %v5660 = vrot.slane %v5653, %v5659
        %v5661 = vcombine.low %v5461, %v5485
        %v5663 = vunpack.c.l.s4 1983009808
        %v5664 = vunpack.c.0.s8 %v5663
        %v5665 = vlaneseq
        %v5666 = vshrl.u32 %v5665, 7
        %v5667 = vsub.s32 %v5664, %v5666
        %v5668 = vrot.slane %v5661, %v5667
        %v5669 = vcombine.low %v5644, %v5652
        %v5671 = vunpack.c.l.s4 1934713408
        %v5672 = vunpack.c.0.s8 %v5671
        %v5673 = vlaneseq
        %v5674 = vshrl.u32 %v5673, 7
        %v5675 = vsub.s32 %v5672, %v5674
        %v5676 = vrot.slane %v5669, %v5675
        %v5677 = vcombine.low %v5660, %v5668
        %v5679 = vunpack.c.l.s4 1934713408
        %v5680 = vunpack.c.0.s8 %v5679
        %v5681 = vlaneseq
        %v5682 = vshrl.u32 %v5681, 7
        %v5683 = vsub.s32 %v5680, %v5682
        %v5684 = vrot.slane %v5677, %v5683
        %v5685 = vcombine.low %v5676, %v5684
        %v5686 = vcombine.low %v5538, %v5636
        %v5687 = vcombine.high %v5538, %v5636
        %v5689 = vunpack.c.l.s4 1983009808
        %v5690 = vunpack.c.0.s8 %v5689
        %v5691 = vlaneseq
        %v5692 = vshrl.u32 %v5691, 7
        %v5693 = vsub.s32 %v5690, %v5692
        %v5694 = vrot.slane %v5686, %v5693
        %v5696 = vunpack.c.l.s4 1983009808
        %v5697 = vunpack.c.0.s8 %v5696
        %v5698 = vlaneseq
        %v5699 = vshrl.u32 %v5698, 7
        %v5700 = vsub.s32 %v5697, %v5699
        %v5701 = vrot.slane %v5687, %v5700
        %v5702 = vcombine.low %v5587, %v5685
        %v5703 = vcombine.high %v5587, %v5685
        %v5705 = vunpack.c.l.s4 1983009808
        %v5706 = vunpack.c.0.s8 %v5705
        %v5707 = vlaneseq
        %v5708 = vshrl.u32 %v5707, 7
        %v5709 = vsub.s32 %v5706, %v5708
        %v5710 = vrot.slane %v5702, %v5709
        %v5712 = vunpack.c.l.s4 1983009808
        %v5713 = vunpack.c.0.s8 %v5712
        %v5714 = vlaneseq
        %v5715 = vshrl.u32 %v5714, 7
        %v5716 = vsub.s32 %v5713, %v5715
        %v5717 = vrot.slane %v5703, %v5716
        %v5718 = vcombine.low %v5694, %v5710
        %v5719 = vcombine.high %v5694, %v5710
        %v5721 = vunpack.c.l.s4 1934713408
        %v5722 = vunpack.c.0.s8 %v5721
        %v5723 = vlaneseq
        %v5724 = vshrl.u32 %v5723, 7
        %v5725 = vsub.s32 %v5722, %v5724
        %v5726 = vrot.slane %v5718, %v5725
        %v5728 = vunpack.c.l.s4 1934713408
        %v5729 = vunpack.c.0.s8 %v5728
        %v5730 = vlaneseq
        %v5731 = vshrl.u32 %v5730, 7
        %v5732 = vsub.s32 %v5729, %v5731
        %v5733 = vrot.slane %v5719, %v5732
        %v5734 = vcombine.low %v5701, %v5717
        %v5735 = vcombine.high %v5701, %v5717
        %v5737 = vunpack.c.l.s4 1934713408
        %v5738 = vunpack.c.0.s8 %v5737
        %v5739 = vlaneseq
        %v5740 = vshrl.u32 %v5739, 7
        %v5741 = vsub.s32 %v5738, %v5740
        %v5742 = vrot.slane %v5734, %v5741
        %v5744 = vunpack.c.l.s4 1934713408
        %v5745 = vunpack.c.0.s8 %v5744
        %v5746 = vlaneseq
        %v5747 = vshrl.u32 %v5746, 7
        %v5748 = vsub.s32 %v5745, %v5747
        %v5749 = vrot.slane %v5735, %v5748
        %v5750 = vcombine.high %v5726, 0.0
        %v5751 = vcombine.high %v5733, 0.0
        %v5752 = vcombine.high %v5742, 0.0
        %v5753 = vcombine.high %v5749, 0.0
        %5755 = vrot.lane.b32.xlu0 %v5390, 104
        %v5756 = vpop.permute.xlu0 %5755
        %v5758 = vsel %vm1575, %v5726, 0
        %v5760 = vsel %vm1575, %v5756, 0
        %5762 = vmatprep.subr.mxu0 0.0
        %5763 = vmatpush1.xpose.msra.mxu0 0.0
        %5764 = vmatprep.subr.mxu0 0.0
        %5765 = vmatpush1.xpose.msra.mxu0 0.0
        %5766 = vmatprep.subr.mxu0 0.0
        %5767 = vmatpush1.xpose.msra.mxu0 0.0
        %5768 = vmatprep.subr.mxu0 0.0
        %5769 = vmatpush1.xpose.msra.mxu0 0.0
        %5770 = vmatprep.subr.mxu0 0.0
        %5771 = vmatpush1.xpose.msra.mxu0 0.0
        %5772 = vmatprep.subr.mxu0 0.0
        %5773 = vmatpush1.xpose.msra.mxu0 0.0
        %5774 = vmatprep.subr.mxu0 0.0
        %5775 = vmatpush1.xpose.msra.mxu0 0.0
        %5776 = vmatprep.subr.mxu0 0.0
        %5777 = vmatpush1.xpose.msra.mxu0 0.0
        %5778 = vmatprep.subr.mxu0 0.0
        %5779 = vmatpush1.xpose.msra.mxu0 0.0
        %5780 = vmatprep.subr.mxu0 0.0
        %5781 = vmatpush1.xpose.msra.mxu0 0.0
        %5782 = vmatprep.subr.mxu0 0.0
        %5783 = vmatpush1.xpose.msra.mxu0 0.0
        %5784 = vmatprep.subr.mxu0 0.0
        %5785 = vmatpush1.xpose.msra.mxu0 0.0
        %5786 = vmatprep.subr.mxu0 0.0
        %5787 = vmatpush1.xpose.msra.mxu0 0.0
        %5788 = vmatprep.subr.mxu0 0.0
        %5789 = vmatpush1.xpose.msra.mxu0 0.0
        %5790 = vmatprep.subr.mxu0 0.0
        %5791 = vmatpush1.xpose.msra.mxu0 0.0
        %5792 = vmatprep.subr.mxu0 0.0
        %5793 = vmatpush1.xpose.msra.mxu0 %v5760
        %5794 = vmatprep.subr.mxu0 0.0
        %5795 = vmatpush2.xpose.msra.mxu0 0.0
        %5796 = vmatprep.subr.mxu0 0.0
        %5797 = vmatpush2.xpose.msra.mxu0 0.0
        %5798 = vmatprep.subr.mxu0 0.0
        %5799 = vmatpush2.xpose.msra.mxu0 0.0
        %5800 = vmatprep.subr.mxu0 0.0
        %5801 = vmatpush2.xpose.msra.mxu0 0.0
        %5802 = vmatprep.subr.mxu0 0.0
        %5803 = vmatpush2.xpose.msra.mxu0 0.0
        %5804 = vmatprep.subr.mxu0 0.0
        %5805 = vmatpush2.xpose.msra.mxu0 0.0
        %5806 = vmatprep.subr.mxu0 0.0
        %5807 = vmatpush2.xpose.msra.mxu0 0.0
        %5808 = vmatprep.subr.mxu0 0.0
        %5809 = vmatpush2.xpose.msra.mxu0 0.0
        %5810 = vmatprep.subr.mxu0 0.0
        %5811 = vmatpush2.xpose.msra.mxu0 0.0
        %5812 = vmatprep.subr.mxu0 0.0
        %5813 = vmatpush2.xpose.msra.mxu0 0.0
        %5814 = vmatprep.subr.mxu0 0.0
        %5815 = vmatpush2.xpose.msra.mxu0 0.0
        %5816 = vmatprep.subr.mxu0 0.0
        %5817 = vmatpush2.xpose.msra.mxu0 0.0
        %5818 = vmatprep.subr.mxu0 0.0
        %5819 = vmatpush2.xpose.msra.mxu0 0.0
        %5820 = vmatprep.subr.mxu0 0.0
        %5821 = vmatpush2.xpose.msra.mxu0 0.0
        %5822 = vmatprep.subr.mxu0 0.0
        %5823 = vmatpush2.xpose.msra.mxu0 0.0
        %5824 = vmatprep.subr.mxu0 0.0
        %5825 = vmatpush2.xpose.msra.mxu0 0.0
        %5826 = vmatprep.mubr.f32.mxu0 0.0
        %5827 = vmatmul.mubr.f32.gmra.mxu0 %v5758
        %v5828 = vpop.f32.mrf.mxu0
        %v5829 = vadd.f32 0.0, %v5828
        %v5830 = vpop.f32.mrf.mxu0
        %5831 = vdwg.mxu0
        %5833 = vrot.lane.b32.xlu0 %v5391, 104
        %v5834 = vpop.permute.xlu0 %5833
        %v5836 = vsel %vm1575, %v5750, 0
        %v5838 = vsel %vm1575, %v5834, 0
        %5840 = vmatprep.subr.mxu0 0.0
        %5841 = vmatpush1.xpose.msra.mxu0 0.0
        %5842 = vmatprep.subr.mxu0 0.0
        %5843 = vmatpush1.xpose.msra.mxu0 0.0
        %5844 = vmatprep.subr.mxu0 0.0
        %5845 = vmatpush1.xpose.msra.mxu0 0.0
        %5846 = vmatprep.subr.mxu0 0.0
        %5847 = vmatpush1.xpose.msra.mxu0 0.0
        %5848 = vmatprep.subr.mxu0 0.0
        %5849 = vmatpush1.xpose.msra.mxu0 0.0
        %5850 = vmatprep.subr.mxu0 0.0
        %5851 = vmatpush1.xpose.msra.mxu0 0.0
        %5852 = vmatprep.subr.mxu0 0.0
        %5853 = vmatpush1.xpose.msra.mxu0 0.0
        %5854 = vmatprep.subr.mxu0 0.0
        %5855 = vmatpush1.xpose.msra.mxu0 0.0
        %5856 = vmatprep.subr.mxu0 0.0
        %5857 = vmatpush1.xpose.msra.mxu0 0.0
        %5858 = vmatprep.subr.mxu0 0.0
        %5859 = vmatpush1.xpose.msra.mxu0 0.0
        %5860 = vmatprep.subr.mxu0 0.0
        %5861 = vmatpush1.xpose.msra.mxu0 0.0
        %5862 = vmatprep.subr.mxu0 0.0
        %5863 = vmatpush1.xpose.msra.mxu0 0.0
        %5864 = vmatprep.subr.mxu0 0.0
        %5865 = vmatpush1.xpose.msra.mxu0 0.0
        %5866 = vmatprep.subr.mxu0 0.0
        %5867 = vmatpush1.xpose.msra.mxu0 0.0
        %5868 = vmatprep.subr.mxu0 0.0
        %5869 = vmatpush1.xpose.msra.mxu0 0.0
        %5870 = vmatprep.subr.mxu0 0.0
        %5871 = vmatpush1.xpose.msra.mxu0 %v5838
        %5872 = vmatprep.subr.mxu0 0.0
        %5873 = vmatpush2.xpose.msra.mxu0 0.0
        %5874 = vmatprep.subr.mxu0 0.0
        %5875 = vmatpush2.xpose.msra.mxu0 0.0
        %5876 = vmatprep.subr.mxu0 0.0
        %5877 = vmatpush2.xpose.msra.mxu0 0.0
        %5878 = vmatprep.subr.mxu0 0.0
        %5879 = vmatpush2.xpose.msra.mxu0 0.0
        %5880 = vmatprep.subr.mxu0 0.0
        %5881 = vmatpush2.xpose.msra.mxu0 0.0
        %5882 = vmatprep.subr.mxu0 0.0
        %5883 = vmatpush2.xpose.msra.mxu0 0.0
        %5884 = vmatprep.subr.mxu0 0.0
        %5885 = vmatpush2.xpose.msra.mxu0 0.0
        %5886 = vmatprep.subr.mxu0 0.0
        %5887 = vmatpush2.xpose.msra.mxu0 0.0
        %5888 = vmatprep.subr.mxu0 0.0
        %5889 = vmatpush2.xpose.msra.mxu0 0.0
        %5890 = vmatprep.subr.mxu0 0.0
        %5891 = vmatpush2.xpose.msra.mxu0 0.0
        %5892 = vmatprep.subr.mxu0 0.0
        %5893 = vmatpush2.xpose.msra.mxu0 0.0
        %5894 = vmatprep.subr.mxu0 0.0
        %5895 = vmatpush2.xpose.msra.mxu0 0.0
        %5896 = vmatprep.subr.mxu0 0.0
        %5897 = vmatpush2.xpose.msra.mxu0 0.0
        %5898 = vmatprep.subr.mxu0 0.0
        %5899 = vmatpush2.xpose.msra.mxu0 0.0
        %5900 = vmatprep.subr.mxu0 0.0
        %5901 = vmatpush2.xpose.msra.mxu0 0.0
        %5902 = vmatprep.subr.mxu0 0.0
        %5903 = vmatpush2.xpose.msra.mxu0 0.0
        %5904 = vmatprep.mubr.f32.mxu0 0.0
        %5905 = vmatmul.mubr.f32.gmra.mxu0 %v5836
        %v5906 = vpop.f32.mrf.mxu0
        %v5907 = vadd.f32 0.0, %v5906
        %v5908 = vpop.f32.mrf.mxu0
        %5909 = vdwg.mxu0
        %5911 = vrot.lane.b32.xlu0 %v5392, 104
        %v5912 = vpop.permute.xlu0 %5911
        %v5914 = vsel %vm1575, %v5733, 0
        %v5916 = vsel %vm1575, %v5912, 0
        %5918 = vmatprep.subr.mxu0 0.0
        %5919 = vmatpush1.xpose.msra.mxu0 0.0
        %5920 = vmatprep.subr.mxu0 0.0
        %5921 = vmatpush1.xpose.msra.mxu0 0.0
        %5922 = vmatprep.subr.mxu0 0.0
        %5923 = vmatpush1.xpose.msra.mxu0 0.0
        %5924 = vmatprep.subr.mxu0 0.0
        %5925 = vmatpush1.xpose.msra.mxu0 0.0
        %5926 = vmatprep.subr.mxu0 0.0
        %5927 = vmatpush1.xpose.msra.mxu0 0.0
        %5928 = vmatprep.subr.mxu0 0.0
        %5929 = vmatpush1.xpose.msra.mxu0 0.0
        %5930 = vmatprep.subr.mxu0 0.0
        %5931 = vmatpush1.xpose.msra.mxu0 0.0
        %5932 = vmatprep.subr.mxu0 0.0
        %5933 = vmatpush1.xpose.msra.mxu0 0.0
        %5934 = vmatprep.subr.mxu0 0.0
        %5935 = vmatpush1.xpose.msra.mxu0 0.0
        %5936 = vmatprep.subr.mxu0 0.0
        %5937 = vmatpush1.xpose.msra.mxu0 0.0
        %5938 = vmatprep.subr.mxu0 0.0
        %5939 = vmatpush1.xpose.msra.mxu0 0.0
        %5940 = vmatprep.subr.mxu0 0.0
        %5941 = vmatpush1.xpose.msra.mxu0 0.0
        %5942 = vmatprep.subr.mxu0 0.0
        %5943 = vmatpush1.xpose.msra.mxu0 0.0
        %5944 = vmatprep.subr.mxu0 0.0
        %5945 = vmatpush1.xpose.msra.mxu0 0.0
        %5946 = vmatprep.subr.mxu0 0.0
        %5947 = vmatpush1.xpose.msra.mxu0 0.0
        %5948 = vmatprep.subr.mxu0 0.0
        %5949 = vmatpush1.xpose.msra.mxu0 %v5916
        %5950 = vmatprep.subr.mxu0 0.0
        %5951 = vmatpush2.xpose.msra.mxu0 0.0
        %5952 = vmatprep.subr.mxu0 0.0
        %5953 = vmatpush2.xpose.msra.mxu0 0.0
        %5954 = vmatprep.subr.mxu0 0.0
        %5955 = vmatpush2.xpose.msra.mxu0 0.0
        %5956 = vmatprep.subr.mxu0 0.0
        %5957 = vmatpush2.xpose.msra.mxu0 0.0
        %5958 = vmatprep.subr.mxu0 0.0
        %5959 = vmatpush2.xpose.msra.mxu0 0.0
        %5960 = vmatprep.subr.mxu0 0.0
        %5961 = vmatpush2.xpose.msra.mxu0 0.0
        %5962 = vmatprep.subr.mxu0 0.0
        %5963 = vmatpush2.xpose.msra.mxu0 0.0
        %5964 = vmatprep.subr.mxu0 0.0
        %5965 = vmatpush2.xpose.msra.mxu0 0.0
        %5966 = vmatprep.subr.mxu0 0.0
        %5967 = vmatpush2.xpose.msra.mxu0 0.0
        %5968 = vmatprep.subr.mxu0 0.0
        %5969 = vmatpush2.xpose.msra.mxu0 0.0
        %5970 = vmatprep.subr.mxu0 0.0
        %5971 = vmatpush2.xpose.msra.mxu0 0.0
        %5972 = vmatprep.subr.mxu0 0.0
        %5973 = vmatpush2.xpose.msra.mxu0 0.0
        %5974 = vmatprep.subr.mxu0 0.0
        %5975 = vmatpush2.xpose.msra.mxu0 0.0
        %5976 = vmatprep.subr.mxu0 0.0
        %5977 = vmatpush2.xpose.msra.mxu0 0.0
        %5978 = vmatprep.subr.mxu0 0.0
        %5979 = vmatpush2.xpose.msra.mxu0 0.0
        %5980 = vmatprep.subr.mxu0 0.0
        %5981 = vmatpush2.xpose.msra.mxu0 0.0
        %5982 = vmatprep.mubr.f32.mxu0 0.0
        %5983 = vmatmul.mubr.f32.gmra.mxu0 %v5914
        %v5984 = vpop.f32.mrf.mxu0
        %v5985 = vadd.f32 0.0, %v5984
        %v5986 = vpop.f32.mrf.mxu0
        %5987 = vdwg.mxu0
        %5989 = vrot.lane.b32.xlu0 %v5393, 104
        %v5990 = vpop.permute.xlu0 %5989
        %v5992 = vsel %vm1575, %v5751, 0
        %v5994 = vsel %vm1575, %v5990, 0
        %5996 = vmatprep.subr.mxu0 0.0
        %5997 = vmatpush1.xpose.msra.mxu0 0.0
        %5998 = vmatprep.subr.mxu0 0.0
        %5999 = vmatpush1.xpose.msra.mxu0 0.0
        %6000 = vmatprep.subr.mxu0 0.0
        %6001 = vmatpush1.xpose.msra.mxu0 0.0
        %6002 = vmatprep.subr.mxu0 0.0
        %6003 = vmatpush1.xpose.msra.mxu0 0.0
        %6004 = vmatprep.subr.mxu0 0.0
        %6005 = vmatpush1.xpose.msra.mxu0 0.0
        %6006 = vmatprep.subr.mxu0 0.0
        %6007 = vmatpush1.xpose.msra.mxu0 0.0
        %6008 = vmatprep.subr.mxu0 0.0
        %6009 = vmatpush1.xpose.msra.mxu0 0.0
        %6010 = vmatprep.subr.mxu0 0.0
        %6011 = vmatpush1.xpose.msra.mxu0 0.0
        %6012 = vmatprep.subr.mxu0 0.0
        %6013 = vmatpush1.xpose.msra.mxu0 0.0
        %6014 = vmatprep.subr.mxu0 0.0
        %6015 = vmatpush1.xpose.msra.mxu0 0.0
        %6016 = vmatprep.subr.mxu0 0.0
        %6017 = vmatpush1.xpose.msra.mxu0 0.0
        %6018 = vmatprep.subr.mxu0 0.0
        %6019 = vmatpush1.xpose.msra.mxu0 0.0
        %6020 = vmatprep.subr.mxu0 0.0
        %6021 = vmatpush1.xpose.msra.mxu0 0.0
        %6022 = vmatprep.subr.mxu0 0.0
        %6023 = vmatpush1.xpose.msra.mxu0 0.0
        %6024 = vmatprep.subr.mxu0 0.0
        %6025 = vmatpush1.xpose.msra.mxu0 0.0
        %6026 = vmatprep.subr.mxu0 0.0
        %6027 = vmatpush1.xpose.msra.mxu0 %v5994
        %6028 = vmatprep.subr.mxu0 0.0
        %6029 = vmatpush2.xpose.msra.mxu0 0.0
        %6030 = vmatprep.subr.mxu0 0.0
        %6031 = vmatpush2.xpose.msra.mxu0 0.0
        %6032 = vmatprep.subr.mxu0 0.0
        %6033 = vmatpush2.xpose.msra.mxu0 0.0
        %6034 = vmatprep.subr.mxu0 0.0
        %6035 = vmatpush2.xpose.msra.mxu0 0.0
        %6036 = vmatprep.subr.mxu0 0.0
        %6037 = vmatpush2.xpose.msra.mxu0 0.0
        %6038 = vmatprep.subr.mxu0 0.0
        %6039 = vmatpush2.xpose.msra.mxu0 0.0
        %6040 = vmatprep.subr.mxu0 0.0
        %6041 = vmatpush2.xpose.msra.mxu0 0.0
        %6042 = vmatprep.subr.mxu0 0.0
        %6043 = vmatpush2.xpose.msra.mxu0 0.0
        %6044 = vmatprep.subr.mxu0 0.0
        %6045 = vmatpush2.xpose.msra.mxu0 0.0
        %6046 = vmatprep.subr.mxu0 0.0
        %6047 = vmatpush2.xpose.msra.mxu0 0.0
        %6048 = vmatprep.subr.mxu0 0.0
        %6049 = vmatpush2.xpose.msra.mxu0 0.0
        %6050 = vmatprep.subr.mxu0 0.0
        %6051 = vmatpush2.xpose.msra.mxu0 0.0
        %6052 = vmatprep.subr.mxu0 0.0
        %6053 = vmatpush2.xpose.msra.mxu0 0.0
        %6054 = vmatprep.subr.mxu0 0.0
        %6055 = vmatpush2.xpose.msra.mxu0 0.0
        %6056 = vmatprep.subr.mxu0 0.0
        %6057 = vmatpush2.xpose.msra.mxu0 0.0
        %6058 = vmatprep.subr.mxu0 0.0
        %6059 = vmatpush2.xpose.msra.mxu0 0.0
        %6060 = vmatprep.mubr.f32.mxu0 0.0
        %6061 = vmatmul.mubr.f32.gmra.mxu0 %v5992
        %v6062 = vpop.f32.mrf.mxu0
        %v6063 = vadd.f32 0.0, %v6062
        %v6064 = vpop.f32.mrf.mxu0
        %6065 = vdwg.mxu0
        %6067 = vrot.lane.b32.xlu0 %v5394, 104
        %v6068 = vpop.permute.xlu0 %6067
        %v6070 = vsel %vm1575, %v5742, 0
        %v6072 = vsel %vm1575, %v6068, 0
        %6074 = vmatprep.subr.mxu0 0.0
        %6075 = vmatpush1.xpose.msra.mxu0 0.0
        %6076 = vmatprep.subr.mxu0 0.0
        %6077 = vmatpush1.xpose.msra.mxu0 0.0
        %6078 = vmatprep.subr.mxu0 0.0
        %6079 = vmatpush1.xpose.msra.mxu0 0.0
        %6080 = vmatprep.subr.mxu0 0.0
        %6081 = vmatpush1.xpose.msra.mxu0 0.0
        %6082 = vmatprep.subr.mxu0 0.0
        %6083 = vmatpush1.xpose.msra.mxu0 0.0
        %6084 = vmatprep.subr.mxu0 0.0
        %6085 = vmatpush1.xpose.msra.mxu0 0.0
        %6086 = vmatprep.subr.mxu0 0.0
        %6087 = vmatpush1.xpose.msra.mxu0 0.0
        %6088 = vmatprep.subr.mxu0 0.0
        %6089 = vmatpush1.xpose.msra.mxu0 0.0
        %6090 = vmatprep.subr.mxu0 0.0
        %6091 = vmatpush1.xpose.msra.mxu0 0.0
        %6092 = vmatprep.subr.mxu0 0.0
        %6093 = vmatpush1.xpose.msra.mxu0 0.0
        %6094 = vmatprep.subr.mxu0 0.0
        %6095 = vmatpush1.xpose.msra.mxu0 0.0
        %6096 = vmatprep.subr.mxu0 0.0
        %6097 = vmatpush1.xpose.msra.mxu0 0.0
        %6098 = vmatprep.subr.mxu0 0.0
        %6099 = vmatpush1.xpose.msra.mxu0 0.0
        %6100 = vmatprep.subr.mxu0 0.0
        %6101 = vmatpush1.xpose.msra.mxu0 0.0
        %6102 = vmatprep.subr.mxu0 0.0
        %6103 = vmatpush1.xpose.msra.mxu0 0.0
        %6104 = vmatprep.subr.mxu0 0.0
        %6105 = vmatpush1.xpose.msra.mxu0 %v6072
        %6106 = vmatprep.subr.mxu0 0.0
        %6107 = vmatpush2.xpose.msra.mxu0 0.0
        %6108 = vmatprep.subr.mxu0 0.0
        %6109 = vmatpush2.xpose.msra.mxu0 0.0
        %6110 = vmatprep.subr.mxu0 0.0
        %6111 = vmatpush2.xpose.msra.mxu0 0.0
        %6112 = vmatprep.subr.mxu0 0.0
        %6113 = vmatpush2.xpose.msra.mxu0 0.0
        %6114 = vmatprep.subr.mxu0 0.0
        %6115 = vmatpush2.xpose.msra.mxu0 0.0
        %6116 = vmatprep.subr.mxu0 0.0
        %6117 = vmatpush2.xpose.msra.mxu0 0.0
        %6118 = vmatprep.subr.mxu0 0.0
        %6119 = vmatpush2.xpose.msra.mxu0 0.0
        %6120 = vmatprep.subr.mxu0 0.0
        %6121 = vmatpush2.xpose.msra.mxu0 0.0
        %6122 = vmatprep.subr.mxu0 0.0
        %6123 = vmatpush2.xpose.msra.mxu0 0.0
        %6124 = vmatprep.subr.mxu0 0.0
        %6125 = vmatpush2.xpose.msra.mxu0 0.0
        %6126 = vmatprep.subr.mxu0 0.0
        %6127 = vmatpush2.xpose.msra.mxu0 0.0
        %6128 = vmatprep.subr.mxu0 0.0
        %6129 = vmatpush2.xpose.msra.mxu0 0.0
        %6130 = vmatprep.subr.mxu0 0.0
        %6131 = vmatpush2.xpose.msra.mxu0 0.0
        %6132 = vmatprep.subr.mxu0 0.0
        %6133 = vmatpush2.xpose.msra.mxu0 0.0
        %6134 = vmatprep.subr.mxu0 0.0
        %6135 = vmatpush2.xpose.msra.mxu0 0.0
        %6136 = vmatprep.subr.mxu0 0.0
        %6137 = vmatpush2.xpose.msra.mxu0 0.0
        %6138 = vmatprep.mubr.f32.mxu0 0.0
        %6139 = vmatmul.mubr.f32.gmra.mxu0 %v6070
        %v6140 = vpop.f32.mrf.mxu0
        %v6141 = vadd.f32 0.0, %v6140
        %v6142 = vpop.f32.mrf.mxu0
        %6143 = vdwg.mxu0
        %6145 = vrot.lane.b32.xlu0 %v5395, 104
        %v6146 = vpop.permute.xlu0 %6145
        %v6148 = vsel %vm1575, %v5752, 0
        %v6150 = vsel %vm1575, %v6146, 0
        %6152 = vmatprep.subr.mxu0 0.0
        %6153 = vmatpush1.xpose.msra.mxu0 0.0
        %6154 = vmatprep.subr.mxu0 0.0
        %6155 = vmatpush1.xpose.msra.mxu0 0.0
        %6156 = vmatprep.subr.mxu0 0.0
        %6157 = vmatpush1.xpose.msra.mxu0 0.0
        %6158 = vmatprep.subr.mxu0 0.0
        %6159 = vmatpush1.xpose.msra.mxu0 0.0
        %6160 = vmatprep.subr.mxu0 0.0
        %6161 = vmatpush1.xpose.msra.mxu0 0.0
        %6162 = vmatprep.subr.mxu0 0.0
        %6163 = vmatpush1.xpose.msra.mxu0 0.0
        %6164 = vmatprep.subr.mxu0 0.0
        %6165 = vmatpush1.xpose.msra.mxu0 0.0
        %6166 = vmatprep.subr.mxu0 0.0
        %6167 = vmatpush1.xpose.msra.mxu0 0.0
        %6168 = vmatprep.subr.mxu0 0.0
        %6169 = vmatpush1.xpose.msra.mxu0 0.0
        %6170 = vmatprep.subr.mxu0 0.0
        %6171 = vmatpush1.xpose.msra.mxu0 0.0
        %6172 = vmatprep.subr.mxu0 0.0
        %6173 = vmatpush1.xpose.msra.mxu0 0.0
        %6174 = vmatprep.subr.mxu0 0.0
        %6175 = vmatpush1.xpose.msra.mxu0 0.0
        %6176 = vmatprep.subr.mxu0 0.0
        %6177 = vmatpush1.xpose.msra.mxu0 0.0
        %6178 = vmatprep.subr.mxu0 0.0
        %6179 = vmatpush1.xpose.msra.mxu0 0.0
        %6180 = vmatprep.subr.mxu0 0.0
        %6181 = vmatpush1.xpose.msra.mxu0 0.0
        %6182 = vmatprep.subr.mxu0 0.0
        %6183 = vmatpush1.xpose.msra.mxu0 %v6150
        %6184 = vmatprep.subr.mxu0 0.0
        %6185 = vmatpush2.xpose.msra.mxu0 0.0
        %6186 = vmatprep.subr.mxu0 0.0
        %6187 = vmatpush2.xpose.msra.mxu0 0.0
        %6188 = vmatprep.subr.mxu0 0.0
        %6189 = vmatpush2.xpose.msra.mxu0 0.0
        %6190 = vmatprep.subr.mxu0 0.0
        %6191 = vmatpush2.xpose.msra.mxu0 0.0
        %6192 = vmatprep.subr.mxu0 0.0
        %6193 = vmatpush2.xpose.msra.mxu0 0.0
        %6194 = vmatprep.subr.mxu0 0.0
        %6195 = vmatpush2.xpose.msra.mxu0 0.0
        %6196 = vmatprep.subr.mxu0 0.0
        %6197 = vmatpush2.xpose.msra.mxu0 0.0
        %6198 = vmatprep.subr.mxu0 0.0
        %6199 = vmatpush2.xpose.msra.mxu0 0.0
        %6200 = vmatprep.subr.mxu0 0.0
        %6201 = vmatpush2.xpose.msra.mxu0 0.0
        %6202 = vmatprep.subr.mxu0 0.0
        %6203 = vmatpush2.xpose.msra.mxu0 0.0
        %6204 = vmatprep.subr.mxu0 0.0
        %6205 = vmatpush2.xpose.msra.mxu0 0.0
        %6206 = vmatprep.subr.mxu0 0.0
        %6207 = vmatpush2.xpose.msra.mxu0 0.0
        %6208 = vmatprep.subr.mxu0 0.0
        %6209 = vmatpush2.xpose.msra.mxu0 0.0
        %6210 = vmatprep.subr.mxu0 0.0
        %6211 = vmatpush2.xpose.msra.mxu0 0.0
        %6212 = vmatprep.subr.mxu0 0.0
        %6213 = vmatpush2.xpose.msra.mxu0 0.0
        %6214 = vmatprep.subr.mxu0 0.0
        %6215 = vmatpush2.xpose.msra.mxu0 0.0
        %6216 = vmatprep.mubr.f32.mxu0 0.0
        %6217 = vmatmul.mubr.f32.gmra.mxu0 %v6148
        %v6218 = vpop.f32.mrf.mxu0
        %v6219 = vadd.f32 0.0, %v6218
        %v6220 = vpop.f32.mrf.mxu0
        %6221 = vdwg.mxu0
        %6223 = vrot.lane.b32.xlu0 %v5396, 104
        %v6224 = vpop.permute.xlu0 %6223
        %v6226 = vsel %vm1575, %v5749, 0
        %v6228 = vsel %vm1575, %v6224, 0
        %6230 = vmatprep.subr.mxu0 0.0
        %6231 = vmatpush1.xpose.msra.mxu0 0.0
        %6232 = vmatprep.subr.mxu0 0.0
        %6233 = vmatpush1.xpose.msra.mxu0 0.0
        %6234 = vmatprep.subr.mxu0 0.0
        %6235 = vmatpush1.xpose.msra.mxu0 0.0
        %6236 = vmatprep.subr.mxu0 0.0
        %6237 = vmatpush1.xpose.msra.mxu0 0.0
        %6238 = vmatprep.subr.mxu0 0.0
        %6239 = vmatpush1.xpose.msra.mxu0 0.0
        %6240 = vmatprep.subr.mxu0 0.0
        %6241 = vmatpush1.xpose.msra.mxu0 0.0
        %6242 = vmatprep.subr.mxu0 0.0
        %6243 = vmatpush1.xpose.msra.mxu0 0.0
        %6244 = vmatprep.subr.mxu0 0.0
        %6245 = vmatpush1.xpose.msra.mxu0 0.0
        %6246 = vmatprep.subr.mxu0 0.0
        %6247 = vmatpush1.xpose.msra.mxu0 0.0
        %6248 = vmatprep.subr.mxu0 0.0
        %6249 = vmatpush1.xpose.msra.mxu0 0.0
        %6250 = vmatprep.subr.mxu0 0.0
        %6251 = vmatpush1.xpose.msra.mxu0 0.0
        %6252 = vmatprep.subr.mxu0 0.0
        %6253 = vmatpush1.xpose.msra.mxu0 0.0
        %6254 = vmatprep.subr.mxu0 0.0
        %6255 = vmatpush1.xpose.msra.mxu0 0.0
        %6256 = vmatprep.subr.mxu0 0.0
        %6257 = vmatpush1.xpose.msra.mxu0 0.0
        %6258 = vmatprep.subr.mxu0 0.0
        %6259 = vmatpush1.xpose.msra.mxu0 0.0
        %6260 = vmatprep.subr.mxu0 0.0
        %6261 = vmatpush1.xpose.msra.mxu0 %v6228
        %6262 = vmatprep.subr.mxu0 0.0
        %6263 = vmatpush2.xpose.msra.mxu0 0.0
        %6264 = vmatprep.subr.mxu0 0.0
        %6265 = vmatpush2.xpose.msra.mxu0 0.0
        %6266 = vmatprep.subr.mxu0 0.0
        %6267 = vmatpush2.xpose.msra.mxu0 0.0
        %6268 = vmatprep.subr.mxu0 0.0
        %6269 = vmatpush2.xpose.msra.mxu0 0.0
        %6270 = vmatprep.subr.mxu0 0.0
        %6271 = vmatpush2.xpose.msra.mxu0 0.0
        %6272 = vmatprep.subr.mxu0 0.0
        %6273 = vmatpush2.xpose.msra.mxu0 0.0
        %6274 = vmatprep.subr.mxu0 0.0
        %6275 = vmatpush2.xpose.msra.mxu0 0.0
        %6276 = vmatprep.subr.mxu0 0.0
        %6277 = vmatpush2.xpose.msra.mxu0 0.0
        %6278 = vmatprep.subr.mxu0 0.0
        %6279 = vmatpush2.xpose.msra.mxu0 0.0
        %6280 = vmatprep.subr.mxu0 0.0
        %6281 = vmatpush2.xpose.msra.mxu0 0.0
        %6282 = vmatprep.subr.mxu0 0.0
        %6283 = vmatpush2.xpose.msra.mxu0 0.0
        %6284 = vmatprep.subr.mxu0 0.0
        %6285 = vmatpush2.xpose.msra.mxu0 0.0
        %6286 = vmatprep.subr.mxu0 0.0
        %6287 = vmatpush2.xpose.msra.mxu0 0.0
        %6288 = vmatprep.subr.mxu0 0.0
        %6289 = vmatpush2.xpose.msra.mxu0 0.0
        %6290 = vmatprep.subr.mxu0 0.0
        %6291 = vmatpush2.xpose.msra.mxu0 0.0
        %6292 = vmatprep.subr.mxu0 0.0
        %6293 = vmatpush2.xpose.msra.mxu0 0.0
        %6294 = vmatprep.mubr.f32.mxu0 0.0
        %6295 = vmatmul.mubr.f32.gmra.mxu0 %v6226
        %v6296 = vpop.f32.mrf.mxu0
        %v6297 = vadd.f32 0.0, %v6296
        %v6298 = vpop.f32.mrf.mxu0
        %6299 = vdwg.mxu0
        %6301 = vrot.lane.b32.xlu0 %v5397, 104
        %v6302 = vpop.permute.xlu0 %6301
        %v6304 = vsel %vm1575, %v5753, 0
        %v6306 = vsel %vm1575, %v6302, 0
        %6308 = vmatprep.subr.mxu0 0.0
        %6309 = vmatpush1.xpose.msra.mxu0 0.0
        %6310 = vmatprep.subr.mxu0 0.0
        %6311 = vmatpush1.xpose.msra.mxu0 0.0
        %6312 = vmatprep.subr.mxu0 0.0
        %6313 = vmatpush1.xpose.msra.mxu0 0.0
        %6314 = vmatprep.subr.mxu0 0.0
        %6315 = vmatpush1.xpose.msra.mxu0 0.0
        %6316 = vmatprep.subr.mxu0 0.0
        %6317 = vmatpush1.xpose.msra.mxu0 0.0
        %6318 = vmatprep.subr.mxu0 0.0
        %6319 = vmatpush1.xpose.msra.mxu0 0.0
        %6320 = vmatprep.subr.mxu0 0.0
        %6321 = vmatpush1.xpose.msra.mxu0 0.0
        %6322 = vmatprep.subr.mxu0 0.0
        %6323 = vmatpush1.xpose.msra.mxu0 0.0
        %6324 = vmatprep.subr.mxu0 0.0
        %6325 = vmatpush1.xpose.msra.mxu0 0.0
        %6326 = vmatprep.subr.mxu0 0.0
        %6327 = vmatpush1.xpose.msra.mxu0 0.0
        %6328 = vmatprep.subr.mxu0 0.0
        %6329 = vmatpush1.xpose.msra.mxu0 0.0
        %6330 = vmatprep.subr.mxu0 0.0
        %6331 = vmatpush1.xpose.msra.mxu0 0.0
        %6332 = vmatprep.subr.mxu0 0.0
        %6333 = vmatpush1.xpose.msra.mxu0 0.0
        %6334 = vmatprep.subr.mxu0 0.0
        %6335 = vmatpush1.xpose.msra.mxu0 0.0
        %6336 = vmatprep.subr.mxu0 0.0
        %6337 = vmatpush1.xpose.msra.mxu0 0.0
        %6338 = vmatprep.subr.mxu0 0.0
        %6339 = vmatpush1.xpose.msra.mxu0 %v6306
        %6340 = vmatprep.subr.mxu0 0.0
        %6341 = vmatpush2.xpose.msra.mxu0 0.0
        %6342 = vmatprep.subr.mxu0 0.0
        %6343 = vmatpush2.xpose.msra.mxu0 0.0
        %6344 = vmatprep.subr.mxu0 0.0
        %6345 = vmatpush2.xpose.msra.mxu0 0.0
        %6346 = vmatprep.subr.mxu0 0.0
        %6347 = vmatpush2.xpose.msra.mxu0 0.0
        %6348 = vmatprep.subr.mxu0 0.0
        %6349 = vmatpush2.xpose.msra.mxu0 0.0
        %6350 = vmatprep.subr.mxu0 0.0
        %6351 = vmatpush2.xpose.msra.mxu0 0.0
        %6352 = vmatprep.subr.mxu0 0.0
        %6353 = vmatpush2.xpose.msra.mxu0 0.0
        %6354 = vmatprep.subr.mxu0 0.0
        %6355 = vmatpush2.xpose.msra.mxu0 0.0
        %6356 = vmatprep.subr.mxu0 0.0
        %6357 = vmatpush2.xpose.msra.mxu0 0.0
        %6358 = vmatprep.subr.mxu0 0.0
        %6359 = vmatpush2.xpose.msra.mxu0 0.0
        %6360 = vmatprep.subr.mxu0 0.0
        %6361 = vmatpush2.xpose.msra.mxu0 0.0
        %6362 = vmatprep.subr.mxu0 0.0
        %6363 = vmatpush2.xpose.msra.mxu0 0.0
        %6364 = vmatprep.subr.mxu0 0.0
        %6365 = vmatpush2.xpose.msra.mxu0 0.0
        %6366 = vmatprep.subr.mxu0 0.0
        %6367 = vmatpush2.xpose.msra.mxu0 0.0
        %6368 = vmatprep.subr.mxu0 0.0
        %6369 = vmatpush2.xpose.msra.mxu0 0.0
        %6370 = vmatprep.subr.mxu0 0.0
        %6371 = vmatpush2.xpose.msra.mxu0 0.0
        %6372 = vmatprep.mubr.f32.mxu0 0.0
        %6373 = vmatmul.mubr.f32.gmra.mxu0 %v6304
        %v6374 = vpop.f32.mrf.mxu0
        %v6375 = vadd.f32 0.0, %v6374
        %v6376 = vpop.f32.mrf.mxu0
        %6377 = vdwg.mxu0
        %v6378 = vcombine.low %v5829, %v5985
        %v6380 = vunpack.c.l.s4 1983009808
        %v6381 = vunpack.c.0.s8 %v6380
        %v6382 = vlaneseq
        %v6383 = vshrl.u32 %v6382, 7
        %v6384 = vsub.s32 %v6381, %v6383
        %v6385 = vrot.slane %v6378, %v6384
        %v6386 = vcombine.low %v5907, %v6063
        %v6388 = vunpack.c.l.s4 1983009808
        %v6389 = vunpack.c.0.s8 %v6388
        %v6390 = vlaneseq
        %v6391 = vshrl.u32 %v6390, 7
        %v6392 = vsub.s32 %v6389, %v6391
        %v6393 = vrot.slane %v6386, %v6392
        %v6394 = vcombine.low %v6141, %v6297
        %v6396 = vunpack.c.l.s4 1983009808
        %v6397 = vunpack.c.0.s8 %v6396
        %v6398 = vlaneseq
        %v6399 = vshrl.u32 %v6398, 7
        %v6400 = vsub.s32 %v6397, %v6399
        %v6401 = vrot.slane %v6394, %v6400
        %v6402 = vcombine.low %v6219, %v6375
        %v6404 = vunpack.c.l.s4 1983009808
        %v6405 = vunpack.c.0.s8 %v6404
        %v6406 = vlaneseq
        %v6407 = vshrl.u32 %v6406, 7
        %v6408 = vsub.s32 %v6405, %v6407
        %v6409 = vrot.slane %v6402, %v6408
        %v6410 = vcombine.low %v6385, %v6393
        %v6411 = vcombine.high %v6385, %v6393
        %v6413 = vunpack.c.l.s4 1934713408
        %v6414 = vunpack.c.0.s8 %v6413
        %v6415 = vlaneseq
        %v6416 = vshrl.u32 %v6415, 7
        %v6417 = vsub.s32 %v6414, %v6416
        %v6418 = vrot.slane %v6410, %v6417
        %v6420 = vunpack.c.l.s4 1934713408
        %v6421 = vunpack.c.0.s8 %v6420
        %v6422 = vlaneseq
        %v6423 = vshrl.u32 %v6422, 7
        %v6424 = vsub.s32 %v6421, %v6423
        %v6425 = vrot.slane %v6411, %v6424
        %v6426 = vcombine.low %v6401, %v6409
        %v6427 = vcombine.high %v6401, %v6409
        %v6429 = vunpack.c.l.s4 1934713408
        %v6430 = vunpack.c.0.s8 %v6429
        %v6431 = vlaneseq
        %v6432 = vshrl.u32 %v6431, 7
        %v6433 = vsub.s32 %v6430, %v6432
        %v6434 = vrot.slane %v6426, %v6433
        %v6436 = vunpack.c.l.s4 1934713408
        %v6437 = vunpack.c.0.s8 %v6436
        %v6438 = vlaneseq
        %v6439 = vshrl.u32 %v6438, 7
        %v6440 = vsub.s32 %v6437, %v6439
        %v6441 = vrot.slane %v6427, %v6440
        %v6442 = vcombine.low %v6418, %v6434
        %v6443 = vcombine.high %v6418, %v6434
        %v6444 = vcombine.low %v6425, %v6441
        %v6445 = vcombine.high %v6425, %v6441
        %v6446 = vcombine.high %v6442, 0.0
        %v6448 = vunpack.c.l.s4 1983009808
        %v6449 = vunpack.c.0.s8 %v6448
        %v6450 = vlaneseq
        %v6451 = vshrl.u32 %v6450, 7
        %v6452 = vsub.s32 %v6449, %v6451
        %v6453 = vrot.slane %v6442, %v6452
        %v6455 = vunpack.c.l.s4 1983009808
        %v6456 = vunpack.c.0.s8 %v6455
        %v6457 = vlaneseq
        %v6458 = vshrl.u32 %v6457, 7
        %v6459 = vsub.s32 %v6456, %v6458
        %v6460 = vrot.slane %v6446, %v6459
        %v6461 = vcombine.high %v6453, 0.0
        %v6463 = vunpack.c.l.s4 1934713408
        %v6464 = vunpack.c.0.s8 %v6463
        %v6465 = vlaneseq
        %v6466 = vshrl.u32 %v6465, 7
        %v6467 = vsub.s32 %v6464, %v6466
        %v6468 = vrot.slane %v6453, %v6467
        %v6470 = vunpack.c.l.s4 1934713408
        %v6471 = vunpack.c.0.s8 %v6470
        %v6472 = vlaneseq
        %v6473 = vshrl.u32 %v6472, 7
        %v6474 = vsub.s32 %v6471, %v6473
        %v6475 = vrot.slane %v6461, %v6474
        %v6476 = vcombine.high %v6460, 0.0
        %v6478 = vunpack.c.l.s4 1934713408
        %v6479 = vunpack.c.0.s8 %v6478
        %v6480 = vlaneseq
        %v6481 = vshrl.u32 %v6480, 7
        %v6482 = vsub.s32 %v6479, %v6481
        %v6483 = vrot.slane %v6460, %v6482
        %v6485 = vunpack.c.l.s4 1934713408
        %v6486 = vunpack.c.0.s8 %v6485
        %v6487 = vlaneseq
        %v6488 = vshrl.u32 %v6487, 7
        %v6489 = vsub.s32 %v6486, %v6488
        %v6490 = vrot.slane %v6476, %v6489
        %v6491 = vcombine.high %v6468, 0.0
        %v6492 = vcombine.high %v6475, 0.0
        %v6493 = vcombine.high %v6483, 0.0
        %v6494 = vcombine.high %v6490, 0.0
        %v6495 = vcombine.high %v6443, 0.0
        %v6497 = vunpack.c.l.s4 1983009808
        %v6498 = vunpack.c.0.s8 %v6497
        %v6499 = vlaneseq
        %v6500 = vshrl.u32 %v6499, 7
        %v6501 = vsub.s32 %v6498, %v6500
        %v6502 = vrot.slane %v6443, %v6501
        %v6504 = vunpack.c.l.s4 1983009808
        %v6505 = vunpack.c.0.s8 %v6504
        %v6506 = vlaneseq
        %v6507 = vshrl.u32 %v6506, 7
        %v6508 = vsub.s32 %v6505, %v6507
        %v6509 = vrot.slane %v6495, %v6508
        %v6510 = vcombine.high %v6502, 0.0
        %v6512 = vunpack.c.l.s4 1934713408
        %v6513 = vunpack.c.0.s8 %v6512
        %v6514 = vlaneseq
        %v6515 = vshrl.u32 %v6514, 7
        %v6516 = vsub.s32 %v6513, %v6515
        %v6517 = vrot.slane %v6502, %v6516
        %v6519 = vunpack.c.l.s4 1934713408
        %v6520 = vunpack.c.0.s8 %v6519
        %v6521 = vlaneseq
        %v6522 = vshrl.u32 %v6521, 7
        %v6523 = vsub.s32 %v6520, %v6522
        %v6524 = vrot.slane %v6510, %v6523
        %v6525 = vcombine.high %v6509, 0.0
        %v6527 = vunpack.c.l.s4 1934713408
        %v6528 = vunpack.c.0.s8 %v6527
        %v6529 = vlaneseq
        %v6530 = vshrl.u32 %v6529, 7
        %v6531 = vsub.s32 %v6528, %v6530
        %v6532 = vrot.slane %v6509, %v6531
        %v6534 = vunpack.c.l.s4 1934713408
        %v6535 = vunpack.c.0.s8 %v6534
        %v6536 = vlaneseq
        %v6537 = vshrl.u32 %v6536, 7
        %v6538 = vsub.s32 %v6535, %v6537
        %v6539 = vrot.slane %v6525, %v6538
        %v6540 = vcombine.high %v6517, 0.0
        %v6541 = vcombine.high %v6524, 0.0
        %v6542 = vcombine.high %v6532, 0.0
        %v6543 = vcombine.high %v6539, 0.0
        %v6544 = vcombine.high %v6444, 0.0
        %v6546 = vunpack.c.l.s4 1983009808
        %v6547 = vunpack.c.0.s8 %v6546
        %v6548 = vlaneseq
        %v6549 = vshrl.u32 %v6548, 7
        %v6550 = vsub.s32 %v6547, %v6549
        %v6551 = vrot.slane %v6444, %v6550
        %v6553 = vunpack.c.l.s4 1983009808
        %v6554 = vunpack.c.0.s8 %v6553
        %v6555 = vlaneseq
        %v6556 = vshrl.u32 %v6555, 7
        %v6557 = vsub.s32 %v6554, %v6556
        %v6558 = vrot.slane %v6544, %v6557
        %v6559 = vcombine.high %v6551, 0.0
        %v6561 = vunpack.c.l.s4 1934713408
        %v6562 = vunpack.c.0.s8 %v6561
        %v6563 = vlaneseq
        %v6564 = vshrl.u32 %v6563, 7
        %v6565 = vsub.s32 %v6562, %v6564
        %v6566 = vrot.slane %v6551, %v6565
        %v6568 = vunpack.c.l.s4 1934713408
        %v6569 = vunpack.c.0.s8 %v6568
        %v6570 = vlaneseq
        %v6571 = vshrl.u32 %v6570, 7
        %v6572 = vsub.s32 %v6569, %v6571
        %v6573 = vrot.slane %v6559, %v6572
        %v6574 = vcombine.high %v6558, 0.0
        %v6576 = vunpack.c.l.s4 1934713408
        %v6577 = vunpack.c.0.s8 %v6576
        %v6578 = vlaneseq
        %v6579 = vshrl.u32 %v6578, 7
        %v6580 = vsub.s32 %v6577, %v6579
        %v6581 = vrot.slane %v6558, %v6580
        %v6583 = vunpack.c.l.s4 1934713408
        %v6584 = vunpack.c.0.s8 %v6583
        %v6585 = vlaneseq
        %v6586 = vshrl.u32 %v6585, 7
        %v6587 = vsub.s32 %v6584, %v6586
        %v6588 = vrot.slane %v6574, %v6587
        %v6589 = vcombine.high %v6566, 0.0
        %v6590 = vcombine.high %v6573, 0.0
        %v6591 = vcombine.high %v6581, 0.0
        %v6592 = vcombine.high %v6588, 0.0
        %v6593 = vcombine.high %v6445, 0.0
        %v6595 = vunpack.c.l.s4 1983009808
        %v6596 = vunpack.c.0.s8 %v6595
        %v6597 = vlaneseq
        %v6598 = vshrl.u32 %v6597, 7
        %v6599 = vsub.s32 %v6596, %v6598
        %v6600 = vrot.slane %v6445, %v6599
        %v6602 = vunpack.c.l.s4 1983009808
        %v6603 = vunpack.c.0.s8 %v6602
        %v6604 = vlaneseq
        %v6605 = vshrl.u32 %v6604, 7
        %v6606 = vsub.s32 %v6603, %v6605
        %v6607 = vrot.slane %v6593, %v6606
        %v6608 = vcombine.high %v6600, 0.0
        %v6610 = vunpack.c.l.s4 1934713408
        %v6611 = vunpack.c.0.s8 %v6610
        %v6612 = vlaneseq
        %v6613 = vshrl.u32 %v6612, 7
        %v6614 = vsub.s32 %v6611, %v6613
        %v6615 = vrot.slane %v6600, %v6614
        %v6617 = vunpack.c.l.s4 1934713408
        %v6618 = vunpack.c.0.s8 %v6617
        %v6619 = vlaneseq
        %v6620 = vshrl.u32 %v6619, 7
        %v6621 = vsub.s32 %v6618, %v6620
        %v6622 = vrot.slane %v6608, %v6621
        %v6623 = vcombine.high %v6607, 0.0
        %v6625 = vunpack.c.l.s4 1934713408
        %v6626 = vunpack.c.0.s8 %v6625
        %v6627 = vlaneseq
        %v6628 = vshrl.u32 %v6627, 7
        %v6629 = vsub.s32 %v6626, %v6628
        %v6630 = vrot.slane %v6607, %v6629
        %v6632 = vunpack.c.l.s4 1934713408
        %v6633 = vunpack.c.0.s8 %v6632
        %v6634 = vlaneseq
        %v6635 = vshrl.u32 %v6634, 7
        %v6636 = vsub.s32 %v6633, %v6635
        %v6637 = vrot.slane %v6623, %v6636
        %v6638 = vcombine.high %v6615, 0.0
        %v6639 = vcombine.high %v6622, 0.0
        %v6640 = vcombine.high %v6630, 0.0
        %v6641 = vcombine.high %v6637, 0.0
        %6646 = vrot.lane.b32.xlu0 %v6491, 8
        %v6647 = vpop.permute.xlu0 %6646
        %6648 = vrot.lane.b32.xlu0 %v6540, 8
        %v6649 = vpop.permute.xlu0 %6648
        %6650 = vrot.lane.b32.xlu0 %v6589, 8
        %v6651 = vpop.permute.xlu0 %6650
        %6652 = vrot.lane.b32.xlu0 %v6638, 8
        %v6653 = vpop.permute.xlu0 %6652
        %6662 = vrot.lane.b32.xlu0 %v6475, 16
        %v6663 = vpop.permute.xlu0 %6662
        %6664 = vrot.lane.b32.xlu0 %v6524, 16
        %v6665 = vpop.permute.xlu0 %6664
        %6666 = vrot.lane.b32.xlu0 %v6573, 16
        %v6667 = vpop.permute.xlu0 %6666
        %6668 = vrot.lane.b32.xlu0 %v6622, 16
        %v6669 = vpop.permute.xlu0 %6668
        %6678 = vrot.lane.b32.xlu0 %v6492, 24
        %v6679 = vpop.permute.xlu0 %6678
        %6680 = vrot.lane.b32.xlu0 %v6541, 24
        %v6681 = vpop.permute.xlu0 %6680
        %6682 = vrot.lane.b32.xlu0 %v6590, 24
        %v6683 = vpop.permute.xlu0 %6682
        %6684 = vrot.lane.b32.xlu0 %v6639, 24
        %v6685 = vpop.permute.xlu0 %6684
        %6694 = vrot.lane.b32.xlu0 %v6483, 32
        %v6695 = vpop.permute.xlu0 %6694
        %6696 = vrot.lane.b32.xlu0 %v6532, 32
        %v6697 = vpop.permute.xlu0 %6696
        %6698 = vrot.lane.b32.xlu0 %v6581, 32
        %v6699 = vpop.permute.xlu0 %6698
        %6700 = vrot.lane.b32.xlu0 %v6630, 32
        %v6701 = vpop.permute.xlu0 %6700
        %6710 = vrot.lane.b32.xlu0 %v6493, 40
        %v6711 = vpop.permute.xlu0 %6710
        %6712 = vrot.lane.b32.xlu0 %v6542, 40
        %v6713 = vpop.permute.xlu0 %6712
        %6714 = vrot.lane.b32.xlu0 %v6591, 40
        %v6715 = vpop.permute.xlu0 %6714
        %6716 = vrot.lane.b32.xlu0 %v6640, 40
        %v6717 = vpop.permute.xlu0 %6716
        %6726 = vrot.lane.b32.xlu0 %v6490, 48
        %v6727 = vpop.permute.xlu0 %6726
        %6728 = vrot.lane.b32.xlu0 %v6539, 48
        %v6729 = vpop.permute.xlu0 %6728
        %6730 = vrot.lane.b32.xlu0 %v6588, 48
        %v6731 = vpop.permute.xlu0 %6730
        %6732 = vrot.lane.b32.xlu0 %v6637, 48
        %v6733 = vpop.permute.xlu0 %6732
        %6742 = vrot.lane.b32.xlu0 %v6494, 56
        %v6743 = vpop.permute.xlu0 %6742
        %6744 = vrot.lane.b32.xlu0 %v6543, 56
        %v6745 = vpop.permute.xlu0 %6744
        %6746 = vrot.lane.b32.xlu0 %v6592, 56
        %v6747 = vpop.permute.xlu0 %6746
        %6748 = vrot.lane.b32.xlu0 %v6641, 56
        %v6749 = vpop.permute.xlu0 %6748
        %v6754 = vsel %vm1575, %v6468, %v6647
        %v6755 = vsel %vm1575, %v6517, %v6649
        %v6756 = vsel %vm1575, %v6566, %v6651
        %v6757 = vsel %vm1575, %v6615, %v6653
        %v6758 = vsel %vm2564, %v6754, %v6663
        %v6759 = vsel %vm2564, %v6755, %v6665
        %v6760 = vsel %vm2564, %v6756, %v6667
        %v6761 = vsel %vm2564, %v6757, %v6669
        %v6762 = vsel %vm2569, %v6758, %v6679
        %v6763 = vsel %vm2569, %v6759, %v6681
        %v6764 = vsel %vm2569, %v6760, %v6683
        %v6765 = vsel %vm2569, %v6761, %v6685
        %v6766 = vsel %vm487, %v6762, %v6695
        %v6767 = vsel %vm487, %v6763, %v6697
        %v6768 = vsel %vm487, %v6764, %v6699
        %v6769 = vsel %vm487, %v6765, %v6701
        %v6770 = vsel %vm2578, %v6766, %v6711
        %v6771 = vsel %vm2578, %v6767, %v6713
        %v6772 = vsel %vm2578, %v6768, %v6715
        %v6773 = vsel %vm2578, %v6769, %v6717
        %v6774 = vsel %vm2583, %v6770, %v6727
        %v6775 = vsel %vm2583, %v6771, %v6729
        %v6776 = vsel %vm2583, %v6772, %v6731
        %v6777 = vsel %vm2583, %v6773, %v6733
        %v6778 = vsel %vm2588, %v6774, %v6743
        %v6779 = vsel %vm2588, %v6775, %v6745
        %v6780 = vsel %vm2588, %v6776, %v6747
        %v6781 = vsel %vm2588, %v6777, %v6749
        %6782 = vst.msk [vmem:[%s473 + $0x3] sm:$0x1] %vm2593, %v6778
        %6783 = vst.msk [vmem:[%s473 + $0x7] sm:$0x1] %vm2593, %v6779
        %6784 = vst.msk [vmem:[%s473 + $0xb] sm:$0x1] %vm2593, %v6780
        %6785 = vst.msk [vmem:[%s473 + $0xf] sm:$0x1] %vm2593, %v6781
        %s6786 = sand.u32 %s262, 1
        %s6787 = scalar_lea.sflag [#allocation5], %s6786
        %s6788 = sand.u32 %s262, 1
        %s6789 = smul.addr %s6788, 16
        %s6790 = scalar_lea.vmem [#allocation12], %s6789
        // Predicated region
        $region77: #{tpu_custom_call.1} parent=55 // pred_check
          %p6791 = pneg %p272
        $region78: #{tpu_custom_call.1} parent=55 // pred_check_branch
          %6793 = sbr.rel (%p6791) target = $region80
        $region79: #{tpu_custom_call.1} parent=55 // pred_region
          %s6795 = ssub.s32 256, 256
          %6796 = vsyncadd %s6787, %s6795
          %s6797 = smul.addr %s34, 4
          %s6798 = sadd.s32 %s35, %s6797
          %s6799 = smul.addr %s6798, 64
          %s6800 = scalar_lea.hbm %s9, %s6799
          %s6801 = sshll.u32 %s6790, 4
          %s6802 = int_to_ptr.vmem [resolvable:$true] %s6801
          %6807 = dma.vmem_to_hbm [thread:$0]  %s6802, 256, %s6800, %s6787, 64, 64, 4
        $region80: #{tpu_custom_call.1} parent=55 // pred_fallthru
          _
      $region56: #{tpu_custom_call.1} parent=5 // pred_fallthru
        _
      %p6808 = scmp.le.s32.totalorder 2, %s25
      // Predicated region
      $region81: #{tpu_custom_call.1} parent=5 // pred_check
        %p6809 = pneg %p6808
      $region82: #{tpu_custom_call.1} parent=5 // pred_check_branch
        %6811 = sbr.rel (%p6809) target = $region84
      $region83: #{tpu_custom_call.1} parent=5 // pred_region
        %s6812 = ssub.s32 %s25, 2
        // Predicated region
        $region85: #{tpu_custom_call.1} parent=83 // pred_check
          %p6813 = pneg %p278
        $region86: #{tpu_custom_call.1} parent=83 // pred_check_branch
          %6815 = sbr.rel (%p6813) target = $region88
        $region87: #{tpu_custom_call.1} parent=83 // pred_region
          %s6816 = sand.u32 %s263, 1
          %s6817 = scalar_lea.sflag [#allocation5], %s6816
          %s6818 = sand.u32 %s263, 1
          %s6819 = smul.addr %s6818, 16
          %s6820 = scalar_lea.vmem [#allocation12], %s6819
          %6821 = dma.done %s6817, 256
        $region88: #{tpu_custom_call.1} parent=83 // pred_fallthru
          _
      $region84: #{tpu_custom_call.1} parent=5 // pred_fallthru
        _
    $region6: #{tpu_custom_call.1} parent=1 // loop_footer
      %s29 = sadd.s32 1, %s25
    $region7: #{tpu_custom_call.1} parent=1 // loop_footer_branch
      %24 = sbr.rel target = $region3
    $region8: #{tpu_custom_call.1} parent=1 // loop_exit
      _
    %6822 = vsyncpa [#allocation4], 1
    %s6823 = scalar_lea.sflag [#allocation4], 1
    %6824 = vsyncpa %s6823, 1
    %6825 = vsyncpa [#allocation7], 1
    %s6826 = scalar_lea.sflag [#allocation7], 1
    %6827 = vsyncpa %s6826, 1
    %6828 = vsyncpa [#allocation10], 1
    %6829 = vsyncpa [#allocation5], 1
    %s6830 = scalar_lea.sflag [#allocation5], 1
    %6831 = vsyncpa %s6830, 1

</llo_original>
